<compile_context>
chip_gen: v6e
topology: v6e:2x2x1
jax: 0.10.0
libtpu: 0.0.40
codegen_flags: <defaults>
</compile_context>

<pallas_src>
import jax
import jax.numpy as jnp
from jax.experimental import pallas as pl
from jax.experimental.pallas import tpu as pltpu


# ---------------------------------------------------------------------------
# im2col glue for Conv3d(kernel=4, stride=2, padding=1) on NCDHW input.
# Returns [N, K, P] with K = C*64 ordered (c, kd, kh, kw) (matches
# w.reshape(Co, C*64)) and P = Do*Ho*Wo row-major over (do, ho, wo).
# ---------------------------------------------------------------------------
def _im2col_s2k4(x):
    N, C, D, H, W = x.shape
    Do, Ho, Wo = D // 2, H // 2, W // 2
    xp = jnp.pad(x, ((0, 0), (0, 0), (1, 1), (1, 1), (1, 1)))
    slices = []
    for kd in range(4):
        for kh in range(4):
            for kw in range(4):
                slices.append(xp[:, :,
                                 kd:kd + 2 * Do - 1:2,
                                 kh:kh + 2 * Ho - 1:2,
                                 kw:kw + 2 * Wo - 1:2])
    pat = jnp.stack(slices, axis=2)                  # [N, C, 64, Do, Ho, Wo]
    return pat.reshape(N, C * 64, Do * Ho * Wo)      # free reshape


# ---------------------------------------------------------------------------
# Fused layer kernel: conv (matmul + bias) + InstanceNorm3d + leaky_relu(0.01)
# ---------------------------------------------------------------------------
def _conv_in_lrelu_kernel(p_ref, w_ref, b_ref, o_ref):
    # p_ref: (1, K, P)   w_ref: (Co, K)   b_ref: (Co, 1)   o_ref: (1, Co, P)
    acc = jnp.dot(w_ref[...], p_ref[0],
                  preferred_element_type=jnp.float32) + b_ref[...]   # (Co, P)
    inv_p = 1.0 / acc.shape[-1]
    mean = jnp.sum(acc, axis=-1, keepdims=True) * inv_p              # lane reduce
    ex2 = jnp.sum(acc * acc, axis=-1, keepdims=True) * inv_p
    var = ex2 - mean * mean                                          # biased var
    y = (acc - mean) * jax.lax.rsqrt(var + 1e-5)
    o_ref[0] = jnp.where(y >= 0, y, 0.01 * y)


def conv_in_lrelu_pallas(x, w, b, mxu_dtype=jnp.float32):
    """Fused Conv3d(k=4,s=2,p=1,bias) + InstanceNorm3d + leaky_relu.

    x: [N, C, D, H, W]  w: [Co, C, 4, 4, 4]  b: [Co]
    returns: [N, Co, D//2, H//2, W//2]
    """
    N, C, D, H, W = x.shape
    Co = w.shape[0]
    Do, Ho, Wo = D // 2, H // 2, W // 2
    P, K = Do * Ho * Wo, C * 64

    pat = _im2col_s2k4(x).astype(mxu_dtype)          # [N, K, P]
    w2 = w.reshape(Co, K).astype(mxu_dtype)          # [Co, K]
    b2 = b.reshape(Co, 1).astype(jnp.float32)        # broadcast over lanes

    out = pl.pallas_call(
        _conv_in_lrelu_kernel,
        out_shape=jax.ShapeDtypeStruct((N, Co, P), jnp.float32),
        grid_spec=pltpu.PrefetchScalarGridSpec(
            num_scalar_prefetch=0,
            grid=(N,),
            in_specs=[
                pl.BlockSpec((1, K, P), lambda n: (n, 0, 0)),
                pl.BlockSpec((Co, K), lambda n: (0, 0)),
                pl.BlockSpec((Co, 1), lambda n: (0, 0)),
            ],
            out_specs=pl.BlockSpec((1, Co, P), lambda n: (n, 0, 0)),
        ),
        compiler_params=pltpu.CompilerParams(
            dimension_semantics=("parallel",)),
    )(pat, w2, b2)
    return out.reshape(N, Co, Do, Ho, Wo)            # free reshape (NC layout)


# ---------------------------------------------------------------------------
# Fused tail kernel: conv5 (no norm) + adaptive_avg_pool3d(1) + leaky_relu +
# Linear(z_dim -> class_num).  Returns (logits, z) like the reference:
#   z = pooled conv5 output (pre-activation), logits = linear(leaky_relu(z)).
# ---------------------------------------------------------------------------
def _tail_kernel(p_ref, w5_ref, b5_ref, wl_ref, bl_ref, o_ref, z_ref):
    # p_ref: (1, P5, K5)  w5_ref: (K5, Z)  b5_ref: (1, Z)
    # wl_ref: (Z, Cn)     bl_ref: (1, Cn)  o_ref: (1, 1, Cn)  z_ref: (1, 1, Z)
    feat = jnp.dot(p_ref[0], w5_ref[...],
                   preferred_element_type=jnp.float32) + b5_ref[...]   # (P5, Z)
    # TODO(synk): voxel_size == 256 branch (bn_5 + leaky_relu + conv_5_2) would
    # be inserted here before pooling.
    z = jnp.mean(feat, axis=0, keepdims=True)          # global average pool
    a = jnp.where(z >= 0, z, 0.01 * z)                 # leaky_relu on pooled z
    o_ref[0] = jnp.dot(a, wl_ref[...],
                       preferred_element_type=jnp.float32) + bl_ref[...]
    z_ref[0] = z


def conv5_pool_head_pallas(x, w5, b5, w_lin, b_lin, mxu_dtype=jnp.float32):
    """x: [N, C, D, H, W]  w5: [Z, C, 4,4,4]  w_lin: [Cn, Z]."""
    N, C, D, H, W = x.shape
    Z = w5.shape[0]
    Cn = w_lin.shape[0]
    Do, Ho, Wo = D // 2, H // 2, W // 2
    P5, K5 = Do * Ho * Wo, C * 64

    pat = _im2col_s2k4(x)                             # [N, K5, P5]
    pat = jnp.swapaxes(pat, 1, 2).astype(mxu_dtype)   # [N, P5, K5] (free at P5=1)
    w5t = w5.reshape(Z, K5).T.astype(mxu_dtype)       # [K5, Z]
    b5r = b5.reshape(1, Z).astype(jnp.float32)
    wlt = w_lin.T.astype(jnp.float32)                 # [Z, Cn]
    blr = b_lin.reshape(1, Cn).astype(jnp.float32)

    logits, z = pl.pallas_call(
        _tail_kernel,
        out_shape=(jax.ShapeDtypeStruct((N, 1, Cn), jnp.float32),
                   jax.ShapeDtypeStruct((N, 1, Z), jnp.float32)),
        grid_spec=pltpu.PrefetchScalarGridSpec(
            num_scalar_prefetch=0,
            grid=(N,),
            in_specs=[
                pl.BlockSpec((1, P5, K5), lambda n: (n, 0, 0)),
                pl.BlockSpec((K5, Z), lambda n: (0, 0)),
                pl.BlockSpec((1, Z), lambda n: (0, 0)),
                pl.BlockSpec((Z, Cn), lambda n: (0, 0)),
                pl.BlockSpec((1, Cn), lambda n: (0, 0)),
            ],
            out_specs=(pl.BlockSpec((1, 1, Cn), lambda n: (n, 0, 0)),
                       pl.BlockSpec((1, 1, Z), lambda n: (n, 0, 0))),
        ),
        compiler_params=pltpu.CompilerParams(
            dimension_semantics=("parallel",)),
    )(pat, w5t, b5r, wlt, blr)
    return logits.reshape(N, Cn), z.reshape(N, Z)


# ---------------------------------------------------------------------------
# Full forward pass (voxel_size = 32 path; 5 stride-2 convs reduce 32 -> 1).
# ---------------------------------------------------------------------------
def classifier_forward(params, x, mxu_dtype=jnp.float32):
    out = x                                           # [N, 1, D, D, D] NCDHW
    for i in range(1, 5):
        out = conv_in_lrelu_pallas(out, params[f"conv{i}_w"],
                                   params[f"conv{i}_b"], mxu_dtype=mxu_dtype)
    # TODO(synk): voxel_size == 256 branch (bn_5 + leaky_relu + conv_5_2) not
    # implemented (would need P-tiled BlockSpecs to fit VMEM at 256^3).
    logits, z = conv5_pool_head_pallas(out, params["conv5_w"], params["conv5_b"],
                                       params["lin_w"], params["lin_b"],
                                       mxu_dtype=mxu_dtype)
    return logits, z


if __name__ == "__main__":
    ef_dim, z_dim, class_num, voxel_size = 4, 32, 8, 32
    N = 2

    key = jax.random.PRNGKey(0)
    keys = jax.random.split(key, 16)

    def nrm(k, shape, scale=0.1):
        return jax.random.normal(k, shape, dtype=jnp.float32) * scale

    chans = [1, ef_dim, ef_dim * 2, ef_dim * 4, ef_dim * 8, z_dim]
    params = {}
    for i in range(1, 6):
        params[f"conv{i}_w"] = nrm(keys[2 * i - 2],
                                   (chans[i], chans[i - 1], 4, 4, 4))
        params[f"conv{i}_b"] = nrm(keys[2 * i - 1], (chans[i],), 0.01)
    params["lin_w"] = nrm(keys[10], (class_num, z_dim))
    params["lin_b"] = nrm(keys[11], (class_num,), 0.01)

    x = jax.random.normal(
        keys[12], (N, 1, voxel_size, voxel_size, voxel_size), dtype=jnp.float32)

    fwd = jax.jit(classifier_forward)
    logits, z = fwd(params, x)
    jax.block_until_ready((logits, z))

    assert logits.shape == (N, class_num) and z.shape == (N, z_dim)
    assert logits.dtype == jnp.float32 and z.dtype == jnp.float32
    assert bool(jnp.all(jnp.isfinite(logits))) and bool(jnp.all(jnp.isfinite(z)))
    print("KERNEL_OK")
</pallas_src>

<mosaic_0001>
module attributes {stable_mosaic.version = 11 : i64} {
  func.func @_conv_in_lrelu_kernel(%arg0: i32, %arg1: memref<1x64x4096xf32, #tpu.memory_space<vmem>>, %arg2: memref<4x64xf32, #tpu.memory_space<vmem>>, %arg3: memref<4x1xf32, #tpu.memory_space<vmem>>, %arg4: memref<1x4x4096xf32, #tpu.memory_space<vmem>>) attributes {dimension_semantics = [#tpu.dimension_semantics<parallel>], iteration_bounds = array<i64: 2>, scalar_prefetch = 0 : i64, scratch_operands = 0 : i64, tpu.core_type = #tpu.core_type<tc>, window_params = [{transform_indices = @transform_0, window_bounds = array<i64: 1, 64, 4096>}, {pipeline_mode = #tpu.pipeline_mode<synchronous>, transform_indices = @transform_1, window_bounds = array<i64: 4, 64>}, {pipeline_mode = #tpu.pipeline_mode<synchronous>, transform_indices = @transform_2, window_bounds = array<i64: 4, 1>}, {transform_indices = @transform_3, window_bounds = array<i64: 1, 4, 4096>}]} {
    %c0 = arith.constant 0 : index
    %c0_0 = arith.constant 0 : index
    %0 = vector.load %arg2[%c0, %c0_0] : memref<4x64xf32, #tpu.memory_space<vmem>>, vector<4x64xf32>
    %c0_1 = arith.constant 0 : index
    %c0_2 = arith.constant 0 : index
    %c0_3 = arith.constant 0 : index
    %1 = vector.load %arg1[%c0_1, %c0_2, %c0_3] : memref<1x64x4096xf32, #tpu.memory_space<vmem>>, vector<1x64x4096xf32>
    %2 = vector.shape_cast %1 : vector<1x64x4096xf32> to vector<64x4096xf32>
    %cst = arith.constant dense<0.000000e+00> : vector<4x4096xf32>
    %3 = tpu.matmul %0, %2, %cst {dimension_numbers = #tpu.dot_dimension_numbers<[1], [0], [0], [1], [0, 0, 1, 1], [], []>} : vector<4x64xf32>, vector<64x4096xf32>, vector<4x4096xf32> -> vector<4x4096xf32>
    %c0_4 = arith.constant 0 : index
    %c0_5 = arith.constant 0 : index
    %4 = vector.load %arg3[%c0_4, %c0_5] : memref<4x1xf32, #tpu.memory_space<vmem>>, vector<4x1xf32>
    %5 = vector.broadcast %4 : vector<4x1xf32> to vector<4x4096xf32>
    %6 = arith.addf %3, %5 : vector<4x4096xf32>
    %cst_6 = arith.constant dense<0.000000e+00> : vector<4xf32>
    %7 = vector.multi_reduction <add>, %6, %cst_6 [1] : vector<4x4096xf32> to vector<4xf32>
    %8 = vector.shape_cast %7 : vector<4xf32> to vector<4x1xf32>
    %cst_7 = arith.constant 2.44140625E-4 : f32
    %9 = vector.broadcast %cst_7 : f32 to vector<4x1xf32>
    %10 = arith.mulf %8, %9 : vector<4x1xf32>
    %11 = arith.mulf %6, %6 : vector<4x4096xf32>
    %cst_8 = arith.constant dense<0.000000e+00> : vector<4xf32>
    %12 = vector.multi_reduction <add>, %11, %cst_8 [1] : vector<4x4096xf32> to vector<4xf32>
    %13 = vector.shape_cast %12 : vector<4xf32> to vector<4x1xf32>
    %cst_9 = arith.constant 2.44140625E-4 : f32
    %14 = vector.broadcast %cst_9 : f32 to vector<4x1xf32>
    %15 = arith.mulf %13, %14 : vector<4x1xf32>
    %16 = arith.mulf %10, %10 : vector<4x1xf32>
    %17 = arith.subf %15, %16 : vector<4x1xf32>
    %18 = vector.broadcast %10 : vector<4x1xf32> to vector<4x4096xf32>
    %19 = arith.subf %6, %18 : vector<4x4096xf32>
    %cst_10 = arith.constant 9.99999974E-6 : f32
    %20 = vector.broadcast %cst_10 : f32 to vector<4x1xf32>
    %21 = arith.addf %17, %20 : vector<4x1xf32>
    %22 = math.rsqrt %21 : vector<4x1xf32>
    %23 = vector.broadcast %22 : vector<4x1xf32> to vector<4x4096xf32>
    %24 = arith.mulf %19, %23 : vector<4x4096xf32>
    %cst_11 = arith.constant 0.000000e+00 : f32
    %25 = vector.broadcast %cst_11 : f32 to vector<4x4096xf32>
    %26 = arith.cmpf oge, %24, %25 : vector<4x4096xf32>
    %cst_12 = arith.constant 0.00999999977 : f32
    %27 = vector.broadcast %cst_12 : f32 to vector<4x4096xf32>
    %28 = arith.mulf %27, %24 : vector<4x4096xf32>
    %29 = arith.select %26, %24, %28 : vector<4x4096xi1>, vector<4x4096xf32>
    %c0_13 = arith.constant 0 : index
    %c0_14 = arith.constant 0 : index
    %c0_15 = arith.constant 0 : index
    %30 = vector.load %arg4[%c0_13, %c0_14, %c0_15] : memref<1x4x4096xf32, #tpu.memory_space<vmem>>, vector<1x4x4096xf32>
    %31 = vector.shape_cast %30 : vector<1x4x4096xf32> to vector<4x4096xf32>
    %32 = vector.shape_cast %29 : vector<4x4096xf32> to vector<1x4x4096xf32>
    tpu.vector_store %arg4[%c0_13, %c0_14, %c0_15], %32 {strides = array<i32>} : memref<1x4x4096xf32, #tpu.memory_space<vmem>>, vector<1x4x4096xf32>,
    return
  }
  func.func @transform_0(%arg0: i32) -> (i32, i32, i32) {
    %c0_i32 = arith.constant 0 : i32
    %c0_i32_0 = arith.constant 0 : i32
    %c0_i32_1 = arith.constant 0 : i32
    return %arg0, %c0_i32, %c0_i32_0 : i32, i32, i32
  }
  func.func @transform_1(%arg0: i32) -> (i32, i32) {
    %c0_i32 = arith.constant 0 : i32
    %c0_i32_0 = arith.constant 0 : i32
    %c0_i32_1 = arith.constant 0 : i32
    return %c0_i32, %c0_i32_0 : i32, i32
  }
  func.func @transform_2(%arg0: i32) -> (i32, i32) {
    %c0_i32 = arith.constant 0 : i32
    %c0_i32_0 = arith.constant 0 : i32
    %c0_i32_1 = arith.constant 0 : i32
    return %c0_i32, %c0_i32_0 : i32, i32
  }
  func.func @transform_3(%arg0: i32) -> (i32, i32, i32) {
    %c0_i32 = arith.constant 0 : i32
    %c0_i32_0 = arith.constant 0 : i32
    %c0_i32_1 = arith.constant 0 : i32
    return %arg0, %c0_i32, %c0_i32_0 : i32, i32, i32
  }
}

module attributes {stable_mosaic.version = 11 : i64} {
  func.func @_conv_in_lrelu_kernel(%arg0: i32, %arg1: memref<1x256x512xf32, #tpu.memory_space<vmem>>, %arg2: memref<8x256xf32, #tpu.memory_space<vmem>>, %arg3: memref<8x1xf32, #tpu.memory_space<vmem>>, %arg4: memref<1x8x512xf32, #tpu.memory_space<vmem>>) attributes {dimension_semantics = [#tpu.dimension_semantics<parallel>], iteration_bounds = array<i64: 2>, scalar_prefetch = 0 : i64, scratch_operands = 0 : i64, tpu.core_type = #tpu.core_type<tc>, window_params = [{transform_indices = @transform_0, window_bounds = array<i64: 1, 256, 512>}, {pipeline_mode = #tpu.pipeline_mode<synchronous>, transform_indices = @transform_1, window_bounds = array<i64: 8, 256>}, {pipeline_mode = #tpu.pipeline_mode<synchronous>, transform_indices = @transform_2, window_bounds = array<i64: 8, 1>}, {transform_indices = @transform_3, window_bounds = array<i64: 1, 8, 512>}]} {
    %c0 = arith.constant 0 : index
    %c0_0 = arith.constant 0 : index
    %0 = vector.load %arg2[%c0, %c0_0] : memref<8x256xf32, #tpu.memory_space<vmem>>, vector<8x256xf32>
    %c0_1 = arith.constant 0 : index
    %c0_2 = arith.constant 0 : index
    %c0_3 = arith.constant 0 : index
    %1 = vector.load %arg1[%c0_1, %c0_2, %c0_3] : memref<1x256x512xf32, #tpu.memory_space<vmem>>, vector<1x256x512xf32>
    %2 = vector.shape_cast %1 : vector<1x256x512xf32> to vector<256x512xf32>
    %cst = arith.constant dense<0.000000e+00> : vector<8x512xf32>
    %3 = tpu.matmul %0, %2, %cst {dimension_numbers = #tpu.dot_dimension_numbers<[1], [0], [0], [1], [0, 0, 1, 1], [], []>} : vector<8x256xf32>, vector<256x512xf32>, vector<8x512xf32> -> vector<8x512xf32>
    %c0_4 = arith.constant 0 : index
    %c0_5 = arith.constant 0 : index
    %4 = vector.load %arg3[%c0_4, %c0_5] : memref<8x1xf32, #tpu.memory_space<vmem>>, vector<8x1xf32>
    %5 = vector.broadcast %4 : vector<8x1xf32> to vector<8x512xf32>
    %6 = arith.addf %3, %5 : vector<8x512xf32>
    %cst_6 = arith.constant dense<0.000000e+00> : vector<8xf32>
    %7 = vector.multi_reduction <add>, %6, %cst_6 [1] : vector<8x512xf32> to vector<8xf32>
    %8 = vector.shape_cast %7 : vector<8xf32> to vector<8x1xf32>
    %cst_7 = arith.constant 0.001953125 : f32
    %9 = vector.broadcast %cst_7 : f32 to vector<8x1xf32>
    %10 = arith.mulf %8, %9 : vector<8x1xf32>
    %11 = arith.mulf %6, %6 : vector<8x512xf32>
    %cst_8 = arith.constant dense<0.000000e+00> : vector<8xf32>
    %12 = vector.multi_reduction <add>, %11, %cst_8 [1] : vector<8x512xf32> to vector<8xf32>
    %13 = vector.shape_cast %12 : vector<8xf32> to vector<8x1xf32>
    %cst_9 = arith.constant 0.001953125 : f32
    %14 = vector.broadcast %cst_9 : f32 to vector<8x1xf32>
    %15 = arith.mulf %13, %14 : vector<8x1xf32>
    %16 = arith.mulf %10, %10 : vector<8x1xf32>
    %17 = arith.subf %15, %16 : vector<8x1xf32>
    %18 = vector.broadcast %10 : vector<8x1xf32> to vector<8x512xf32>
    %19 = arith.subf %6, %18 : vector<8x512xf32>
    %cst_10 = arith.constant 9.99999974E-6 : f32
    %20 = vector.broadcast %cst_10 : f32 to vector<8x1xf32>
    %21 = arith.addf %17, %20 : vector<8x1xf32>
    %22 = math.rsqrt %21 : vector<8x1xf32>
    %23 = vector.broadcast %22 : vector<8x1xf32> to vector<8x512xf32>
    %24 = arith.mulf %19, %23 : vector<8x512xf32>
    %cst_11 = arith.constant 0.000000e+00 : f32
    %25 = vector.broadcast %cst_11 : f32 to vector<8x512xf32>
    %26 = arith.cmpf oge, %24, %25 : vector<8x512xf32>
    %cst_12 = arith.constant 0.00999999977 : f32
    %27 = vector.broadcast %cst_12 : f32 to vector<8x512xf32>
    %28 = arith.mulf %27, %24 : vector<8x512xf32>
    %29 = arith.select %26, %24, %28 : vector<8x512xi1>, vector<8x512xf32>
    %c0_13 = arith.constant 0 : index
    %c0_14 = arith.constant 0 : index
    %c0_15 = arith.constant 0 : index
    %30 = vector.load %arg4[%c0_13, %c0_14, %c0_15] : memref<1x8x512xf32, #tpu.memory_space<vmem>>, vector<1x8x512xf32>
    %31 = vector.shape_cast %30 : vector<1x8x512xf32> to vector<8x512xf32>
    %32 = vector.shape_cast %29 : vector<8x512xf32> to vector<1x8x512xf32>
    tpu.vector_store %arg4[%c0_13, %c0_14, %c0_15], %32 {strides = array<i32>} : memref<1x8x512xf32, #tpu.memory_space<vmem>>, vector<1x8x512xf32>,
    return
  }
  func.func @transform_0(%arg0: i32) -> (i32, i32, i32) {
    %c0_i32 = arith.constant 0 : i32
    %c0_i32_0 = arith.constant 0 : i32
    %c0_i32_1 = arith.constant 0 : i32
    return %arg0, %c0_i32, %c0_i32_0 : i32, i32, i32
  }
  func.func @transform_1(%arg0: i32) -> (i32, i32) {
    %c0_i32 = arith.constant 0 : i32
    %c0_i32_0 = arith.constant 0 : i32
    %c0_i32_1 = arith.constant 0 : i32
    return %c0_i32, %c0_i32_0 : i32, i32
  }
  func.func @transform_2(%arg0: i32) -> (i32, i32) {
    %c0_i32 = arith.constant 0 : i32
    %c0_i32_0 = arith.constant 0 : i32
    %c0_i32_1 = arith.constant 0 : i32
    return %c0_i32, %c0_i32_0 : i32, i32
  }
  func.func @transform_3(%arg0: i32) -> (i32, i32, i32) {
    %c0_i32 = arith.constant 0 : i32
    %c0_i32_0 = arith.constant 0 : i32
    %c0_i32_1 = arith.constant 0 : i32
    return %arg0, %c0_i32, %c0_i32_0 : i32, i32, i32
  }
}

module attributes {stable_mosaic.version = 11 : i64} {
  func.func @_conv_in_lrelu_kernel(%arg0: i32, %arg1: memref<1x512x64xf32, #tpu.memory_space<vmem>>, %arg2: memref<16x512xf32, #tpu.memory_space<vmem>>, %arg3: memref<16x1xf32, #tpu.memory_space<vmem>>, %arg4: memref<1x16x64xf32, #tpu.memory_space<vmem>>) attributes {dimension_semantics = [#tpu.dimension_semantics<parallel>], iteration_bounds = array<i64: 2>, scalar_prefetch = 0 : i64, scratch_operands = 0 : i64, tpu.core_type = #tpu.core_type<tc>, window_params = [{transform_indices = @transform_0, window_bounds = array<i64: 1, 512, 64>}, {pipeline_mode = #tpu.pipeline_mode<synchronous>, transform_indices = @transform_1, window_bounds = array<i64: 16, 512>}, {pipeline_mode = #tpu.pipeline_mode<synchronous>, transform_indices = @transform_2, window_bounds = array<i64: 16, 1>}, {transform_indices = @transform_3, window_bounds = array<i64: 1, 16, 64>}]} {
    %c0 = arith.constant 0 : index
    %c0_0 = arith.constant 0 : index
    %0 = vector.load %arg2[%c0, %c0_0] : memref<16x512xf32, #tpu.memory_space<vmem>>, vector<16x512xf32>
    %c0_1 = arith.constant 0 : index
    %c0_2 = arith.constant 0 : index
    %c0_3 = arith.constant 0 : index
    %1 = vector.load %arg1[%c0_1, %c0_2, %c0_3] : memref<1x512x64xf32, #tpu.memory_space<vmem>>, vector<1x512x64xf32>
    %2 = vector.shape_cast %1 : vector<1x512x64xf32> to vector<512x64xf32>
    %cst = arith.constant dense<0.000000e+00> : vector<16x64xf32>
    %3 = tpu.matmul %0, %2, %cst {dimension_numbers = #tpu.dot_dimension_numbers<[1], [0], [0], [1], [0, 0, 1, 1], [], []>} : vector<16x512xf32>, vector<512x64xf32>, vector<16x64xf32> -> vector<16x64xf32>
    %c0_4 = arith.constant 0 : index
    %c0_5 = arith.constant 0 : index
    %4 = vector.load %arg3[%c0_4, %c0_5] : memref<16x1xf32, #tpu.memory_space<vmem>>, vector<16x1xf32>
    %5 = vector.broadcast %4 : vector<16x1xf32> to vector<16x64xf32>
    %6 = arith.addf %3, %5 : vector<16x64xf32>
    %cst_6 = arith.constant dense<0.000000e+00> : vector<16xf32>
    %7 = vector.multi_reduction <add>, %6, %cst_6 [1] : vector<16x64xf32> to vector<16xf32>
    %8 = vector.shape_cast %7 : vector<16xf32> to vector<16x1xf32>
    %cst_7 = arith.constant 1.562500e-02 : f32
    %9 = vector.broadcast %cst_7 : f32 to vector<16x1xf32>
    %10 = arith.mulf %8, %9 : vector<16x1xf32>
    %11 = arith.mulf %6, %6 : vector<16x64xf32>
    %cst_8 = arith.constant dense<0.000000e+00> : vector<16xf32>
    %12 = vector.multi_reduction <add>, %11, %cst_8 [1] : vector<16x64xf32> to vector<16xf32>
    %13 = vector.shape_cast %12 : vector<16xf32> to vector<16x1xf32>
    %cst_9 = arith.constant 1.562500e-02 : f32
    %14 = vector.broadcast %cst_9 : f32 to vector<16x1xf32>
    %15 = arith.mulf %13, %14 : vector<16x1xf32>
    %16 = arith.mulf %10, %10 : vector<16x1xf32>
    %17 = arith.subf %15, %16 : vector<16x1xf32>
    %18 = vector.broadcast %10 : vector<16x1xf32> to vector<16x64xf32>
    %19 = arith.subf %6, %18 : vector<16x64xf32>
    %cst_10 = arith.constant 9.99999974E-6 : f32
    %20 = vector.broadcast %cst_10 : f32 to vector<16x1xf32>
    %21 = arith.addf %17, %20 : vector<16x1xf32>
    %22 = math.rsqrt %21 : vector<16x1xf32>
    %23 = vector.broadcast %22 : vector<16x1xf32> to vector<16x64xf32>
    %24 = arith.mulf %19, %23 : vector<16x64xf32>
    %cst_11 = arith.constant 0.000000e+00 : f32
    %25 = vector.broadcast %cst_11 : f32 to vector<16x64xf32>
    %26 = arith.cmpf oge, %24, %25 : vector<16x64xf32>
    %cst_12 = arith.constant 0.00999999977 : f32
    %27 = vector.broadcast %cst_12 : f32 to vector<16x64xf32>
    %28 = arith.mulf %27, %24 : vector<16x64xf32>
    %29 = arith.select %26, %24, %28 : vector<16x64xi1>, vector<16x64xf32>
    %c0_13 = arith.constant 0 : index
    %c0_14 = arith.constant 0 : index
    %c0_15 = arith.constant 0 : index
    %30 = vector.load %arg4[%c0_13, %c0_14, %c0_15] : memref<1x16x64xf32, #tpu.memory_space<vmem>>, vector<1x16x64xf32>
    %31 = vector.shape_cast %30 : vector<1x16x64xf32> to vector<16x64xf32>
    %32 = vector.shape_cast %29 : vector<16x64xf32> to vector<1x16x64xf32>
    tpu.vector_store %arg4[%c0_13, %c0_14, %c0_15], %32 {strides = array<i32>} : memref<1x16x64xf32, #tpu.memory_space<vmem>>, vector<1x16x64xf32>,
    return
  }
  func.func @transform_0(%arg0: i32) -> (i32, i32, i32) {
    %c0_i32 = arith.constant 0 : i32
    %c0_i32_0 = arith.constant 0 : i32
    %c0_i32_1 = arith.constant 0 : i32
    return %arg0, %c0_i32, %c0_i32_0 : i32, i32, i32
  }
  func.func @transform_1(%arg0: i32) -> (i32, i32) {
    %c0_i32 = arith.constant 0 : i32
    %c0_i32_0 = arith.constant 0 : i32
    %c0_i32_1 = arith.constant 0 : i32
    return %c0_i32, %c0_i32_0 : i32, i32
  }
  func.func @transform_2(%arg0: i32) -> (i32, i32) {
    %c0_i32 = arith.constant 0 : i32
    %c0_i32_0 = arith.constant 0 : i32
    %c0_i32_1 = arith.constant 0 : i32
    return %c0_i32, %c0_i32_0 : i32, i32
  }
  func.func @transform_3(%arg0: i32) -> (i32, i32, i32) {
    %c0_i32 = arith.constant 0 : i32
    %c0_i32_0 = arith.constant 0 : i32
    %c0_i32_1 = arith.constant 0 : i32
    return %arg0, %c0_i32, %c0_i32_0 : i32, i32, i32
  }
}

module attributes {stable_mosaic.version = 11 : i64} {
  func.func @_conv_in_lrelu_kernel(%arg0: i32, %arg1: memref<1x1024x8xf32, #tpu.memory_space<vmem>>, %arg2: memref<32x1024xf32, #tpu.memory_space<vmem>>, %arg3: memref<32x1xf32, #tpu.memory_space<vmem>>, %arg4: memref<1x32x8xf32, #tpu.memory_space<vmem>>) attributes {dimension_semantics = [#tpu.dimension_semantics<parallel>], iteration_bounds = array<i64: 2>, scalar_prefetch = 0 : i64, scratch_operands = 0 : i64, tpu.core_type = #tpu.core_type<tc>, window_params = [{transform_indices = @transform_0, window_bounds = array<i64: 1, 1024, 8>}, {pipeline_mode = #tpu.pipeline_mode<synchronous>, transform_indices = @transform_1, window_bounds = array<i64: 32, 1024>}, {pipeline_mode = #tpu.pipeline_mode<synchronous>, transform_indices = @transform_2, window_bounds = array<i64: 32, 1>}, {transform_indices = @transform_3, window_bounds = array<i64: 1, 32, 8>}]} {
    %c0 = arith.constant 0 : index
    %c0_0 = arith.constant 0 : index
    %0 = vector.load %arg2[%c0, %c0_0] : memref<32x1024xf32, #tpu.memory_space<vmem>>, vector<32x1024xf32>
    %c0_1 = arith.constant 0 : index
    %c0_2 = arith.constant 0 : index
    %c0_3 = arith.constant 0 : index
    %1 = vector.load %arg1[%c0_1, %c0_2, %c0_3] : memref<1x1024x8xf32, #tpu.memory_space<vmem>>, vector<1x1024x8xf32>
    %2 = vector.shape_cast %1 : vector<1x1024x8xf32> to vector<1024x8xf32>
    %cst = arith.constant dense<0.000000e+00> : vector<32x8xf32>
    %3 = tpu.matmul %0, %2, %cst {dimension_numbers = #tpu.dot_dimension_numbers<[1], [0], [0], [1], [0, 0, 1, 1], [], []>} : vector<32x1024xf32>, vector<1024x8xf32>, vector<32x8xf32> -> vector<32x8xf32>
    %c0_4 = arith.constant 0 : index
    %c0_5 = arith.constant 0 : index
    %4 = vector.load %arg3[%c0_4, %c0_5] : memref<32x1xf32, #tpu.memory_space<vmem>>, vector<32x1xf32>
    %5 = vector.broadcast %4 : vector<32x1xf32> to vector<32x8xf32>
    %6 = arith.addf %3, %5 : vector<32x8xf32>
    %cst_6 = arith.constant dense<0.000000e+00> : vector<32xf32>
    %7 = vector.multi_reduction <add>, %6, %cst_6 [1] : vector<32x8xf32> to vector<32xf32>
    %8 = vector.shape_cast %7 : vector<32xf32> to vector<32x1xf32>
    %cst_7 = arith.constant 1.250000e-01 : f32
    %9 = vector.broadcast %cst_7 : f32 to vector<32x1xf32>
    %10 = arith.mulf %8, %9 : vector<32x1xf32>
    %11 = arith.mulf %6, %6 : vector<32x8xf32>
    %cst_8 = arith.constant dense<0.000000e+00> : vector<32xf32>
    %12 = vector.multi_reduction <add>, %11, %cst_8 [1] : vector<32x8xf32> to vector<32xf32>
    %13 = vector.shape_cast %12 : vector<32xf32> to vector<32x1xf32>
    %cst_9 = arith.constant 1.250000e-01 : f32
    %14 = vector.broadcast %cst_9 : f32 to vector<32x1xf32>
    %15 = arith.mulf %13, %14 : vector<32x1xf32>
    %16 = arith.mulf %10, %10 : vector<32x1xf32>
    %17 = arith.subf %15, %16 : vector<32x1xf32>
    %18 = vector.broadcast %10 : vector<32x1xf32> to vector<32x8xf32>
    %19 = arith.subf %6, %18 : vector<32x8xf32>
    %cst_10 = arith.constant 9.99999974E-6 : f32
    %20 = vector.broadcast %cst_10 : f32 to vector<32x1xf32>
    %21 = arith.addf %17, %20 : vector<32x1xf32>
    %22 = math.rsqrt %21 : vector<32x1xf32>
    %23 = vector.broadcast %22 : vector<32x1xf32> to vector<32x8xf32>
    %24 = arith.mulf %19, %23 : vector<32x8xf32>
    %cst_11 = arith.constant 0.000000e+00 : f32
    %25 = vector.broadcast %cst_11 : f32 to vector<32x8xf32>
    %26 = arith.cmpf oge, %24, %25 : vector<32x8xf32>
    %cst_12 = arith.constant 0.00999999977 : f32
    %27 = vector.broadcast %cst_12 : f32 to vector<32x8xf32>
    %28 = arith.mulf %27, %24 : vector<32x8xf32>
    %29 = arith.select %26, %24, %28 : vector<32x8xi1>, vector<32x8xf32>
    %c0_13 = arith.constant 0 : index
    %c0_14 = arith.constant 0 : index
    %c0_15 = arith.constant 0 : index
    %30 = vector.load %arg4[%c0_13, %c0_14, %c0_15] : memref<1x32x8xf32, #tpu.memory_space<vmem>>, vector<1x32x8xf32>
    %31 = vector.shape_cast %30 : vector<1x32x8xf32> to vector<32x8xf32>
    %32 = vector.shape_cast %29 : vector<32x8xf32> to vector<1x32x8xf32>
    tpu.vector_store %arg4[%c0_13, %c0_14, %c0_15], %32 {strides = array<i32>} : memref<1x32x8xf32, #tpu.memory_space<vmem>>, vector<1x32x8xf32>,
    return
  }
  func.func @transform_0(%arg0: i32) -> (i32, i32, i32) {
    %c0_i32 = arith.constant 0 : i32
    %c0_i32_0 = arith.constant 0 : i32
    %c0_i32_1 = arith.constant 0 : i32
    return %arg0, %c0_i32, %c0_i32_0 : i32, i32, i32
  }
  func.func @transform_1(%arg0: i32) -> (i32, i32) {
    %c0_i32 = arith.constant 0 : i32
    %c0_i32_0 = arith.constant 0 : i32
    %c0_i32_1 = arith.constant 0 : i32
    return %c0_i32, %c0_i32_0 : i32, i32
  }
  func.func @transform_2(%arg0: i32) -> (i32, i32) {
    %c0_i32 = arith.constant 0 : i32
    %c0_i32_0 = arith.constant 0 : i32
    %c0_i32_1 = arith.constant 0 : i32
    return %c0_i32, %c0_i32_0 : i32, i32
  }
  func.func @transform_3(%arg0: i32) -> (i32, i32, i32) {
    %c0_i32 = arith.constant 0 : i32
    %c0_i32_0 = arith.constant 0 : i32
    %c0_i32_1 = arith.constant 0 : i32
    return %arg0, %c0_i32, %c0_i32_0 : i32, i32, i32
  }
}

module attributes {stable_mosaic.version = 11 : i64} {
  func.func @_tail_kernel(%arg0: i32, %arg1: memref<1x1x2048xf32, #tpu.memory_space<vmem>>, %arg2: memref<2048x32xf32, #tpu.memory_space<vmem>>, %arg3: memref<1x32xf32, #tpu.memory_space<vmem>>, %arg4: memref<32x8xf32, #tpu.memory_space<vmem>>, %arg5: memref<1x8xf32, #tpu.memory_space<vmem>>, %arg6: memref<1x1x8xf32, #tpu.memory_space<vmem>>, %arg7: memref<1x1x32xf32, #tpu.memory_space<vmem>>) attributes {dimension_semantics = [#tpu.dimension_semantics<parallel>], iteration_bounds = array<i64: 2>, scalar_prefetch = 0 : i64, scratch_operands = 0 : i64, tpu.core_type = #tpu.core_type<tc>, window_params = [{transform_indices = @transform_0, window_bounds = array<i64: 1, 1, 2048>}, {pipeline_mode = #tpu.pipeline_mode<synchronous>, transform_indices = @transform_1, window_bounds = array<i64: 2048, 32>}, {pipeline_mode = #tpu.pipeline_mode<synchronous>, transform_indices = @transform_2, window_bounds = array<i64: 1, 32>}, {pipeline_mode = #tpu.pipeline_mode<synchronous>, transform_indices = @transform_3, window_bounds = array<i64: 32, 8>}, {pipeline_mode = #tpu.pipeline_mode<synchronous>, transform_indices = @transform_4, window_bounds = array<i64: 1, 8>}, {transform_indices = @transform_5, window_bounds = array<i64: 1, 1, 8>}, {transform_indices = @transform_6, window_bounds = array<i64: 1, 1, 32>}]} {
    %c0 = arith.constant 0 : index
    %c0_0 = arith.constant 0 : index
    %c0_1 = arith.constant 0 : index
    %0 = vector.load %arg1[%c0, %c0_0, %c0_1] : memref<1x1x2048xf32, #tpu.memory_space<vmem>>, vector<1x1x2048xf32>
    %1 = vector.shape_cast %0 : vector<1x1x2048xf32> to vector<1x2048xf32>
    %c0_2 = arith.constant 0 : index
    %c0_3 = arith.constant 0 : index
    %2 = vector.load %arg2[%c0_2, %c0_3] : memref<2048x32xf32, #tpu.memory_space<vmem>>, vector<2048x32xf32>
    %cst = arith.constant dense<0.000000e+00> : vector<1x32xf32>
    %3 = tpu.matmul %1, %2, %cst {dimension_numbers = #tpu.dot_dimension_numbers<[1], [0], [0], [1], [0, 0, 1, 1], [], []>} : vector<1x2048xf32>, vector<2048x32xf32>, vector<1x32xf32> -> vector<1x32xf32>
    %c0_4 = arith.constant 0 : index
    %c0_5 = arith.constant 0 : index
    %4 = vector.load %arg3[%c0_4, %c0_5] : memref<1x32xf32, #tpu.memory_space<vmem>>, vector<1x32xf32>
    %5 = arith.addf %3, %4 : vector<1x32xf32>
    %cst_6 = arith.constant dense<0.000000e+00> : vector<32xf32>
    %6 = vector.multi_reduction <add>, %5, %cst_6 [0] : vector<1x32xf32> to vector<32xf32>
    %7 = vector.shape_cast %6 : vector<32xf32> to vector<1x32xf32>
    %cst_7 = arith.constant 1.000000e+00 : f32
    %8 = vector.broadcast %cst_7 : f32 to vector<1x32xf32>
    %9 = arith.divf %7, %8 : vector<1x32xf32>
    %cst_8 = arith.constant 0.000000e+00 : f32
    %10 = vector.broadcast %cst_8 : f32 to vector<1x32xf32>
    %11 = arith.cmpf oge, %9, %10 : vector<1x32xf32>
    %cst_9 = arith.constant 0.00999999977 : f32
    %12 = vector.broadcast %cst_9 : f32 to vector<1x32xf32>
    %13 = arith.mulf %12, %9 : vector<1x32xf32>
    %14 = arith.select %11, %9, %13 : vector<1x32xi1>, vector<1x32xf32>
    %c0_10 = arith.constant 0 : index
    %c0_11 = arith.constant 0 : index
    %15 = vector.load %arg4[%c0_10, %c0_11] : memref<32x8xf32, #tpu.memory_space<vmem>>, vector<32x8xf32>
    %cst_12 = arith.constant dense<0.000000e+00> : vector<1x8xf32>
    %16 = tpu.matmul %14, %15, %cst_12 {dimension_numbers = #tpu.dot_dimension_numbers<[1], [0], [0], [1], [0, 0, 1, 1], [], []>} : vector<1x32xf32>, vector<32x8xf32>, vector<1x8xf32> -> vector<1x8xf32>
    %c0_13 = arith.constant 0 : index
    %c0_14 = arith.constant 0 : index
    %17 = vector.load %arg5[%c0_13, %c0_14] : memref<1x8xf32, #tpu.memory_space<vmem>>, vector<1x8xf32>
    %18 = arith.addf %16, %17 : vector<1x8xf32>
    %c0_15 = arith.constant 0 : index
    %c0_16 = arith.constant 0 : index
    %c0_17 = arith.constant 0 : index
    %19 = vector.load %arg6[%c0_15, %c0_16, %c0_17] : memref<1x1x8xf32, #tpu.memory_space<vmem>>, vector<1x1x8xf32>
    %20 = vector.shape_cast %19 : vector<1x1x8xf32> to vector<1x8xf32>
    %21 = vector.shape_cast %18 : vector<1x8xf32> to vector<1x1x8xf32>
    tpu.vector_store %arg6[%c0_15, %c0_16, %c0_17], %21 {strides = array<i32>} : memref<1x1x8xf32, #tpu.memory_space<vmem>>, vector<1x1x8xf32>,
    %c0_18 = arith.constant 0 : index
    %c0_19 = arith.constant 0 : index
    %c0_20 = arith.constant 0 : index
    %22 = vector.load %arg7[%c0_18, %c0_19, %c0_20] : memref<1x1x32xf32, #tpu.memory_space<vmem>>, vector<1x1x32xf32>
    %23 = vector.shape_cast %22 : vector<1x1x32xf32> to vector<1x32xf32>
    %24 = vector.shape_cast %9 : vector<1x32xf32> to vector<1x1x32xf32>
    tpu.vector_store %arg7[%c0_18, %c0_19, %c0_20], %24 {strides = array<i32>} : memref<1x1x32xf32, #tpu.memory_space<vmem>>, vector<1x1x32xf32>,
    return
  }
  func.func @transform_0(%arg0: i32) -> (i32, i32, i32) {
    %c0_i32 = arith.constant 0 : i32
    %c0_i32_0 = arith.constant 0 : i32
    %c0_i32_1 = arith.constant 0 : i32
    return %arg0, %c0_i32, %c0_i32_0 : i32, i32, i32
  }
  func.func @transform_1(%arg0: i32) -> (i32, i32) {
    %c0_i32 = arith.constant 0 : i32
    %c0_i32_0 = arith.constant 0 : i32
    %c0_i32_1 = arith.constant 0 : i32
    return %c0_i32, %c0_i32_0 : i32, i32
  }
  func.func @transform_2(%arg0: i32) -> (i32, i32) {
    %c0_i32 = arith.constant 0 : i32
    %c0_i32_0 = arith.constant 0 : i32
    %c0_i32_1 = arith.constant 0 : i32
    return %c0_i32, %c0_i32_0 : i32, i32
  }
  func.func @transform_3(%arg0: i32) -> (i32, i32) {
    %c0_i32 = arith.constant 0 : i32
    %c0_i32_0 = arith.constant 0 : i32
    %c0_i32_1 = arith.constant 0 : i32
    return %c0_i32, %c0_i32_0 : i32, i32
  }
  func.func @transform_4(%arg0: i32) -> (i32, i32) {
    %c0_i32 = arith.constant 0 : i32
    %c0_i32_0 = arith.constant 0 : i32
    %c0_i32_1 = arith.constant 0 : i32
    return %c0_i32, %c0_i32_0 : i32, i32
  }
  func.func @transform_5(%arg0: i32) -> (i32, i32, i32) {
    %c0_i32 = arith.constant 0 : i32
    %c0_i32_0 = arith.constant 0 : i32
    %c0_i32_1 = arith.constant 0 : i32
    return %arg0, %c0_i32, %c0_i32_0 : i32, i32, i32
  }
  func.func @transform_6(%arg0: i32) -> (i32, i32, i32) {
    %c0_i32 = arith.constant 0 : i32
    %c0_i32_0 = arith.constant 0 : i32
    %c0_i32_1 = arith.constant 0 : i32
    return %arg0, %c0_i32, %c0_i32_0 : i32, i32, i32
  }
}

</mosaic_0001>

<llo_original>
// kernel: classifier_forward.5
$region0: #{classifier_forward.5}
  #allocation0 [shape = 'u32[]', space=smem, size = 0x4, offset = 0x4, fixed_abs, tag = 'smem constant byte address 0x4 - core index']
  #allocation1 [shape = 'u32[144,128]{1,0:T(1,128)}', space=vmem, size = 0x12000, scoped, tag = 'internal scratch']
  %s0 = inlined_call_operand.vmem [shape: f32[2,64,4096], index: 0, kind: input, shape index: {}]
  %s1 = inlined_call_operand.vmem [shape: f32[4,64], index: 1, kind: input, shape index: {}]
  %s2 = inlined_call_operand.vmem [shape: f32[4,1], index: 2, kind: input, shape index: {}]
  %s3 = inlined_call_operand.vmem [shape: f32[2,4,4096], index: 3, kind: output, shape index: {}]
  %s4 = sld [smem:[#allocation0]]
  $region45: #{classifier_forward.5} parent=0
    _
  %s6 = ssub.s32 1, %s4
  %s7 = scalar_select 0, %s6, %s4
  loop: start=0, step=1, limit=4
  $region2: #{classifier_forward.5} parent=0 // loop_pre_header
    _
  $region3: #{classifier_forward.5} parent=0 // loop_header
    %s9 = sphi 0, %s13
    %p10 = scmp.ge.s32.totalorder %s9, 4
    %s19 = sphi 0, %s21
    %s22 = sphi 0, %s19
    %s23 = sphi 0, %s22
    %s39 = sphi 0, %s23
    %s43 = sphi 0, %s43
    %s45 = sphi 0, %s43
    %s46 = sphi 0, %s45
    %s60 = sphi 0, %s46
    %s64 = sphi 0, %s64
    %s66 = sphi 0, %s64
    %s67 = sphi 0, %s66
    %s81 = sphi 0, %s67
    %s87 = sphi 0, %s89
    %s90 = sphi 0, %s87
    %s91 = sphi 0, %s90
    %s107 = sphi 0, %s91
  $region4: #{classifier_forward.5} parent=0 // loop_header_branch
    %12 = sbr.rel (%p10) target = $region8
  $region5: #{classifier_forward.5} parent=0 // loop_body
    %s14 = ssub.s32 %s9, 1
    %s15 = ssub.s32 %s9, 2
    %s16 = sadd.s32 %s9, 1
    %s17 = ssub.s32 %s9, %s16
    %p18 = scmp.eq.s32.totalorder %s17, 0
    %s20 = sadd.s32 %s19, 1
    %s21 = scalar_select %p18, %s19, %s20
    %p24 = pneg %p18
    %p25 = scmp.eq.s32.totalorder %s9, 1
    %p26 = por %p24, %p25
    %p27 = scmp.ne.s32.totalorder %s19, %s22
    %p28 = scmp.eq.s32.totalorder %s9, 0
    %p29 = por %p27, %p28
    %p30 = scmp.ne.s32.totalorder %s19, %s22
    %p31 = scmp.eq.s32.totalorder %s14, 1
    %p32 = por %p30, %p31
    %p33 = scmp.ne.s32.totalorder %s22, %s23
    %p34 = scmp.eq.s32.totalorder %s14, 0
    %p35 = por %p33, %p34
    %p36 = scmp.ne.s32.totalorder %s22, %s23
    %p37 = scmp.eq.s32.totalorder %s15, 1
    %p38 = por %p36, %p37
    %p40 = scmp.ne.s32.totalorder %s23, %s39
    %p41 = scmp.eq.s32.totalorder %s15, 0
    %p42 = por %p40, %p41
    %s44 = sadd.s32 %s43, 1
    %p47 = scmp.eq.s32.totalorder %s9, 1
    %p48 = scmp.ne.s32.totalorder %s43, %s45
    %p49 = scmp.eq.s32.totalorder %s9, 0
    %p50 = por %p48, %p49
    %p51 = scmp.ne.s32.totalorder %s43, %s45
    %p52 = scmp.eq.s32.totalorder %s14, 1
    %p53 = por %p51, %p52
    %p54 = scmp.ne.s32.totalorder %s45, %s46
    %p55 = scmp.eq.s32.totalorder %s14, 0
    %p56 = por %p54, %p55
    %p57 = scmp.ne.s32.totalorder %s45, %s46
    %p58 = scmp.eq.s32.totalorder %s15, 1
    %p59 = por %p57, %p58
    %p61 = scmp.ne.s32.totalorder %s46, %s60
    %p62 = scmp.eq.s32.totalorder %s15, 0
    %p63 = por %p61, %p62
    %s65 = sadd.s32 %s64, 1
    %p68 = scmp.eq.s32.totalorder %s9, 1
    %p69 = scmp.ne.s32.totalorder %s64, %s66
    %p70 = scmp.eq.s32.totalorder %s9, 0
    %p71 = por %p69, %p70
    %p72 = scmp.ne.s32.totalorder %s64, %s66
    %p73 = scmp.eq.s32.totalorder %s14, 1
    %p74 = por %p72, %p73
    %p75 = scmp.ne.s32.totalorder %s66, %s67
    %p76 = scmp.eq.s32.totalorder %s14, 0
    %p77 = por %p75, %p76
    %p78 = scmp.ne.s32.totalorder %s66, %s67
    %p79 = scmp.eq.s32.totalorder %s15, 1
    %p80 = por %p78, %p79
    %p82 = scmp.ne.s32.totalorder %s67, %s81
    %p83 = scmp.eq.s32.totalorder %s15, 0
    %p84 = por %p82, %p83
    %s85 = ssub.s32 %s9, %s16
    %p86 = scmp.eq.s32.totalorder %s85, 0
    %s88 = sadd.s32 %s87, 1
    %s89 = scalar_select %p86, %s87, %s88
    %p92 = pneg %p86
    %p93 = scmp.eq.s32.totalorder %s9, 1
    %p94 = por %p92, %p93
    %p95 = scmp.ne.s32.totalorder %s87, %s90
    %p96 = scmp.eq.s32.totalorder %s9, 0
    %p97 = por %p95, %p96
    %p98 = scmp.ne.s32.totalorder %s87, %s90
    %p99 = scmp.eq.s32.totalorder %s14, 1
    %p100 = por %p98, %p99
    %p101 = scmp.ne.s32.totalorder %s90, %s91
    %p102 = scmp.eq.s32.totalorder %s14, 0
    %p103 = por %p101, %p102
    %p104 = scmp.ne.s32.totalorder %s90, %s91
    %p105 = scmp.eq.s32.totalorder %s15, 1
    %p106 = por %p104, %p105
    %p108 = scmp.ne.s32.totalorder %s91, %s107
    %p109 = scmp.eq.s32.totalorder %s15, 0
    %p110 = por %p108, %p109
    %p111 = scmp.le.s32.totalorder 1, %s9
    %p112 = scmp.lt.s32.totalorder %s9, 3
    %p113 = pnand %p111, %p112
    %p114 = pneg %p113
    // Predicated region
    $region9: #{classifier_forward.5} parent=5 // pred_check
      _
    $region10: #{classifier_forward.5} parent=5 // pred_check_branch
      %116 = sbr.rel (%p113) target = $region12
    $region11: #{classifier_forward.5} parent=5 // pred_region
      %s117 = ssub.s32 %s9, 1
      // Predicated region
      $region13: #{classifier_forward.5} parent=11 // pred_check
        %p118 = pneg %p56
      $region14: #{classifier_forward.5} parent=11 // pred_check_branch
        %120 = sbr.rel (%p118) target = $region16
      $region15: #{classifier_forward.5} parent=11 // pred_region
        _
      $region16: #{classifier_forward.5} parent=11 // pred_fallthru
        _
      // Predicated region
      $region17: #{classifier_forward.5} parent=11 // pred_check
        %p121 = pneg %p77
      $region18: #{classifier_forward.5} parent=11 // pred_check_branch
        %123 = sbr.rel (%p121) target = $region20
      $region19: #{classifier_forward.5} parent=11 // pred_region
        _
      $region20: #{classifier_forward.5} parent=11 // pred_fallthru
        _
    $region12: #{classifier_forward.5} parent=5 // pred_fallthru
      _
    %p124 = scmp.lt.s32.totalorder %s9, 2
    // Predicated region
    $region21: #{classifier_forward.5} parent=5 // pred_check
      %p125 = pneg %p124
    $region22: #{classifier_forward.5} parent=5 // pred_check_branch
      %127 = sbr.rel (%p125) target = $region24
    $region23: #{classifier_forward.5} parent=5 // pred_region
      // Predicated region
      $region25: #{classifier_forward.5} parent=23 // pred_check
        %p128 = pneg %p29
      $region26: #{classifier_forward.5} parent=23 // pred_check_branch
        %130 = sbr.rel (%p128) target = $region28
      $region27: #{classifier_forward.5} parent=23 // pred_region
        %p131 = scmp.lt.s32.totalorder %s9, 1
        %s132 = scalar_select %p131, %s9, 1
        %s133 = smul.addr %s132, 256
        %s134 = smul.addr %s133, 8
        %s135 = scalar_lea.vmem %s0, %s134
      $region28: #{classifier_forward.5} parent=23 // pred_fallthru
        _
    $region24: #{classifier_forward.5} parent=5 // pred_fallthru
      _
    %p136 = scmp.le.s32.totalorder 1, %s9
    %p137 = scmp.lt.s32.totalorder %s9, 3
    %p138 = pnand %p136, %p137
    %p139 = pneg %p138
    // Predicated region
    $region29: #{classifier_forward.5} parent=5 // pred_check
      _
    $region30: #{classifier_forward.5} parent=5 // pred_check_branch
      %141 = sbr.rel (%p138) target = $region32
    $region31: #{classifier_forward.5} parent=5 // pred_region
      %s142 = ssub.s32 %s9, 1
      %p143 = scmp.lt.s32.totalorder %s14, 1
      %s144 = scalar_select %p143, %s14, 1
      %s145 = smul.addr %s144, 256
      %s146 = smul.addr %s145, 8
      %s147 = scalar_lea.vmem %s0, %s146
      %p148 = pneg %p35
      %p149 = pneg %p32
      %p150 = pneg %p56
      %p151 = pneg %p53
      %p152 = pneg %p77
      %p153 = pneg %p74
      %p154 = pneg %p103
      %p155 = pneg %p100
      %p156 = scmp.lt.s32.totalorder %s14, 1
      %s157 = scalar_select %p156, %s14, 1
      %s158 = smul.addr %s157, 32
      %s159 = smul.addr %s158, 4
      %s160 = scalar_lea.vmem %s3, %s159
      %p161 = scmp.lt.s32.totalorder %s14, 1
      %s162 = scalar_select %p161, %s14, 1
      %s163 = smul.addr %s162, 256
      %s164 = smul.addr %s163, 8
      %s165 = scalar_lea.vmem %s0, %s164
      %p166 = scmp.lt.s32.totalorder %s14, 1
      %s167 = scalar_select %p166, %s14, 1
      %s168 = smul.addr %s167, 32
      %s169 = smul.addr %s168, 4
      %s170 = scalar_lea.vmem %s3, %s169
      %v171 = vld [vmem:[%s1] sm:$0xf]
      %v172 = vld [vmem:[%s165] sm:$0xff]
      %v173 = vld [vmem:[%s165 + $0x8] sm:$0xff]
      %v174 = vld [vmem:[%s165 + $0x10] sm:$0xff]
      %v175 = vld [vmem:[%s165 + $0x18] sm:$0xff]
      %v176 = vld [vmem:[%s165 + $0x20] sm:$0xff]
      %v177 = vld [vmem:[%s165 + $0x28] sm:$0xff]
      %v178 = vld [vmem:[%s165 + $0x30] sm:$0xff]
      %v179 = vld [vmem:[%s165 + $0x38] sm:$0xff]
      %v180 = vld [vmem:[%s165 + $0x40] sm:$0xff]
      %v181 = vld [vmem:[%s165 + $0x48] sm:$0xff]
      %v182 = vld [vmem:[%s165 + $0x50] sm:$0xff]
      %v183 = vld [vmem:[%s165 + $0x58] sm:$0xff]
      %v184 = vld [vmem:[%s165 + $0x60] sm:$0xff]
      %v185 = vld [vmem:[%s165 + $0x68] sm:$0xff]
      %v186 = vld [vmem:[%s165 + $0x70] sm:$0xff]
      %v187 = vld [vmem:[%s165 + $0x78] sm:$0xff]
      %v188 = vld [vmem:[%s165 + $0x80] sm:$0xff]
      %v189 = vld [vmem:[%s165 + $0x88] sm:$0xff]
      %v190 = vld [vmem:[%s165 + $0x90] sm:$0xff]
      %v191 = vld [vmem:[%s165 + $0x98] sm:$0xff]
      %v192 = vld [vmem:[%s165 + $0xa0] sm:$0xff]
      %v193 = vld [vmem:[%s165 + $0xa8] sm:$0xff]
      %v194 = vld [vmem:[%s165 + $0xb0] sm:$0xff]
      %v195 = vld [vmem:[%s165 + $0xb8] sm:$0xff]
      %v196 = vld [vmem:[%s165 + $0xc0] sm:$0xff]
      %v197 = vld [vmem:[%s165 + $0xc8] sm:$0xff]
      %v198 = vld [vmem:[%s165 + $0xd0] sm:$0xff]
      %v199 = vld [vmem:[%s165 + $0xd8] sm:$0xff]
      %v200 = vld [vmem:[%s165 + $0xe0] sm:$0xff]
      %v201 = vld [vmem:[%s165 + $0xe8] sm:$0xff]
      %v202 = vld [vmem:[%s165 + $0xf0] sm:$0xff]
      %v203 = vld [vmem:[%s165 + $0xf8] sm:$0xff]
      %v204 = vld [vmem:[%s165 + $0x100] sm:$0xff]
      %v205 = vld [vmem:[%s165 + $0x108] sm:$0xff]
      %v206 = vld [vmem:[%s165 + $0x110] sm:$0xff]
      %v207 = vld [vmem:[%s165 + $0x118] sm:$0xff]
      %v208 = vld [vmem:[%s165 + $0x120] sm:$0xff]
      %v209 = vld [vmem:[%s165 + $0x128] sm:$0xff]
      %v210 = vld [vmem:[%s165 + $0x130] sm:$0xff]
      %v211 = vld [vmem:[%s165 + $0x138] sm:$0xff]
      %v212 = vld [vmem:[%s165 + $0x140] sm:$0xff]
      %v213 = vld [vmem:[%s165 + $0x148] sm:$0xff]
      %v214 = vld [vmem:[%s165 + $0x150] sm:$0xff]
      %v215 = vld [vmem:[%s165 + $0x158] sm:$0xff]
      %v216 = vld [vmem:[%s165 + $0x160] sm:$0xff]
      %v217 = vld [vmem:[%s165 + $0x168] sm:$0xff]
      %v218 = vld [vmem:[%s165 + $0x170] sm:$0xff]
      %v219 = vld [vmem:[%s165 + $0x178] sm:$0xff]
      %v220 = vld [vmem:[%s165 + $0x180] sm:$0xff]
      %v221 = vld [vmem:[%s165 + $0x188] sm:$0xff]
      %v222 = vld [vmem:[%s165 + $0x190] sm:$0xff]
      %v223 = vld [vmem:[%s165 + $0x198] sm:$0xff]
      %v224 = vld [vmem:[%s165 + $0x1a0] sm:$0xff]
      %v225 = vld [vmem:[%s165 + $0x1a8] sm:$0xff]
      %v226 = vld [vmem:[%s165 + $0x1b0] sm:$0xff]
      %v227 = vld [vmem:[%s165 + $0x1b8] sm:$0xff]
      %v228 = vld [vmem:[%s165 + $0x1c0] sm:$0xff]
      %v229 = vld [vmem:[%s165 + $0x1c8] sm:$0xff]
      %v230 = vld [vmem:[%s165 + $0x1d0] sm:$0xff]
      %v231 = vld [vmem:[%s165 + $0x1d8] sm:$0xff]
      %v232 = vld [vmem:[%s165 + $0x1e0] sm:$0xff]
      %v233 = vld [vmem:[%s165 + $0x1e8] sm:$0xff]
      %v234 = vld [vmem:[%s165 + $0x1f0] sm:$0xff]
      %v235 = vld [vmem:[%s165 + $0x1f8] sm:$0xff]
      %v236 = vld [vmem:[%s165 + $0x200] sm:$0xff]
      %v237 = vld [vmem:[%s165 + $0x208] sm:$0xff]
      %v238 = vld [vmem:[%s165 + $0x210] sm:$0xff]
      %v239 = vld [vmem:[%s165 + $0x218] sm:$0xff]
      %v240 = vld [vmem:[%s165 + $0x220] sm:$0xff]
      %v241 = vld [vmem:[%s165 + $0x228] sm:$0xff]
      %v242 = vld [vmem:[%s165 + $0x230] sm:$0xff]
      %v243 = vld [vmem:[%s165 + $0x238] sm:$0xff]
      %v244 = vld [vmem:[%s165 + $0x240] sm:$0xff]
      %v245 = vld [vmem:[%s165 + $0x248] sm:$0xff]
      %v246 = vld [vmem:[%s165 + $0x250] sm:$0xff]
      %v247 = vld [vmem:[%s165 + $0x258] sm:$0xff]
      %v248 = vld [vmem:[%s165 + $0x260] sm:$0xff]
      %v249 = vld [vmem:[%s165 + $0x268] sm:$0xff]
      %v250 = vld [vmem:[%s165 + $0x270] sm:$0xff]
      %v251 = vld [vmem:[%s165 + $0x278] sm:$0xff]
      %v252 = vld [vmem:[%s165 + $0x280] sm:$0xff]
      %v253 = vld [vmem:[%s165 + $0x288] sm:$0xff]
      %v254 = vld [vmem:[%s165 + $0x290] sm:$0xff]
      %v255 = vld [vmem:[%s165 + $0x298] sm:$0xff]
      %v256 = vld [vmem:[%s165 + $0x2a0] sm:$0xff]
      %v257 = vld [vmem:[%s165 + $0x2a8] sm:$0xff]
      %v258 = vld [vmem:[%s165 + $0x2b0] sm:$0xff]
      %v259 = vld [vmem:[%s165 + $0x2b8] sm:$0xff]
      %v260 = vld [vmem:[%s165 + $0x2c0] sm:$0xff]
      %v261 = vld [vmem:[%s165 + $0x2c8] sm:$0xff]
      %v262 = vld [vmem:[%s165 + $0x2d0] sm:$0xff]
      %v263 = vld [vmem:[%s165 + $0x2d8] sm:$0xff]
      %v264 = vld [vmem:[%s165 + $0x2e0] sm:$0xff]
      %v265 = vld [vmem:[%s165 + $0x2e8] sm:$0xff]
      %v266 = vld [vmem:[%s165 + $0x2f0] sm:$0xff]
      %v267 = vld [vmem:[%s165 + $0x2f8] sm:$0xff]
      %v268 = vld [vmem:[%s165 + $0x300] sm:$0xff]
      %v269 = vld [vmem:[%s165 + $0x308] sm:$0xff]
      %v270 = vld [vmem:[%s165 + $0x310] sm:$0xff]
      %v271 = vld [vmem:[%s165 + $0x318] sm:$0xff]
      %v272 = vld [vmem:[%s165 + $0x320] sm:$0xff]
      %v273 = vld [vmem:[%s165 + $0x328] sm:$0xff]
      %v274 = vld [vmem:[%s165 + $0x330] sm:$0xff]
      %v275 = vld [vmem:[%s165 + $0x338] sm:$0xff]
      %v276 = vld [vmem:[%s165 + $0x340] sm:$0xff]
      %v277 = vld [vmem:[%s165 + $0x348] sm:$0xff]
      %v278 = vld [vmem:[%s165 + $0x350] sm:$0xff]
      %v279 = vld [vmem:[%s165 + $0x358] sm:$0xff]
      %v280 = vld [vmem:[%s165 + $0x360] sm:$0xff]
      %v281 = vld [vmem:[%s165 + $0x368] sm:$0xff]
      %v282 = vld [vmem:[%s165 + $0x370] sm:$0xff]
      %v283 = vld [vmem:[%s165 + $0x378] sm:$0xff]
      %v284 = vld [vmem:[%s165 + $0x380] sm:$0xff]
      %v285 = vld [vmem:[%s165 + $0x388] sm:$0xff]
      %v286 = vld [vmem:[%s165 + $0x390] sm:$0xff]
      %v287 = vld [vmem:[%s165 + $0x398] sm:$0xff]
      %v288 = vld [vmem:[%s165 + $0x3a0] sm:$0xff]
      %v289 = vld [vmem:[%s165 + $0x3a8] sm:$0xff]
      %v290 = vld [vmem:[%s165 + $0x3b0] sm:$0xff]
      %v291 = vld [vmem:[%s165 + $0x3b8] sm:$0xff]
      %v292 = vld [vmem:[%s165 + $0x3c0] sm:$0xff]
      %v293 = vld [vmem:[%s165 + $0x3c8] sm:$0xff]
      %v294 = vld [vmem:[%s165 + $0x3d0] sm:$0xff]
      %v295 = vld [vmem:[%s165 + $0x3d8] sm:$0xff]
      %v296 = vld [vmem:[%s165 + $0x3e0] sm:$0xff]
      %v297 = vld [vmem:[%s165 + $0x3e8] sm:$0xff]
      %v298 = vld [vmem:[%s165 + $0x3f0] sm:$0xff]
      %v299 = vld [vmem:[%s165 + $0x3f8] sm:$0xff]
      %v300 = vld [vmem:[%s165 + $0x400] sm:$0xff]
      %v301 = vld [vmem:[%s165 + $0x408] sm:$0xff]
      %v302 = vld [vmem:[%s165 + $0x410] sm:$0xff]
      %v303 = vld [vmem:[%s165 + $0x418] sm:$0xff]
      %v304 = vld [vmem:[%s165 + $0x420] sm:$0xff]
      %v305 = vld [vmem:[%s165 + $0x428] sm:$0xff]
      %v306 = vld [vmem:[%s165 + $0x430] sm:$0xff]
      %v307 = vld [vmem:[%s165 + $0x438] sm:$0xff]
      %v308 = vld [vmem:[%s165 + $0x440] sm:$0xff]
      %v309 = vld [vmem:[%s165 + $0x448] sm:$0xff]
      %v310 = vld [vmem:[%s165 + $0x450] sm:$0xff]
      %v311 = vld [vmem:[%s165 + $0x458] sm:$0xff]
      %v312 = vld [vmem:[%s165 + $0x460] sm:$0xff]
      %v313 = vld [vmem:[%s165 + $0x468] sm:$0xff]
      %v314 = vld [vmem:[%s165 + $0x470] sm:$0xff]
      %v315 = vld [vmem:[%s165 + $0x478] sm:$0xff]
      %v316 = vld [vmem:[%s165 + $0x480] sm:$0xff]
      %v317 = vld [vmem:[%s165 + $0x488] sm:$0xff]
      %v318 = vld [vmem:[%s165 + $0x490] sm:$0xff]
      %v319 = vld [vmem:[%s165 + $0x498] sm:$0xff]
      %v320 = vld [vmem:[%s165 + $0x4a0] sm:$0xff]
      %v321 = vld [vmem:[%s165 + $0x4a8] sm:$0xff]
      %v322 = vld [vmem:[%s165 + $0x4b0] sm:$0xff]
      %v323 = vld [vmem:[%s165 + $0x4b8] sm:$0xff]
      %v324 = vld [vmem:[%s165 + $0x4c0] sm:$0xff]
      %v325 = vld [vmem:[%s165 + $0x4c8] sm:$0xff]
      %v326 = vld [vmem:[%s165 + $0x4d0] sm:$0xff]
      %v327 = vld [vmem:[%s165 + $0x4d8] sm:$0xff]
      %v328 = vld [vmem:[%s165 + $0x4e0] sm:$0xff]
      %v329 = vld [vmem:[%s165 + $0x4e8] sm:$0xff]
      %v330 = vld [vmem:[%s165 + $0x4f0] sm:$0xff]
      %v331 = vld [vmem:[%s165 + $0x4f8] sm:$0xff]
      %v332 = vld [vmem:[%s165 + $0x500] sm:$0xff]
      %v333 = vld [vmem:[%s165 + $0x508] sm:$0xff]
      %v334 = vld [vmem:[%s165 + $0x510] sm:$0xff]
      %v335 = vld [vmem:[%s165 + $0x518] sm:$0xff]
      %v336 = vld [vmem:[%s165 + $0x520] sm:$0xff]
      %v337 = vld [vmem:[%s165 + $0x528] sm:$0xff]
      %v338 = vld [vmem:[%s165 + $0x530] sm:$0xff]
      %v339 = vld [vmem:[%s165 + $0x538] sm:$0xff]
      %v340 = vld [vmem:[%s165 + $0x540] sm:$0xff]
      %v341 = vld [vmem:[%s165 + $0x548] sm:$0xff]
      %v342 = vld [vmem:[%s165 + $0x550] sm:$0xff]
      %v343 = vld [vmem:[%s165 + $0x558] sm:$0xff]
      %v344 = vld [vmem:[%s165 + $0x560] sm:$0xff]
      %v345 = vld [vmem:[%s165 + $0x568] sm:$0xff]
      %v346 = vld [vmem:[%s165 + $0x570] sm:$0xff]
      %v347 = vld [vmem:[%s165 + $0x578] sm:$0xff]
      %v348 = vld [vmem:[%s165 + $0x580] sm:$0xff]
      %v349 = vld [vmem:[%s165 + $0x588] sm:$0xff]
      %v350 = vld [vmem:[%s165 + $0x590] sm:$0xff]
      %v351 = vld [vmem:[%s165 + $0x598] sm:$0xff]
      %v352 = vld [vmem:[%s165 + $0x5a0] sm:$0xff]
      %v353 = vld [vmem:[%s165 + $0x5a8] sm:$0xff]
      %v354 = vld [vmem:[%s165 + $0x5b0] sm:$0xff]
      %v355 = vld [vmem:[%s165 + $0x5b8] sm:$0xff]
      %v356 = vld [vmem:[%s165 + $0x5c0] sm:$0xff]
      %v357 = vld [vmem:[%s165 + $0x5c8] sm:$0xff]
      %v358 = vld [vmem:[%s165 + $0x5d0] sm:$0xff]
      %v359 = vld [vmem:[%s165 + $0x5d8] sm:$0xff]
      %v360 = vld [vmem:[%s165 + $0x5e0] sm:$0xff]
      %v361 = vld [vmem:[%s165 + $0x5e8] sm:$0xff]
      %v362 = vld [vmem:[%s165 + $0x5f0] sm:$0xff]
      %v363 = vld [vmem:[%s165 + $0x5f8] sm:$0xff]
      %v364 = vld [vmem:[%s165 + $0x600] sm:$0xff]
      %v365 = vld [vmem:[%s165 + $0x608] sm:$0xff]
      %v366 = vld [vmem:[%s165 + $0x610] sm:$0xff]
      %v367 = vld [vmem:[%s165 + $0x618] sm:$0xff]
      %v368 = vld [vmem:[%s165 + $0x620] sm:$0xff]
      %v369 = vld [vmem:[%s165 + $0x628] sm:$0xff]
      %v370 = vld [vmem:[%s165 + $0x630] sm:$0xff]
      %v371 = vld [vmem:[%s165 + $0x638] sm:$0xff]
      %v372 = vld [vmem:[%s165 + $0x640] sm:$0xff]
      %v373 = vld [vmem:[%s165 + $0x648] sm:$0xff]
      %v374 = vld [vmem:[%s165 + $0x650] sm:$0xff]
      %v375 = vld [vmem:[%s165 + $0x658] sm:$0xff]
      %v376 = vld [vmem:[%s165 + $0x660] sm:$0xff]
      %v377 = vld [vmem:[%s165 + $0x668] sm:$0xff]
      %v378 = vld [vmem:[%s165 + $0x670] sm:$0xff]
      %v379 = vld [vmem:[%s165 + $0x678] sm:$0xff]
      %v380 = vld [vmem:[%s165 + $0x680] sm:$0xff]
      %v381 = vld [vmem:[%s165 + $0x688] sm:$0xff]
      %v382 = vld [vmem:[%s165 + $0x690] sm:$0xff]
      %v383 = vld [vmem:[%s165 + $0x698] sm:$0xff]
      %v384 = vld [vmem:[%s165 + $0x6a0] sm:$0xff]
      %v385 = vld [vmem:[%s165 + $0x6a8] sm:$0xff]
      %v386 = vld [vmem:[%s165 + $0x6b0] sm:$0xff]
      %v387 = vld [vmem:[%s165 + $0x6b8] sm:$0xff]
      %v388 = vld [vmem:[%s165 + $0x6c0] sm:$0xff]
      %v389 = vld [vmem:[%s165 + $0x6c8] sm:$0xff]
      %v390 = vld [vmem:[%s165 + $0x6d0] sm:$0xff]
      %v391 = vld [vmem:[%s165 + $0x6d8] sm:$0xff]
      %v392 = vld [vmem:[%s165 + $0x6e0] sm:$0xff]
      %v393 = vld [vmem:[%s165 + $0x6e8] sm:$0xff]
      %v394 = vld [vmem:[%s165 + $0x6f0] sm:$0xff]
      %v395 = vld [vmem:[%s165 + $0x6f8] sm:$0xff]
      %v396 = vld [vmem:[%s165 + $0x700] sm:$0xff]
      %v397 = vld [vmem:[%s165 + $0x708] sm:$0xff]
      %v398 = vld [vmem:[%s165 + $0x710] sm:$0xff]
      %v399 = vld [vmem:[%s165 + $0x718] sm:$0xff]
      %v400 = vld [vmem:[%s165 + $0x720] sm:$0xff]
      %v401 = vld [vmem:[%s165 + $0x728] sm:$0xff]
      %v402 = vld [vmem:[%s165 + $0x730] sm:$0xff]
      %v403 = vld [vmem:[%s165 + $0x738] sm:$0xff]
      %v404 = vld [vmem:[%s165 + $0x740] sm:$0xff]
      %v405 = vld [vmem:[%s165 + $0x748] sm:$0xff]
      %v406 = vld [vmem:[%s165 + $0x750] sm:$0xff]
      %v407 = vld [vmem:[%s165 + $0x758] sm:$0xff]
      %v408 = vld [vmem:[%s165 + $0x760] sm:$0xff]
      %v409 = vld [vmem:[%s165 + $0x768] sm:$0xff]
      %v410 = vld [vmem:[%s165 + $0x770] sm:$0xff]
      %v411 = vld [vmem:[%s165 + $0x778] sm:$0xff]
      %v412 = vld [vmem:[%s165 + $0x780] sm:$0xff]
      %v413 = vld [vmem:[%s165 + $0x788] sm:$0xff]
      %v414 = vld [vmem:[%s165 + $0x790] sm:$0xff]
      %v415 = vld [vmem:[%s165 + $0x798] sm:$0xff]
      %v416 = vld [vmem:[%s165 + $0x7a0] sm:$0xff]
      %v417 = vld [vmem:[%s165 + $0x7a8] sm:$0xff]
      %v418 = vld [vmem:[%s165 + $0x7b0] sm:$0xff]
      %v419 = vld [vmem:[%s165 + $0x7b8] sm:$0xff]
      %v420 = vld [vmem:[%s165 + $0x7c0] sm:$0xff]
      %v421 = vld [vmem:[%s165 + $0x7c8] sm:$0xff]
      %v422 = vld [vmem:[%s165 + $0x7d0] sm:$0xff]
      %v423 = vld [vmem:[%s165 + $0x7d8] sm:$0xff]
      %v424 = vld [vmem:[%s165 + $0x7e0] sm:$0xff]
      %v425 = vld [vmem:[%s165 + $0x7e8] sm:$0xff]
      %v426 = vld [vmem:[%s165 + $0x7f0] sm:$0xff]
      %v427 = vld [vmem:[%s165 + $0x7f8] sm:$0xff]
      %v428 = vld [vmem:[%s2] sm:$0xf]
      %430 = vset.pattern.permute.xlu0 0
      %431 = vperm.xlu0 %430, %v428
      %v432 = vpop.permute.xlu0 %431
      %vm434 = vcmask 523264
      %v436 = vsel %vm434, %v171, 0
      %438 = vmatprep.subr.mxu0 0.0
      %439 = vmatpush1.msra.mxu0 0.0
      %440 = vmatprep.subr.mxu0 0.0
      %441 = vmatpush1.msra.mxu0 0.0
      %442 = vmatprep.subr.mxu0 0.0
      %443 = vmatpush1.msra.mxu0 0.0
      %444 = vmatprep.subr.mxu0 0.0
      %445 = vmatpush1.msra.mxu0 0.0
      %446 = vmatprep.subr.mxu0 0.0
      %447 = vmatpush1.msra.mxu0 0.0
      %448 = vmatprep.subr.mxu0 0.0
      %449 = vmatpush1.msra.mxu0 0.0
      %450 = vmatprep.subr.mxu0 0.0
      %451 = vmatpush1.msra.mxu0 0.0
      %452 = vmatprep.subr.mxu0 0.0
      %453 = vmatpush1.msra.mxu0 0.0
      %454 = vmatprep.subr.mxu0 %v397
      %455 = vmatpush1.msra.mxu0 %v396
      %456 = vmatprep.subr.mxu0 %v365
      %457 = vmatpush1.msra.mxu0 %v364
      %458 = vmatprep.subr.mxu0 %v333
      %459 = vmatpush1.msra.mxu0 %v332
      %460 = vmatprep.subr.mxu0 %v301
      %461 = vmatpush1.msra.mxu0 %v300
      %462 = vmatprep.subr.mxu0 %v269
      %463 = vmatpush1.msra.mxu0 %v268
      %464 = vmatprep.subr.mxu0 %v237
      %465 = vmatpush1.msra.mxu0 %v236
      %466 = vmatprep.subr.mxu0 %v205
      %467 = vmatpush1.msra.mxu0 %v204
      %468 = vmatprep.subr.mxu0 %v173
      %469 = vmatpush1.msra.mxu0 %v172
      %470 = vmatprep.subr.mxu0 0.0
      %471 = vmatpush2.msra.mxu0 0.0
      %472 = vmatprep.subr.mxu0 0.0
      %473 = vmatpush2.msra.mxu0 0.0
      %474 = vmatprep.subr.mxu0 0.0
      %475 = vmatpush2.msra.mxu0 0.0
      %476 = vmatprep.subr.mxu0 0.0
      %477 = vmatpush2.msra.mxu0 0.0
      %478 = vmatprep.subr.mxu0 0.0
      %479 = vmatpush2.msra.mxu0 0.0
      %480 = vmatprep.subr.mxu0 0.0
      %481 = vmatpush2.msra.mxu0 0.0
      %482 = vmatprep.subr.mxu0 0.0
      %483 = vmatpush2.msra.mxu0 0.0
      %484 = vmatprep.subr.mxu0 0.0
      %485 = vmatpush2.msra.mxu0 0.0
      %486 = vmatprep.subr.mxu0 0.0
      %487 = vmatpush2.msra.mxu0 0.0
      %488 = vmatprep.subr.mxu0 0.0
      %489 = vmatpush2.msra.mxu0 0.0
      %490 = vmatprep.subr.mxu0 0.0
      %491 = vmatpush2.msra.mxu0 0.0
      %492 = vmatprep.subr.mxu0 0.0
      %493 = vmatpush2.msra.mxu0 0.0
      %494 = vmatprep.subr.mxu0 0.0
      %495 = vmatpush2.msra.mxu0 0.0
      %496 = vmatprep.subr.mxu0 0.0
      %497 = vmatpush2.msra.mxu0 0.0
      %498 = vmatprep.subr.mxu0 0.0
      %499 = vmatpush2.msra.mxu0 0.0
      %500 = vmatprep.subr.mxu0 0.0
      %501 = vmatpush2.msra.mxu0 0.0
      %502 = vmatprep.mubr.f32.mxu0 0.0
      %503 = vmatmul.mubr.f32.gmra.mxu0 %v436
      %v504 = vpop.f32.mrf.mxu0
      %v505 = vadd.f32 %v432, %v504
      %v506 = vpop.f32.mrf.mxu0
      %v507 = vadd.f32 %v432, %v506
      %508 = vdwg.mxu0
      %509 = vmatprep.subr.mxu0 0.0
      %510 = vmatpush1.msra.mxu0 0.0
      %511 = vmatprep.subr.mxu0 0.0
      %512 = vmatpush1.msra.mxu0 0.0
      %513 = vmatprep.subr.mxu0 0.0
      %514 = vmatpush1.msra.mxu0 0.0
      %515 = vmatprep.subr.mxu0 0.0
      %516 = vmatpush1.msra.mxu0 0.0
      %517 = vmatprep.subr.mxu0 0.0
      %518 = vmatpush1.msra.mxu0 0.0
      %519 = vmatprep.subr.mxu0 0.0
      %520 = vmatpush1.msra.mxu0 0.0
      %521 = vmatprep.subr.mxu0 0.0
      %522 = vmatpush1.msra.mxu0 0.0
      %523 = vmatprep.subr.mxu0 0.0
      %524 = vmatpush1.msra.mxu0 0.0
      %525 = vmatprep.subr.mxu0 %v399
      %526 = vmatpush1.msra.mxu0 %v398
      %527 = vmatprep.subr.mxu0 %v367
      %528 = vmatpush1.msra.mxu0 %v366
      %529 = vmatprep.subr.mxu0 %v335
      %530 = vmatpush1.msra.mxu0 %v334
      %531 = vmatprep.subr.mxu0 %v303
      %532 = vmatpush1.msra.mxu0 %v302
      %533 = vmatprep.subr.mxu0 %v271
      %534 = vmatpush1.msra.mxu0 %v270
      %535 = vmatprep.subr.mxu0 %v239
      %536 = vmatpush1.msra.mxu0 %v238
      %537 = vmatprep.subr.mxu0 %v207
      %538 = vmatpush1.msra.mxu0 %v206
      %539 = vmatprep.subr.mxu0 %v175
      %540 = vmatpush1.msra.mxu0 %v174
      %541 = vmatprep.subr.mxu0 0.0
      %542 = vmatpush2.msra.mxu0 0.0
      %543 = vmatprep.subr.mxu0 0.0
      %544 = vmatpush2.msra.mxu0 0.0
      %545 = vmatprep.subr.mxu0 0.0
      %546 = vmatpush2.msra.mxu0 0.0
      %547 = vmatprep.subr.mxu0 0.0
      %548 = vmatpush2.msra.mxu0 0.0
      %549 = vmatprep.subr.mxu0 0.0
      %550 = vmatpush2.msra.mxu0 0.0
      %551 = vmatprep.subr.mxu0 0.0
      %552 = vmatpush2.msra.mxu0 0.0
      %553 = vmatprep.subr.mxu0 0.0
      %554 = vmatpush2.msra.mxu0 0.0
      %555 = vmatprep.subr.mxu0 0.0
      %556 = vmatpush2.msra.mxu0 0.0
      %557 = vmatprep.subr.mxu0 0.0
      %558 = vmatpush2.msra.mxu0 0.0
      %559 = vmatprep.subr.mxu0 0.0
      %560 = vmatpush2.msra.mxu0 0.0
      %561 = vmatprep.subr.mxu0 0.0
      %562 = vmatpush2.msra.mxu0 0.0
      %563 = vmatprep.subr.mxu0 0.0
      %564 = vmatpush2.msra.mxu0 0.0
      %565 = vmatprep.subr.mxu0 0.0
      %566 = vmatpush2.msra.mxu0 0.0
      %567 = vmatprep.subr.mxu0 0.0
      %568 = vmatpush2.msra.mxu0 0.0
      %569 = vmatprep.subr.mxu0 0.0
      %570 = vmatpush2.msra.mxu0 0.0
      %571 = vmatprep.subr.mxu0 0.0
      %572 = vmatpush2.msra.mxu0 0.0
      %573 = vmatprep.mubr.f32.mxu0 0.0
      %574 = vmatmul.mubr.f32.gmra.mxu0 %v436
      %v575 = vpop.f32.mrf.mxu0
      %v576 = vadd.f32 %v432, %v575
      %v577 = vpop.f32.mrf.mxu0
      %v578 = vadd.f32 %v432, %v577
      %579 = vdwg.mxu0
      %580 = vmatprep.subr.mxu0 0.0
      %581 = vmatpush1.msra.mxu0 0.0
      %582 = vmatprep.subr.mxu0 0.0
      %583 = vmatpush1.msra.mxu0 0.0
      %584 = vmatprep.subr.mxu0 0.0
      %585 = vmatpush1.msra.mxu0 0.0
      %586 = vmatprep.subr.mxu0 0.0
      %587 = vmatpush1.msra.mxu0 0.0
      %588 = vmatprep.subr.mxu0 0.0
      %589 = vmatpush1.msra.mxu0 0.0
      %590 = vmatprep.subr.mxu0 0.0
      %591 = vmatpush1.msra.mxu0 0.0
      %592 = vmatprep.subr.mxu0 0.0
      %593 = vmatpush1.msra.mxu0 0.0
      %594 = vmatprep.subr.mxu0 0.0
      %595 = vmatpush1.msra.mxu0 0.0
      %596 = vmatprep.subr.mxu0 %v401
      %597 = vmatpush1.msra.mxu0 %v400
      %598 = vmatprep.subr.mxu0 %v369
      %599 = vmatpush1.msra.mxu0 %v368
      %600 = vmatprep.subr.mxu0 %v337
      %601 = vmatpush1.msra.mxu0 %v336
      %602 = vmatprep.subr.mxu0 %v305
      %603 = vmatpush1.msra.mxu0 %v304
      %604 = vmatprep.subr.mxu0 %v273
      %605 = vmatpush1.msra.mxu0 %v272
      %606 = vmatprep.subr.mxu0 %v241
      %607 = vmatpush1.msra.mxu0 %v240
      %608 = vmatprep.subr.mxu0 %v209
      %609 = vmatpush1.msra.mxu0 %v208
      %610 = vmatprep.subr.mxu0 %v177
      %611 = vmatpush1.msra.mxu0 %v176
      %612 = vmatprep.subr.mxu0 0.0
      %613 = vmatpush2.msra.mxu0 0.0
      %614 = vmatprep.subr.mxu0 0.0
      %615 = vmatpush2.msra.mxu0 0.0
      %616 = vmatprep.subr.mxu0 0.0
      %617 = vmatpush2.msra.mxu0 0.0
      %618 = vmatprep.subr.mxu0 0.0
      %619 = vmatpush2.msra.mxu0 0.0
      %620 = vmatprep.subr.mxu0 0.0
      %621 = vmatpush2.msra.mxu0 0.0
      %622 = vmatprep.subr.mxu0 0.0
      %623 = vmatpush2.msra.mxu0 0.0
      %624 = vmatprep.subr.mxu0 0.0
      %625 = vmatpush2.msra.mxu0 0.0
      %626 = vmatprep.subr.mxu0 0.0
      %627 = vmatpush2.msra.mxu0 0.0
      %628 = vmatprep.subr.mxu0 0.0
      %629 = vmatpush2.msra.mxu0 0.0
      %630 = vmatprep.subr.mxu0 0.0
      %631 = vmatpush2.msra.mxu0 0.0
      %632 = vmatprep.subr.mxu0 0.0
      %633 = vmatpush2.msra.mxu0 0.0
      %634 = vmatprep.subr.mxu0 0.0
      %635 = vmatpush2.msra.mxu0 0.0
      %636 = vmatprep.subr.mxu0 0.0
      %637 = vmatpush2.msra.mxu0 0.0
      %638 = vmatprep.subr.mxu0 0.0
      %639 = vmatpush2.msra.mxu0 0.0
      %640 = vmatprep.subr.mxu0 0.0
      %641 = vmatpush2.msra.mxu0 0.0
      %642 = vmatprep.subr.mxu0 0.0
      %643 = vmatpush2.msra.mxu0 0.0
      %644 = vmatprep.mubr.f32.mxu0 0.0
      %645 = vmatmul.mubr.f32.gmra.mxu0 %v436
      %v646 = vpop.f32.mrf.mxu0
      %v647 = vadd.f32 %v432, %v646
      %v648 = vpop.f32.mrf.mxu0
      %v649 = vadd.f32 %v432, %v648
      %650 = vdwg.mxu0
      %651 = vmatprep.subr.mxu0 0.0
      %652 = vmatpush1.msra.mxu0 0.0
      %653 = vmatprep.subr.mxu0 0.0
      %654 = vmatpush1.msra.mxu0 0.0
      %655 = vmatprep.subr.mxu0 0.0
      %656 = vmatpush1.msra.mxu0 0.0
      %657 = vmatprep.subr.mxu0 0.0
      %658 = vmatpush1.msra.mxu0 0.0
      %659 = vmatprep.subr.mxu0 0.0
      %660 = vmatpush1.msra.mxu0 0.0
      %661 = vmatprep.subr.mxu0 0.0
      %662 = vmatpush1.msra.mxu0 0.0
      %663 = vmatprep.subr.mxu0 0.0
      %664 = vmatpush1.msra.mxu0 0.0
      %665 = vmatprep.subr.mxu0 0.0
      %666 = vmatpush1.msra.mxu0 0.0
      %667 = vmatprep.subr.mxu0 %v403
      %668 = vmatpush1.msra.mxu0 %v402
      %669 = vmatprep.subr.mxu0 %v371
      %670 = vmatpush1.msra.mxu0 %v370
      %671 = vmatprep.subr.mxu0 %v339
      %672 = vmatpush1.msra.mxu0 %v338
      %673 = vmatprep.subr.mxu0 %v307
      %674 = vmatpush1.msra.mxu0 %v306
      %675 = vmatprep.subr.mxu0 %v275
      %676 = vmatpush1.msra.mxu0 %v274
      %677 = vmatprep.subr.mxu0 %v243
      %678 = vmatpush1.msra.mxu0 %v242
      %679 = vmatprep.subr.mxu0 %v211
      %680 = vmatpush1.msra.mxu0 %v210
      %681 = vmatprep.subr.mxu0 %v179
      %682 = vmatpush1.msra.mxu0 %v178
      %683 = vmatprep.subr.mxu0 0.0
      %684 = vmatpush2.msra.mxu0 0.0
      %685 = vmatprep.subr.mxu0 0.0
      %686 = vmatpush2.msra.mxu0 0.0
      %687 = vmatprep.subr.mxu0 0.0
      %688 = vmatpush2.msra.mxu0 0.0
      %689 = vmatprep.subr.mxu0 0.0
      %690 = vmatpush2.msra.mxu0 0.0
      %691 = vmatprep.subr.mxu0 0.0
      %692 = vmatpush2.msra.mxu0 0.0
      %693 = vmatprep.subr.mxu0 0.0
      %694 = vmatpush2.msra.mxu0 0.0
      %695 = vmatprep.subr.mxu0 0.0
      %696 = vmatpush2.msra.mxu0 0.0
      %697 = vmatprep.subr.mxu0 0.0
      %698 = vmatpush2.msra.mxu0 0.0
      %699 = vmatprep.subr.mxu0 0.0
      %700 = vmatpush2.msra.mxu0 0.0
      %701 = vmatprep.subr.mxu0 0.0
      %702 = vmatpush2.msra.mxu0 0.0
      %703 = vmatprep.subr.mxu0 0.0
      %704 = vmatpush2.msra.mxu0 0.0
      %705 = vmatprep.subr.mxu0 0.0
      %706 = vmatpush2.msra.mxu0 0.0
      %707 = vmatprep.subr.mxu0 0.0
      %708 = vmatpush2.msra.mxu0 0.0
      %709 = vmatprep.subr.mxu0 0.0
      %710 = vmatpush2.msra.mxu0 0.0
      %711 = vmatprep.subr.mxu0 0.0
      %712 = vmatpush2.msra.mxu0 0.0
      %713 = vmatprep.subr.mxu0 0.0
      %714 = vmatpush2.msra.mxu0 0.0
      %715 = vmatprep.mubr.f32.mxu0 0.0
      %716 = vmatmul.mubr.f32.gmra.mxu0 %v436
      %v717 = vpop.f32.mrf.mxu0
      %v718 = vadd.f32 %v432, %v717
      %v719 = vpop.f32.mrf.mxu0
      %v720 = vadd.f32 %v432, %v719
      %721 = vdwg.mxu0
      %722 = vmatprep.subr.mxu0 0.0
      %723 = vmatpush1.msra.mxu0 0.0
      %724 = vmatprep.subr.mxu0 0.0
      %725 = vmatpush1.msra.mxu0 0.0
      %726 = vmatprep.subr.mxu0 0.0
      %727 = vmatpush1.msra.mxu0 0.0
      %728 = vmatprep.subr.mxu0 0.0
      %729 = vmatpush1.msra.mxu0 0.0
      %730 = vmatprep.subr.mxu0 0.0
      %731 = vmatpush1.msra.mxu0 0.0
      %732 = vmatprep.subr.mxu0 0.0
      %733 = vmatpush1.msra.mxu0 0.0
      %734 = vmatprep.subr.mxu0 0.0
      %735 = vmatpush1.msra.mxu0 0.0
      %736 = vmatprep.subr.mxu0 0.0
      %737 = vmatpush1.msra.mxu0 0.0
      %738 = vmatprep.subr.mxu0 %v405
      %739 = vmatpush1.msra.mxu0 %v404
      %740 = vmatprep.subr.mxu0 %v373
      %741 = vmatpush1.msra.mxu0 %v372
      %742 = vmatprep.subr.mxu0 %v341
      %743 = vmatpush1.msra.mxu0 %v340
      %744 = vmatprep.subr.mxu0 %v309
      %745 = vmatpush1.msra.mxu0 %v308
      %746 = vmatprep.subr.mxu0 %v277
      %747 = vmatpush1.msra.mxu0 %v276
      %748 = vmatprep.subr.mxu0 %v245
      %749 = vmatpush1.msra.mxu0 %v244
      %750 = vmatprep.subr.mxu0 %v213
      %751 = vmatpush1.msra.mxu0 %v212
      %752 = vmatprep.subr.mxu0 %v181
      %753 = vmatpush1.msra.mxu0 %v180
      %754 = vmatprep.subr.mxu0 0.0
      %755 = vmatpush2.msra.mxu0 0.0
      %756 = vmatprep.subr.mxu0 0.0
      %757 = vmatpush2.msra.mxu0 0.0
      %758 = vmatprep.subr.mxu0 0.0
      %759 = vmatpush2.msra.mxu0 0.0
      %760 = vmatprep.subr.mxu0 0.0
      %761 = vmatpush2.msra.mxu0 0.0
      %762 = vmatprep.subr.mxu0 0.0
      %763 = vmatpush2.msra.mxu0 0.0
      %764 = vmatprep.subr.mxu0 0.0
      %765 = vmatpush2.msra.mxu0 0.0
      %766 = vmatprep.subr.mxu0 0.0
      %767 = vmatpush2.msra.mxu0 0.0
      %768 = vmatprep.subr.mxu0 0.0
      %769 = vmatpush2.msra.mxu0 0.0
      %770 = vmatprep.subr.mxu0 0.0
      %771 = vmatpush2.msra.mxu0 0.0
      %772 = vmatprep.subr.mxu0 0.0
      %773 = vmatpush2.msra.mxu0 0.0
      %774 = vmatprep.subr.mxu0 0.0
      %775 = vmatpush2.msra.mxu0 0.0
      %776 = vmatprep.subr.mxu0 0.0
      %777 = vmatpush2.msra.mxu0 0.0
      %778 = vmatprep.subr.mxu0 0.0
      %779 = vmatpush2.msra.mxu0 0.0
      %780 = vmatprep.subr.mxu0 0.0
      %781 = vmatpush2.msra.mxu0 0.0
      %782 = vmatprep.subr.mxu0 0.0
      %783 = vmatpush2.msra.mxu0 0.0
      %784 = vmatprep.subr.mxu0 0.0
      %785 = vmatpush2.msra.mxu0 0.0
      %786 = vmatprep.mubr.f32.mxu0 0.0
      %787 = vmatmul.mubr.f32.gmra.mxu0 %v436
      %v788 = vpop.f32.mrf.mxu0
      %v789 = vadd.f32 %v432, %v788
      %v790 = vpop.f32.mrf.mxu0
      %v791 = vadd.f32 %v432, %v790
      %792 = vdwg.mxu0
      %793 = vmatprep.subr.mxu0 0.0
      %794 = vmatpush1.msra.mxu0 0.0
      %795 = vmatprep.subr.mxu0 0.0
      %796 = vmatpush1.msra.mxu0 0.0
      %797 = vmatprep.subr.mxu0 0.0
      %798 = vmatpush1.msra.mxu0 0.0
      %799 = vmatprep.subr.mxu0 0.0
      %800 = vmatpush1.msra.mxu0 0.0
      %801 = vmatprep.subr.mxu0 0.0
      %802 = vmatpush1.msra.mxu0 0.0
      %803 = vmatprep.subr.mxu0 0.0
      %804 = vmatpush1.msra.mxu0 0.0
      %805 = vmatprep.subr.mxu0 0.0
      %806 = vmatpush1.msra.mxu0 0.0
      %807 = vmatprep.subr.mxu0 0.0
      %808 = vmatpush1.msra.mxu0 0.0
      %809 = vmatprep.subr.mxu0 %v407
      %810 = vmatpush1.msra.mxu0 %v406
      %811 = vmatprep.subr.mxu0 %v375
      %812 = vmatpush1.msra.mxu0 %v374
      %813 = vmatprep.subr.mxu0 %v343
      %814 = vmatpush1.msra.mxu0 %v342
      %815 = vmatprep.subr.mxu0 %v311
      %816 = vmatpush1.msra.mxu0 %v310
      %817 = vmatprep.subr.mxu0 %v279
      %818 = vmatpush1.msra.mxu0 %v278
      %819 = vmatprep.subr.mxu0 %v247
      %820 = vmatpush1.msra.mxu0 %v246
      %821 = vmatprep.subr.mxu0 %v215
      %822 = vmatpush1.msra.mxu0 %v214
      %823 = vmatprep.subr.mxu0 %v183
      %824 = vmatpush1.msra.mxu0 %v182
      %825 = vmatprep.subr.mxu0 0.0
      %826 = vmatpush2.msra.mxu0 0.0
      %827 = vmatprep.subr.mxu0 0.0
      %828 = vmatpush2.msra.mxu0 0.0
      %829 = vmatprep.subr.mxu0 0.0
      %830 = vmatpush2.msra.mxu0 0.0
      %831 = vmatprep.subr.mxu0 0.0
      %832 = vmatpush2.msra.mxu0 0.0
      %833 = vmatprep.subr.mxu0 0.0
      %834 = vmatpush2.msra.mxu0 0.0
      %835 = vmatprep.subr.mxu0 0.0
      %836 = vmatpush2.msra.mxu0 0.0
      %837 = vmatprep.subr.mxu0 0.0
      %838 = vmatpush2.msra.mxu0 0.0
      %839 = vmatprep.subr.mxu0 0.0
      %840 = vmatpush2.msra.mxu0 0.0
      %841 = vmatprep.subr.mxu0 0.0
      %842 = vmatpush2.msra.mxu0 0.0
      %843 = vmatprep.subr.mxu0 0.0
      %844 = vmatpush2.msra.mxu0 0.0
      %845 = vmatprep.subr.mxu0 0.0
      %846 = vmatpush2.msra.mxu0 0.0
      %847 = vmatprep.subr.mxu0 0.0
      %848 = vmatpush2.msra.mxu0 0.0
      %849 = vmatprep.subr.mxu0 0.0
      %850 = vmatpush2.msra.mxu0 0.0
      %851 = vmatprep.subr.mxu0 0.0
      %852 = vmatpush2.msra.mxu0 0.0
      %853 = vmatprep.subr.mxu0 0.0
      %854 = vmatpush2.msra.mxu0 0.0
      %855 = vmatprep.subr.mxu0 0.0
      %856 = vmatpush2.msra.mxu0 0.0
      %857 = vmatprep.mubr.f32.mxu0 0.0
      %858 = vmatmul.mubr.f32.gmra.mxu0 %v436
      %v859 = vpop.f32.mrf.mxu0
      %v860 = vadd.f32 %v432, %v859
      %v861 = vpop.f32.mrf.mxu0
      %v862 = vadd.f32 %v432, %v861
      %863 = vdwg.mxu0
      %864 = vmatprep.subr.mxu0 0.0
      %865 = vmatpush1.msra.mxu0 0.0
      %866 = vmatprep.subr.mxu0 0.0
      %867 = vmatpush1.msra.mxu0 0.0
      %868 = vmatprep.subr.mxu0 0.0
      %869 = vmatpush1.msra.mxu0 0.0
      %870 = vmatprep.subr.mxu0 0.0
      %871 = vmatpush1.msra.mxu0 0.0
      %872 = vmatprep.subr.mxu0 0.0
      %873 = vmatpush1.msra.mxu0 0.0
      %874 = vmatprep.subr.mxu0 0.0
      %875 = vmatpush1.msra.mxu0 0.0
      %876 = vmatprep.subr.mxu0 0.0
      %877 = vmatpush1.msra.mxu0 0.0
      %878 = vmatprep.subr.mxu0 0.0
      %879 = vmatpush1.msra.mxu0 0.0
      %880 = vmatprep.subr.mxu0 %v409
      %881 = vmatpush1.msra.mxu0 %v408
      %882 = vmatprep.subr.mxu0 %v377
      %883 = vmatpush1.msra.mxu0 %v376
      %884 = vmatprep.subr.mxu0 %v345
      %885 = vmatpush1.msra.mxu0 %v344
      %886 = vmatprep.subr.mxu0 %v313
      %887 = vmatpush1.msra.mxu0 %v312
      %888 = vmatprep.subr.mxu0 %v281
      %889 = vmatpush1.msra.mxu0 %v280
      %890 = vmatprep.subr.mxu0 %v249
      %891 = vmatpush1.msra.mxu0 %v248
      %892 = vmatprep.subr.mxu0 %v217
      %893 = vmatpush1.msra.mxu0 %v216
      %894 = vmatprep.subr.mxu0 %v185
      %895 = vmatpush1.msra.mxu0 %v184
      %896 = vmatprep.subr.mxu0 0.0
      %897 = vmatpush2.msra.mxu0 0.0
      %898 = vmatprep.subr.mxu0 0.0
      %899 = vmatpush2.msra.mxu0 0.0
      %900 = vmatprep.subr.mxu0 0.0
      %901 = vmatpush2.msra.mxu0 0.0
      %902 = vmatprep.subr.mxu0 0.0
      %903 = vmatpush2.msra.mxu0 0.0
      %904 = vmatprep.subr.mxu0 0.0
      %905 = vmatpush2.msra.mxu0 0.0
      %906 = vmatprep.subr.mxu0 0.0
      %907 = vmatpush2.msra.mxu0 0.0
      %908 = vmatprep.subr.mxu0 0.0
      %909 = vmatpush2.msra.mxu0 0.0
      %910 = vmatprep.subr.mxu0 0.0
      %911 = vmatpush2.msra.mxu0 0.0
      %912 = vmatprep.subr.mxu0 0.0
      %913 = vmatpush2.msra.mxu0 0.0
      %914 = vmatprep.subr.mxu0 0.0
      %915 = vmatpush2.msra.mxu0 0.0
      %916 = vmatprep.subr.mxu0 0.0
      %917 = vmatpush2.msra.mxu0 0.0
      %918 = vmatprep.subr.mxu0 0.0
      %919 = vmatpush2.msra.mxu0 0.0
      %920 = vmatprep.subr.mxu0 0.0
      %921 = vmatpush2.msra.mxu0 0.0
      %922 = vmatprep.subr.mxu0 0.0
      %923 = vmatpush2.msra.mxu0 0.0
      %924 = vmatprep.subr.mxu0 0.0
      %925 = vmatpush2.msra.mxu0 0.0
      %926 = vmatprep.subr.mxu0 0.0
      %927 = vmatpush2.msra.mxu0 0.0
      %928 = vmatprep.mubr.f32.mxu0 0.0
      %929 = vmatmul.mubr.f32.gmra.mxu0 %v436
      %v930 = vpop.f32.mrf.mxu0
      %v931 = vadd.f32 %v432, %v930
      %v932 = vpop.f32.mrf.mxu0
      %v933 = vadd.f32 %v432, %v932
      %934 = vdwg.mxu0
      %935 = vmatprep.subr.mxu0 0.0
      %936 = vmatpush1.msra.mxu0 0.0
      %937 = vmatprep.subr.mxu0 0.0
      %938 = vmatpush1.msra.mxu0 0.0
      %939 = vmatprep.subr.mxu0 0.0
      %940 = vmatpush1.msra.mxu0 0.0
      %941 = vmatprep.subr.mxu0 0.0
      %942 = vmatpush1.msra.mxu0 0.0
      %943 = vmatprep.subr.mxu0 0.0
      %944 = vmatpush1.msra.mxu0 0.0
      %945 = vmatprep.subr.mxu0 0.0
      %946 = vmatpush1.msra.mxu0 0.0
      %947 = vmatprep.subr.mxu0 0.0
      %948 = vmatpush1.msra.mxu0 0.0
      %949 = vmatprep.subr.mxu0 0.0
      %950 = vmatpush1.msra.mxu0 0.0
      %951 = vmatprep.subr.mxu0 %v411
      %952 = vmatpush1.msra.mxu0 %v410
      %953 = vmatprep.subr.mxu0 %v379
      %954 = vmatpush1.msra.mxu0 %v378
      %955 = vmatprep.subr.mxu0 %v347
      %956 = vmatpush1.msra.mxu0 %v346
      %957 = vmatprep.subr.mxu0 %v315
      %958 = vmatpush1.msra.mxu0 %v314
      %959 = vmatprep.subr.mxu0 %v283
      %960 = vmatpush1.msra.mxu0 %v282
      %961 = vmatprep.subr.mxu0 %v251
      %962 = vmatpush1.msra.mxu0 %v250
      %963 = vmatprep.subr.mxu0 %v219
      %964 = vmatpush1.msra.mxu0 %v218
      %965 = vmatprep.subr.mxu0 %v187
      %966 = vmatpush1.msra.mxu0 %v186
      %967 = vmatprep.subr.mxu0 0.0
      %968 = vmatpush2.msra.mxu0 0.0
      %969 = vmatprep.subr.mxu0 0.0
      %970 = vmatpush2.msra.mxu0 0.0
      %971 = vmatprep.subr.mxu0 0.0
      %972 = vmatpush2.msra.mxu0 0.0
      %973 = vmatprep.subr.mxu0 0.0
      %974 = vmatpush2.msra.mxu0 0.0
      %975 = vmatprep.subr.mxu0 0.0
      %976 = vmatpush2.msra.mxu0 0.0
      %977 = vmatprep.subr.mxu0 0.0
      %978 = vmatpush2.msra.mxu0 0.0
      %979 = vmatprep.subr.mxu0 0.0
      %980 = vmatpush2.msra.mxu0 0.0
      %981 = vmatprep.subr.mxu0 0.0
      %982 = vmatpush2.msra.mxu0 0.0
      %983 = vmatprep.subr.mxu0 0.0
      %984 = vmatpush2.msra.mxu0 0.0
      %985 = vmatprep.subr.mxu0 0.0
      %986 = vmatpush2.msra.mxu0 0.0
      %987 = vmatprep.subr.mxu0 0.0
      %988 = vmatpush2.msra.mxu0 0.0
      %989 = vmatprep.subr.mxu0 0.0
      %990 = vmatpush2.msra.mxu0 0.0
      %991 = vmatprep.subr.mxu0 0.0
      %992 = vmatpush2.msra.mxu0 0.0
      %993 = vmatprep.subr.mxu0 0.0
      %994 = vmatpush2.msra.mxu0 0.0
      %995 = vmatprep.subr.mxu0 0.0
      %996 = vmatpush2.msra.mxu0 0.0
      %997 = vmatprep.subr.mxu0 0.0
      %998 = vmatpush2.msra.mxu0 0.0
      %999 = vmatprep.mubr.f32.mxu0 0.0
      %1000 = vmatmul.mubr.f32.gmra.mxu0 %v436
      %v1001 = vpop.f32.mrf.mxu0
      %v1002 = vadd.f32 %v432, %v1001
      %v1003 = vpop.f32.mrf.mxu0
      %v1004 = vadd.f32 %v432, %v1003
      %1005 = vdwg.mxu0
      %1006 = vmatprep.subr.mxu0 0.0
      %1007 = vmatpush1.msra.mxu0 0.0
      %1008 = vmatprep.subr.mxu0 0.0
      %1009 = vmatpush1.msra.mxu0 0.0
      %1010 = vmatprep.subr.mxu0 0.0
      %1011 = vmatpush1.msra.mxu0 0.0
      %1012 = vmatprep.subr.mxu0 0.0
      %1013 = vmatpush1.msra.mxu0 0.0
      %1014 = vmatprep.subr.mxu0 0.0
      %1015 = vmatpush1.msra.mxu0 0.0
      %1016 = vmatprep.subr.mxu0 0.0
      %1017 = vmatpush1.msra.mxu0 0.0
      %1018 = vmatprep.subr.mxu0 0.0
      %1019 = vmatpush1.msra.mxu0 0.0
      %1020 = vmatprep.subr.mxu0 0.0
      %1021 = vmatpush1.msra.mxu0 0.0
      %1022 = vmatprep.subr.mxu0 %v413
      %1023 = vmatpush1.msra.mxu0 %v412
      %1024 = vmatprep.subr.mxu0 %v381
      %1025 = vmatpush1.msra.mxu0 %v380
      %1026 = vmatprep.subr.mxu0 %v349
      %1027 = vmatpush1.msra.mxu0 %v348
      %1028 = vmatprep.subr.mxu0 %v317
      %1029 = vmatpush1.msra.mxu0 %v316
      %1030 = vmatprep.subr.mxu0 %v285
      %1031 = vmatpush1.msra.mxu0 %v284
      %1032 = vmatprep.subr.mxu0 %v253
      %1033 = vmatpush1.msra.mxu0 %v252
      %1034 = vmatprep.subr.mxu0 %v221
      %1035 = vmatpush1.msra.mxu0 %v220
      %1036 = vmatprep.subr.mxu0 %v189
      %1037 = vmatpush1.msra.mxu0 %v188
      %1038 = vmatprep.subr.mxu0 0.0
      %1039 = vmatpush2.msra.mxu0 0.0
      %1040 = vmatprep.subr.mxu0 0.0
      %1041 = vmatpush2.msra.mxu0 0.0
      %1042 = vmatprep.subr.mxu0 0.0
      %1043 = vmatpush2.msra.mxu0 0.0
      %1044 = vmatprep.subr.mxu0 0.0
      %1045 = vmatpush2.msra.mxu0 0.0
      %1046 = vmatprep.subr.mxu0 0.0
      %1047 = vmatpush2.msra.mxu0 0.0
      %1048 = vmatprep.subr.mxu0 0.0
      %1049 = vmatpush2.msra.mxu0 0.0
      %1050 = vmatprep.subr.mxu0 0.0
      %1051 = vmatpush2.msra.mxu0 0.0
      %1052 = vmatprep.subr.mxu0 0.0
      %1053 = vmatpush2.msra.mxu0 0.0
      %1054 = vmatprep.subr.mxu0 0.0
      %1055 = vmatpush2.msra.mxu0 0.0
      %1056 = vmatprep.subr.mxu0 0.0
      %1057 = vmatpush2.msra.mxu0 0.0
      %1058 = vmatprep.subr.mxu0 0.0
      %1059 = vmatpush2.msra.mxu0 0.0
      %1060 = vmatprep.subr.mxu0 0.0
      %1061 = vmatpush2.msra.mxu0 0.0
      %1062 = vmatprep.subr.mxu0 0.0
      %1063 = vmatpush2.msra.mxu0 0.0
      %1064 = vmatprep.subr.mxu0 0.0
      %1065 = vmatpush2.msra.mxu0 0.0
      %1066 = vmatprep.subr.mxu0 0.0
      %1067 = vmatpush2.msra.mxu0 0.0
      %1068 = vmatprep.subr.mxu0 0.0
      %1069 = vmatpush2.msra.mxu0 0.0
      %1070 = vmatprep.mubr.f32.mxu0 0.0
      %1071 = vmatmul.mubr.f32.gmra.mxu0 %v436
      %v1072 = vpop.f32.mrf.mxu0
      %v1073 = vadd.f32 %v432, %v1072
      %v1074 = vpop.f32.mrf.mxu0
      %v1075 = vadd.f32 %v432, %v1074
      %1076 = vdwg.mxu0
      %1077 = vmatprep.subr.mxu0 0.0
      %1078 = vmatpush1.msra.mxu0 0.0
      %1079 = vmatprep.subr.mxu0 0.0
      %1080 = vmatpush1.msra.mxu0 0.0
      %1081 = vmatprep.subr.mxu0 0.0
      %1082 = vmatpush1.msra.mxu0 0.0
      %1083 = vmatprep.subr.mxu0 0.0
      %1084 = vmatpush1.msra.mxu0 0.0
      %1085 = vmatprep.subr.mxu0 0.0
      %1086 = vmatpush1.msra.mxu0 0.0
      %1087 = vmatprep.subr.mxu0 0.0
      %1088 = vmatpush1.msra.mxu0 0.0
      %1089 = vmatprep.subr.mxu0 0.0
      %1090 = vmatpush1.msra.mxu0 0.0
      %1091 = vmatprep.subr.mxu0 0.0
      %1092 = vmatpush1.msra.mxu0 0.0
      %1093 = vmatprep.subr.mxu0 %v415
      %1094 = vmatpush1.msra.mxu0 %v414
      %1095 = vmatprep.subr.mxu0 %v383
      %1096 = vmatpush1.msra.mxu0 %v382
      %1097 = vmatprep.subr.mxu0 %v351
      %1098 = vmatpush1.msra.mxu0 %v350
      %1099 = vmatprep.subr.mxu0 %v319
      %1100 = vmatpush1.msra.mxu0 %v318
      %1101 = vmatprep.subr.mxu0 %v287
      %1102 = vmatpush1.msra.mxu0 %v286
      %1103 = vmatprep.subr.mxu0 %v255
      %1104 = vmatpush1.msra.mxu0 %v254
      %1105 = vmatprep.subr.mxu0 %v223
      %1106 = vmatpush1.msra.mxu0 %v222
      %1107 = vmatprep.subr.mxu0 %v191
      %1108 = vmatpush1.msra.mxu0 %v190
      %1109 = vmatprep.subr.mxu0 0.0
      %1110 = vmatpush2.msra.mxu0 0.0
      %1111 = vmatprep.subr.mxu0 0.0
      %1112 = vmatpush2.msra.mxu0 0.0
      %1113 = vmatprep.subr.mxu0 0.0
      %1114 = vmatpush2.msra.mxu0 0.0
      %1115 = vmatprep.subr.mxu0 0.0
      %1116 = vmatpush2.msra.mxu0 0.0
      %1117 = vmatprep.subr.mxu0 0.0
      %1118 = vmatpush2.msra.mxu0 0.0
      %1119 = vmatprep.subr.mxu0 0.0
      %1120 = vmatpush2.msra.mxu0 0.0
      %1121 = vmatprep.subr.mxu0 0.0
      %1122 = vmatpush2.msra.mxu0 0.0
      %1123 = vmatprep.subr.mxu0 0.0
      %1124 = vmatpush2.msra.mxu0 0.0
      %1125 = vmatprep.subr.mxu0 0.0
      %1126 = vmatpush2.msra.mxu0 0.0
      %1127 = vmatprep.subr.mxu0 0.0
      %1128 = vmatpush2.msra.mxu0 0.0
      %1129 = vmatprep.subr.mxu0 0.0
      %1130 = vmatpush2.msra.mxu0 0.0
      %1131 = vmatprep.subr.mxu0 0.0
      %1132 = vmatpush2.msra.mxu0 0.0
      %1133 = vmatprep.subr.mxu0 0.0
      %1134 = vmatpush2.msra.mxu0 0.0
      %1135 = vmatprep.subr.mxu0 0.0
      %1136 = vmatpush2.msra.mxu0 0.0
      %1137 = vmatprep.subr.mxu0 0.0
      %1138 = vmatpush2.msra.mxu0 0.0
      %1139 = vmatprep.subr.mxu0 0.0
      %1140 = vmatpush2.msra.mxu0 0.0
      %1141 = vmatprep.mubr.f32.mxu0 0.0
      %1142 = vmatmul.mubr.f32.gmra.mxu0 %v436
      %v1143 = vpop.f32.mrf.mxu0
      %v1144 = vadd.f32 %v432, %v1143
      %v1145 = vpop.f32.mrf.mxu0
      %v1146 = vadd.f32 %v432, %v1145
      %1147 = vdwg.mxu0
      %1148 = vmatprep.subr.mxu0 0.0
      %1149 = vmatpush1.msra.mxu0 0.0
      %1150 = vmatprep.subr.mxu0 0.0
      %1151 = vmatpush1.msra.mxu0 0.0
      %1152 = vmatprep.subr.mxu0 0.0
      %1153 = vmatpush1.msra.mxu0 0.0
      %1154 = vmatprep.subr.mxu0 0.0
      %1155 = vmatpush1.msra.mxu0 0.0
      %1156 = vmatprep.subr.mxu0 0.0
      %1157 = vmatpush1.msra.mxu0 0.0
      %1158 = vmatprep.subr.mxu0 0.0
      %1159 = vmatpush1.msra.mxu0 0.0
      %1160 = vmatprep.subr.mxu0 0.0
      %1161 = vmatpush1.msra.mxu0 0.0
      %1162 = vmatprep.subr.mxu0 0.0
      %1163 = vmatpush1.msra.mxu0 0.0
      %1164 = vmatprep.subr.mxu0 %v417
      %1165 = vmatpush1.msra.mxu0 %v416
      %1166 = vmatprep.subr.mxu0 %v385
      %1167 = vmatpush1.msra.mxu0 %v384
      %1168 = vmatprep.subr.mxu0 %v353
      %1169 = vmatpush1.msra.mxu0 %v352
      %1170 = vmatprep.subr.mxu0 %v321
      %1171 = vmatpush1.msra.mxu0 %v320
      %1172 = vmatprep.subr.mxu0 %v289
      %1173 = vmatpush1.msra.mxu0 %v288
      %1174 = vmatprep.subr.mxu0 %v257
      %1175 = vmatpush1.msra.mxu0 %v256
      %1176 = vmatprep.subr.mxu0 %v225
      %1177 = vmatpush1.msra.mxu0 %v224
      %1178 = vmatprep.subr.mxu0 %v193
      %1179 = vmatpush1.msra.mxu0 %v192
      %1180 = vmatprep.subr.mxu0 0.0
      %1181 = vmatpush2.msra.mxu0 0.0
      %1182 = vmatprep.subr.mxu0 0.0
      %1183 = vmatpush2.msra.mxu0 0.0
      %1184 = vmatprep.subr.mxu0 0.0
      %1185 = vmatpush2.msra.mxu0 0.0
      %1186 = vmatprep.subr.mxu0 0.0
      %1187 = vmatpush2.msra.mxu0 0.0
      %1188 = vmatprep.subr.mxu0 0.0
      %1189 = vmatpush2.msra.mxu0 0.0
      %1190 = vmatprep.subr.mxu0 0.0
      %1191 = vmatpush2.msra.mxu0 0.0
      %1192 = vmatprep.subr.mxu0 0.0
      %1193 = vmatpush2.msra.mxu0 0.0
      %1194 = vmatprep.subr.mxu0 0.0
      %1195 = vmatpush2.msra.mxu0 0.0
      %1196 = vmatprep.subr.mxu0 0.0
      %1197 = vmatpush2.msra.mxu0 0.0
      %1198 = vmatprep.subr.mxu0 0.0
      %1199 = vmatpush2.msra.mxu0 0.0
      %1200 = vmatprep.subr.mxu0 0.0
      %1201 = vmatpush2.msra.mxu0 0.0
      %1202 = vmatprep.subr.mxu0 0.0
      %1203 = vmatpush2.msra.mxu0 0.0
      %1204 = vmatprep.subr.mxu0 0.0
      %1205 = vmatpush2.msra.mxu0 0.0
      %1206 = vmatprep.subr.mxu0 0.0
      %1207 = vmatpush2.msra.mxu0 0.0
      %1208 = vmatprep.subr.mxu0 0.0
      %1209 = vmatpush2.msra.mxu0 0.0
      %1210 = vmatprep.subr.mxu0 0.0
      %1211 = vmatpush2.msra.mxu0 0.0
      %1212 = vmatprep.mubr.f32.mxu0 0.0
      %1213 = vmatmul.mubr.f32.gmra.mxu0 %v436
      %v1214 = vpop.f32.mrf.mxu0
      %v1215 = vadd.f32 %v432, %v1214
      %v1216 = vpop.f32.mrf.mxu0
      %v1217 = vadd.f32 %v432, %v1216
      %1218 = vdwg.mxu0
      %1219 = vmatprep.subr.mxu0 0.0
      %1220 = vmatpush1.msra.mxu0 0.0
      %1221 = vmatprep.subr.mxu0 0.0
      %1222 = vmatpush1.msra.mxu0 0.0
      %1223 = vmatprep.subr.mxu0 0.0
      %1224 = vmatpush1.msra.mxu0 0.0
      %1225 = vmatprep.subr.mxu0 0.0
      %1226 = vmatpush1.msra.mxu0 0.0
      %1227 = vmatprep.subr.mxu0 0.0
      %1228 = vmatpush1.msra.mxu0 0.0
      %1229 = vmatprep.subr.mxu0 0.0
      %1230 = vmatpush1.msra.mxu0 0.0
      %1231 = vmatprep.subr.mxu0 0.0
      %1232 = vmatpush1.msra.mxu0 0.0
      %1233 = vmatprep.subr.mxu0 0.0
      %1234 = vmatpush1.msra.mxu0 0.0
      %1235 = vmatprep.subr.mxu0 %v419
      %1236 = vmatpush1.msra.mxu0 %v418
      %1237 = vmatprep.subr.mxu0 %v387
      %1238 = vmatpush1.msra.mxu0 %v386
      %1239 = vmatprep.subr.mxu0 %v355
      %1240 = vmatpush1.msra.mxu0 %v354
      %1241 = vmatprep.subr.mxu0 %v323
      %1242 = vmatpush1.msra.mxu0 %v322
      %1243 = vmatprep.subr.mxu0 %v291
      %1244 = vmatpush1.msra.mxu0 %v290
      %1245 = vmatprep.subr.mxu0 %v259
      %1246 = vmatpush1.msra.mxu0 %v258
      %1247 = vmatprep.subr.mxu0 %v227
      %1248 = vmatpush1.msra.mxu0 %v226
      %1249 = vmatprep.subr.mxu0 %v195
      %1250 = vmatpush1.msra.mxu0 %v194
      %1251 = vmatprep.subr.mxu0 0.0
      %1252 = vmatpush2.msra.mxu0 0.0
      %1253 = vmatprep.subr.mxu0 0.0
      %1254 = vmatpush2.msra.mxu0 0.0
      %1255 = vmatprep.subr.mxu0 0.0
      %1256 = vmatpush2.msra.mxu0 0.0
      %1257 = vmatprep.subr.mxu0 0.0
      %1258 = vmatpush2.msra.mxu0 0.0
      %1259 = vmatprep.subr.mxu0 0.0
      %1260 = vmatpush2.msra.mxu0 0.0
      %1261 = vmatprep.subr.mxu0 0.0
      %1262 = vmatpush2.msra.mxu0 0.0
      %1263 = vmatprep.subr.mxu0 0.0
      %1264 = vmatpush2.msra.mxu0 0.0
      %1265 = vmatprep.subr.mxu0 0.0
      %1266 = vmatpush2.msra.mxu0 0.0
      %1267 = vmatprep.subr.mxu0 0.0
      %1268 = vmatpush2.msra.mxu0 0.0
      %1269 = vmatprep.subr.mxu0 0.0
      %1270 = vmatpush2.msra.mxu0 0.0
      %1271 = vmatprep.subr.mxu0 0.0
      %1272 = vmatpush2.msra.mxu0 0.0
      %1273 = vmatprep.subr.mxu0 0.0
      %1274 = vmatpush2.msra.mxu0 0.0
      %1275 = vmatprep.subr.mxu0 0.0
      %1276 = vmatpush2.msra.mxu0 0.0
      %1277 = vmatprep.subr.mxu0 0.0
      %1278 = vmatpush2.msra.mxu0 0.0
      %1279 = vmatprep.subr.mxu0 0.0
      %1280 = vmatpush2.msra.mxu0 0.0
      %1281 = vmatprep.subr.mxu0 0.0
      %1282 = vmatpush2.msra.mxu0 0.0
      %1283 = vmatprep.mubr.f32.mxu0 0.0
      %1284 = vmatmul.mubr.f32.gmra.mxu0 %v436
      %v1285 = vpop.f32.mrf.mxu0
      %v1286 = vadd.f32 %v432, %v1285
      %v1287 = vpop.f32.mrf.mxu0
      %v1288 = vadd.f32 %v432, %v1287
      %1289 = vdwg.mxu0
      %1290 = vmatprep.subr.mxu0 0.0
      %1291 = vmatpush1.msra.mxu0 0.0
      %1292 = vmatprep.subr.mxu0 0.0
      %1293 = vmatpush1.msra.mxu0 0.0
      %1294 = vmatprep.subr.mxu0 0.0
      %1295 = vmatpush1.msra.mxu0 0.0
      %1296 = vmatprep.subr.mxu0 0.0
      %1297 = vmatpush1.msra.mxu0 0.0
      %1298 = vmatprep.subr.mxu0 0.0
      %1299 = vmatpush1.msra.mxu0 0.0
      %1300 = vmatprep.subr.mxu0 0.0
      %1301 = vmatpush1.msra.mxu0 0.0
      %1302 = vmatprep.subr.mxu0 0.0
      %1303 = vmatpush1.msra.mxu0 0.0
      %1304 = vmatprep.subr.mxu0 0.0
      %1305 = vmatpush1.msra.mxu0 0.0
      %1306 = vmatprep.subr.mxu0 %v421
      %1307 = vmatpush1.msra.mxu0 %v420
      %1308 = vmatprep.subr.mxu0 %v389
      %1309 = vmatpush1.msra.mxu0 %v388
      %1310 = vmatprep.subr.mxu0 %v357
      %1311 = vmatpush1.msra.mxu0 %v356
      %1312 = vmatprep.subr.mxu0 %v325
      %1313 = vmatpush1.msra.mxu0 %v324
      %1314 = vmatprep.subr.mxu0 %v293
      %1315 = vmatpush1.msra.mxu0 %v292
      %1316 = vmatprep.subr.mxu0 %v261
      %1317 = vmatpush1.msra.mxu0 %v260
      %1318 = vmatprep.subr.mxu0 %v229
      %1319 = vmatpush1.msra.mxu0 %v228
      %1320 = vmatprep.subr.mxu0 %v197
      %1321 = vmatpush1.msra.mxu0 %v196
      %1322 = vmatprep.subr.mxu0 0.0
      %1323 = vmatpush2.msra.mxu0 0.0
      %1324 = vmatprep.subr.mxu0 0.0
      %1325 = vmatpush2.msra.mxu0 0.0
      %1326 = vmatprep.subr.mxu0 0.0
      %1327 = vmatpush2.msra.mxu0 0.0
      %1328 = vmatprep.subr.mxu0 0.0
      %1329 = vmatpush2.msra.mxu0 0.0
      %1330 = vmatprep.subr.mxu0 0.0
      %1331 = vmatpush2.msra.mxu0 0.0
      %1332 = vmatprep.subr.mxu0 0.0
      %1333 = vmatpush2.msra.mxu0 0.0
      %1334 = vmatprep.subr.mxu0 0.0
      %1335 = vmatpush2.msra.mxu0 0.0
      %1336 = vmatprep.subr.mxu0 0.0
      %1337 = vmatpush2.msra.mxu0 0.0
      %1338 = vmatprep.subr.mxu0 0.0
      %1339 = vmatpush2.msra.mxu0 0.0
      %1340 = vmatprep.subr.mxu0 0.0
      %1341 = vmatpush2.msra.mxu0 0.0
      %1342 = vmatprep.subr.mxu0 0.0
      %1343 = vmatpush2.msra.mxu0 0.0
      %1344 = vmatprep.subr.mxu0 0.0
      %1345 = vmatpush2.msra.mxu0 0.0
      %1346 = vmatprep.subr.mxu0 0.0
      %1347 = vmatpush2.msra.mxu0 0.0
      %1348 = vmatprep.subr.mxu0 0.0
      %1349 = vmatpush2.msra.mxu0 0.0
      %1350 = vmatprep.subr.mxu0 0.0
      %1351 = vmatpush2.msra.mxu0 0.0
      %1352 = vmatprep.subr.mxu0 0.0
      %1353 = vmatpush2.msra.mxu0 0.0
      %1354 = vmatprep.mubr.f32.mxu0 0.0
      %1355 = vmatmul.mubr.f32.gmra.mxu0 %v436
      %v1356 = vpop.f32.mrf.mxu0
      %v1357 = vadd.f32 %v432, %v1356
      %v1358 = vpop.f32.mrf.mxu0
      %v1359 = vadd.f32 %v432, %v1358
      %1360 = vdwg.mxu0
      %1361 = vmatprep.subr.mxu0 0.0
      %1362 = vmatpush1.msra.mxu0 0.0
      %1363 = vmatprep.subr.mxu0 0.0
      %1364 = vmatpush1.msra.mxu0 0.0
      %1365 = vmatprep.subr.mxu0 0.0
      %1366 = vmatpush1.msra.mxu0 0.0
      %1367 = vmatprep.subr.mxu0 0.0
      %1368 = vmatpush1.msra.mxu0 0.0
      %1369 = vmatprep.subr.mxu0 0.0
      %1370 = vmatpush1.msra.mxu0 0.0
      %1371 = vmatprep.subr.mxu0 0.0
      %1372 = vmatpush1.msra.mxu0 0.0
      %1373 = vmatprep.subr.mxu0 0.0
      %1374 = vmatpush1.msra.mxu0 0.0
      %1375 = vmatprep.subr.mxu0 0.0
      %1376 = vmatpush1.msra.mxu0 0.0
      %1377 = vmatprep.subr.mxu0 %v423
      %1378 = vmatpush1.msra.mxu0 %v422
      %1379 = vmatprep.subr.mxu0 %v391
      %1380 = vmatpush1.msra.mxu0 %v390
      %1381 = vmatprep.subr.mxu0 %v359
      %1382 = vmatpush1.msra.mxu0 %v358
      %1383 = vmatprep.subr.mxu0 %v327
      %1384 = vmatpush1.msra.mxu0 %v326
      %1385 = vmatprep.subr.mxu0 %v295
      %1386 = vmatpush1.msra.mxu0 %v294
      %1387 = vmatprep.subr.mxu0 %v263
      %1388 = vmatpush1.msra.mxu0 %v262
      %1389 = vmatprep.subr.mxu0 %v231
      %1390 = vmatpush1.msra.mxu0 %v230
      %1391 = vmatprep.subr.mxu0 %v199
      %1392 = vmatpush1.msra.mxu0 %v198
      %1393 = vmatprep.subr.mxu0 0.0
      %1394 = vmatpush2.msra.mxu0 0.0
      %1395 = vmatprep.subr.mxu0 0.0
      %1396 = vmatpush2.msra.mxu0 0.0
      %1397 = vmatprep.subr.mxu0 0.0
      %1398 = vmatpush2.msra.mxu0 0.0
      %1399 = vmatprep.subr.mxu0 0.0
      %1400 = vmatpush2.msra.mxu0 0.0
      %1401 = vmatprep.subr.mxu0 0.0
      %1402 = vmatpush2.msra.mxu0 0.0
      %1403 = vmatprep.subr.mxu0 0.0
      %1404 = vmatpush2.msra.mxu0 0.0
      %1405 = vmatprep.subr.mxu0 0.0
      %1406 = vmatpush2.msra.mxu0 0.0
      %1407 = vmatprep.subr.mxu0 0.0
      %1408 = vmatpush2.msra.mxu0 0.0
      %1409 = vmatprep.subr.mxu0 0.0
      %1410 = vmatpush2.msra.mxu0 0.0
      %1411 = vmatprep.subr.mxu0 0.0
      %1412 = vmatpush2.msra.mxu0 0.0
      %1413 = vmatprep.subr.mxu0 0.0
      %1414 = vmatpush2.msra.mxu0 0.0
      %1415 = vmatprep.subr.mxu0 0.0
      %1416 = vmatpush2.msra.mxu0 0.0
      %1417 = vmatprep.subr.mxu0 0.0
      %1418 = vmatpush2.msra.mxu0 0.0
      %1419 = vmatprep.subr.mxu0 0.0
      %1420 = vmatpush2.msra.mxu0 0.0
      %1421 = vmatprep.subr.mxu0 0.0
      %1422 = vmatpush2.msra.mxu0 0.0
      %1423 = vmatprep.subr.mxu0 0.0
      %1424 = vmatpush2.msra.mxu0 0.0
      %1425 = vmatprep.mubr.f32.mxu0 0.0
      %1426 = vmatmul.mubr.f32.gmra.mxu0 %v436
      %v1427 = vpop.f32.mrf.mxu0
      %v1428 = vadd.f32 %v432, %v1427
      %v1429 = vpop.f32.mrf.mxu0
      %v1430 = vadd.f32 %v432, %v1429
      %1431 = vdwg.mxu0
      %1432 = vmatprep.subr.mxu0 0.0
      %1433 = vmatpush1.msra.mxu0 0.0
      %1434 = vmatprep.subr.mxu0 0.0
      %1435 = vmatpush1.msra.mxu0 0.0
      %1436 = vmatprep.subr.mxu0 0.0
      %1437 = vmatpush1.msra.mxu0 0.0
      %1438 = vmatprep.subr.mxu0 0.0
      %1439 = vmatpush1.msra.mxu0 0.0
      %1440 = vmatprep.subr.mxu0 0.0
      %1441 = vmatpush1.msra.mxu0 0.0
      %1442 = vmatprep.subr.mxu0 0.0
      %1443 = vmatpush1.msra.mxu0 0.0
      %1444 = vmatprep.subr.mxu0 0.0
      %1445 = vmatpush1.msra.mxu0 0.0
      %1446 = vmatprep.subr.mxu0 0.0
      %1447 = vmatpush1.msra.mxu0 0.0
      %1448 = vmatprep.subr.mxu0 %v425
      %1449 = vmatpush1.msra.mxu0 %v424
      %1450 = vmatprep.subr.mxu0 %v393
      %1451 = vmatpush1.msra.mxu0 %v392
      %1452 = vmatprep.subr.mxu0 %v361
      %1453 = vmatpush1.msra.mxu0 %v360
      %1454 = vmatprep.subr.mxu0 %v329
      %1455 = vmatpush1.msra.mxu0 %v328
      %1456 = vmatprep.subr.mxu0 %v297
      %1457 = vmatpush1.msra.mxu0 %v296
      %1458 = vmatprep.subr.mxu0 %v265
      %1459 = vmatpush1.msra.mxu0 %v264
      %1460 = vmatprep.subr.mxu0 %v233
      %1461 = vmatpush1.msra.mxu0 %v232
      %1462 = vmatprep.subr.mxu0 %v201
      %1463 = vmatpush1.msra.mxu0 %v200
      %1464 = vmatprep.subr.mxu0 0.0
      %1465 = vmatpush2.msra.mxu0 0.0
      %1466 = vmatprep.subr.mxu0 0.0
      %1467 = vmatpush2.msra.mxu0 0.0
      %1468 = vmatprep.subr.mxu0 0.0
      %1469 = vmatpush2.msra.mxu0 0.0
      %1470 = vmatprep.subr.mxu0 0.0
      %1471 = vmatpush2.msra.mxu0 0.0
      %1472 = vmatprep.subr.mxu0 0.0
      %1473 = vmatpush2.msra.mxu0 0.0
      %1474 = vmatprep.subr.mxu0 0.0
      %1475 = vmatpush2.msra.mxu0 0.0
      %1476 = vmatprep.subr.mxu0 0.0
      %1477 = vmatpush2.msra.mxu0 0.0
      %1478 = vmatprep.subr.mxu0 0.0
      %1479 = vmatpush2.msra.mxu0 0.0
      %1480 = vmatprep.subr.mxu0 0.0
      %1481 = vmatpush2.msra.mxu0 0.0
      %1482 = vmatprep.subr.mxu0 0.0
      %1483 = vmatpush2.msra.mxu0 0.0
      %1484 = vmatprep.subr.mxu0 0.0
      %1485 = vmatpush2.msra.mxu0 0.0
      %1486 = vmatprep.subr.mxu0 0.0
      %1487 = vmatpush2.msra.mxu0 0.0
      %1488 = vmatprep.subr.mxu0 0.0
      %1489 = vmatpush2.msra.mxu0 0.0
      %1490 = vmatprep.subr.mxu0 0.0
      %1491 = vmatpush2.msra.mxu0 0.0
      %1492 = vmatprep.subr.mxu0 0.0
      %1493 = vmatpush2.msra.mxu0 0.0
      %1494 = vmatprep.subr.mxu0 0.0
      %1495 = vmatpush2.msra.mxu0 0.0
      %1496 = vmatprep.mubr.f32.mxu0 0.0
      %1497 = vmatmul.mubr.f32.gmra.mxu0 %v436
      %v1498 = vpop.f32.mrf.mxu0
      %v1499 = vadd.f32 %v432, %v1498
      %v1500 = vpop.f32.mrf.mxu0
      %v1501 = vadd.f32 %v432, %v1500
      %1502 = vdwg.mxu0
      %1503 = vmatprep.subr.mxu0 0.0
      %1504 = vmatpush1.msra.mxu0 0.0
      %1505 = vmatprep.subr.mxu0 0.0
      %1506 = vmatpush1.msra.mxu0 0.0
      %1507 = vmatprep.subr.mxu0 0.0
      %1508 = vmatpush1.msra.mxu0 0.0
      %1509 = vmatprep.subr.mxu0 0.0
      %1510 = vmatpush1.msra.mxu0 0.0
      %1511 = vmatprep.subr.mxu0 0.0
      %1512 = vmatpush1.msra.mxu0 0.0
      %1513 = vmatprep.subr.mxu0 0.0
      %1514 = vmatpush1.msra.mxu0 0.0
      %1515 = vmatprep.subr.mxu0 0.0
      %1516 = vmatpush1.msra.mxu0 0.0
      %1517 = vmatprep.subr.mxu0 0.0
      %1518 = vmatpush1.msra.mxu0 0.0
      %1519 = vmatprep.subr.mxu0 %v427
      %1520 = vmatpush1.msra.mxu0 %v426
      %1521 = vmatprep.subr.mxu0 %v395
      %1522 = vmatpush1.msra.mxu0 %v394
      %1523 = vmatprep.subr.mxu0 %v363
      %1524 = vmatpush1.msra.mxu0 %v362
      %1525 = vmatprep.subr.mxu0 %v331
      %1526 = vmatpush1.msra.mxu0 %v330
      %1527 = vmatprep.subr.mxu0 %v299
      %1528 = vmatpush1.msra.mxu0 %v298
      %1529 = vmatprep.subr.mxu0 %v267
      %1530 = vmatpush1.msra.mxu0 %v266
      %1531 = vmatprep.subr.mxu0 %v235
      %1532 = vmatpush1.msra.mxu0 %v234
      %1533 = vmatprep.subr.mxu0 %v203
      %1534 = vmatpush1.msra.mxu0 %v202
      %1535 = vmatprep.subr.mxu0 0.0
      %1536 = vmatpush2.msra.mxu0 0.0
      %1537 = vmatprep.subr.mxu0 0.0
      %1538 = vmatpush2.msra.mxu0 0.0
      %1539 = vmatprep.subr.mxu0 0.0
      %1540 = vmatpush2.msra.mxu0 0.0
      %1541 = vmatprep.subr.mxu0 0.0
      %1542 = vmatpush2.msra.mxu0 0.0
      %1543 = vmatprep.subr.mxu0 0.0
      %1544 = vmatpush2.msra.mxu0 0.0
      %1545 = vmatprep.subr.mxu0 0.0
      %1546 = vmatpush2.msra.mxu0 0.0
      %1547 = vmatprep.subr.mxu0 0.0
      %1548 = vmatpush2.msra.mxu0 0.0
      %1549 = vmatprep.subr.mxu0 0.0
      %1550 = vmatpush2.msra.mxu0 0.0
      %1551 = vmatprep.subr.mxu0 0.0
      %1552 = vmatpush2.msra.mxu0 0.0
      %1553 = vmatprep.subr.mxu0 0.0
      %1554 = vmatpush2.msra.mxu0 0.0
      %1555 = vmatprep.subr.mxu0 0.0
      %1556 = vmatpush2.msra.mxu0 0.0
      %1557 = vmatprep.subr.mxu0 0.0
      %1558 = vmatpush2.msra.mxu0 0.0
      %1559 = vmatprep.subr.mxu0 0.0
      %1560 = vmatpush2.msra.mxu0 0.0
      %1561 = vmatprep.subr.mxu0 0.0
      %1562 = vmatpush2.msra.mxu0 0.0
      %1563 = vmatprep.subr.mxu0 0.0
      %1564 = vmatpush2.msra.mxu0 0.0
      %1565 = vmatprep.subr.mxu0 0.0
      %1566 = vmatpush2.msra.mxu0 0.0
      %1567 = vmatprep.mubr.f32.mxu0 0.0
      %1568 = vmatmul.mubr.f32.gmra.mxu0 %v436
      %v1569 = vpop.f32.mrf.mxu0
      %v1570 = vadd.f32 %v432, %v1569
      %v1571 = vpop.f32.mrf.mxu0
      %v1572 = vadd.f32 %v432, %v1571
      %1573 = vdwg.mxu0
      %vm1574 = vcmask 1043456
      %v1575 = vsel %vm1574, %v505, 0.0
      %v1576 = vsel %vm1574, %v507, 0.0
      %v1577 = vadd.f32 %v1575, %v1576
      %v1578 = vsel %vm1574, %v576, 0.0
      %v1579 = vadd.f32 %v1577, %v1578
      %v1580 = vsel %vm1574, %v578, 0.0
      %v1581 = vadd.f32 %v1579, %v1580
      %v1582 = vsel %vm1574, %v647, 0.0
      %v1583 = vadd.f32 %v1581, %v1582
      %v1584 = vsel %vm1574, %v649, 0.0
      %v1585 = vadd.f32 %v1583, %v1584
      %v1586 = vsel %vm1574, %v718, 0.0
      %v1587 = vadd.f32 %v1585, %v1586
      %v1588 = vsel %vm1574, %v720, 0.0
      %v1589 = vadd.f32 %v1587, %v1588
      %v1590 = vsel %vm1574, %v789, 0.0
      %v1591 = vadd.f32 %v1589, %v1590
      %v1592 = vsel %vm1574, %v791, 0.0
      %v1593 = vadd.f32 %v1591, %v1592
      %v1594 = vsel %vm1574, %v860, 0.0
      %v1595 = vadd.f32 %v1593, %v1594
      %v1596 = vsel %vm1574, %v862, 0.0
      %v1597 = vadd.f32 %v1595, %v1596
      %v1598 = vsel %vm1574, %v931, 0.0
      %v1599 = vadd.f32 %v1597, %v1598
      %v1600 = vsel %vm1574, %v933, 0.0
      %v1601 = vadd.f32 %v1599, %v1600
      %v1602 = vsel %vm1574, %v1002, 0.0
      %v1603 = vadd.f32 %v1601, %v1602
      %v1604 = vsel %vm1574, %v1004, 0.0
      %v1605 = vadd.f32 %v1603, %v1604
      %v1606 = vsel %vm1574, %v1073, 0.0
      %v1607 = vadd.f32 %v1605, %v1606
      %v1608 = vsel %vm1574, %v1075, 0.0
      %v1609 = vadd.f32 %v1607, %v1608
      %v1610 = vsel %vm1574, %v1144, 0.0
      %v1611 = vadd.f32 %v1609, %v1610
      %v1612 = vsel %vm1574, %v1146, 0.0
      %v1613 = vadd.f32 %v1611, %v1612
      %v1614 = vsel %vm1574, %v1215, 0.0
      %v1615 = vadd.f32 %v1613, %v1614
      %v1616 = vsel %vm1574, %v1217, 0.0
      %v1617 = vadd.f32 %v1615, %v1616
      %v1618 = vsel %vm1574, %v1286, 0.0
      %v1619 = vadd.f32 %v1617, %v1618
      %v1620 = vsel %vm1574, %v1288, 0.0
      %v1621 = vadd.f32 %v1619, %v1620
      %v1622 = vsel %vm1574, %v1357, 0.0
      %v1623 = vadd.f32 %v1621, %v1622
      %v1624 = vsel %vm1574, %v1359, 0.0
      %v1625 = vadd.f32 %v1623, %v1624
      %v1626 = vsel %vm1574, %v1428, 0.0
      %v1627 = vadd.f32 %v1625, %v1626
      %v1628 = vsel %vm1574, %v1430, 0.0
      %v1629 = vadd.f32 %v1627, %v1628
      %v1630 = vsel %vm1574, %v1499, 0.0
      %v1631 = vadd.f32 %v1629, %v1630
      %v1632 = vsel %vm1574, %v1501, 0.0
      %v1633 = vadd.f32 %v1631, %v1632
      %v1634 = vsel %vm1574, %v1570, 0.0
      %v1635 = vadd.f32 %v1633, %v1634
      %v1636 = vsel %vm1574, %v1572, 0.0
      %v1637 = vadd.f32 %v1635, %v1636
      %1638 = vadd.xlane.f32.xlu0 %v1637
      %v1639 = vpop.xlane.xlu0 %1638
      %v1640 = vmul.f32 %v1639, 0.00024414063
      %v1641 = vmul.f32 %v505, %v505
      %v1642 = vmul.f32 %v507, %v507
      %v1643 = vmul.f32 %v576, %v576
      %v1644 = vmul.f32 %v578, %v578
      %v1645 = vmul.f32 %v647, %v647
      %v1646 = vmul.f32 %v649, %v649
      %v1647 = vmul.f32 %v718, %v718
      %v1648 = vmul.f32 %v720, %v720
      %v1649 = vmul.f32 %v789, %v789
      %v1650 = vmul.f32 %v791, %v791
      %v1651 = vmul.f32 %v860, %v860
      %v1652 = vmul.f32 %v862, %v862
      %v1653 = vmul.f32 %v931, %v931
      %v1654 = vmul.f32 %v933, %v933
      %v1655 = vmul.f32 %v1002, %v1002
      %v1656 = vmul.f32 %v1004, %v1004
      %v1657 = vmul.f32 %v1073, %v1073
      %v1658 = vmul.f32 %v1075, %v1075
      %v1659 = vmul.f32 %v1144, %v1144
      %v1660 = vmul.f32 %v1146, %v1146
      %v1661 = vmul.f32 %v1215, %v1215
      %v1662 = vmul.f32 %v1217, %v1217
      %v1663 = vmul.f32 %v1286, %v1286
      %v1664 = vmul.f32 %v1288, %v1288
      %v1665 = vmul.f32 %v1357, %v1357
      %v1666 = vmul.f32 %v1359, %v1359
      %v1667 = vmul.f32 %v1428, %v1428
      %v1668 = vmul.f32 %v1430, %v1430
      %v1669 = vmul.f32 %v1499, %v1499
      %v1670 = vmul.f32 %v1501, %v1501
      %v1671 = vmul.f32 %v1570, %v1570
      %v1672 = vmul.f32 %v1572, %v1572
      %v1673 = vsel %vm1574, %v1641, 0.0
      %v1674 = vsel %vm1574, %v1642, 0.0
      %v1675 = vadd.f32 %v1673, %v1674
      %v1676 = vsel %vm1574, %v1643, 0.0
      %v1677 = vadd.f32 %v1675, %v1676
      %v1678 = vsel %vm1574, %v1644, 0.0
      %v1679 = vadd.f32 %v1677, %v1678
      %v1680 = vsel %vm1574, %v1645, 0.0
      %v1681 = vadd.f32 %v1679, %v1680
      %v1682 = vsel %vm1574, %v1646, 0.0
      %v1683 = vadd.f32 %v1681, %v1682
      %v1684 = vsel %vm1574, %v1647, 0.0
      %v1685 = vadd.f32 %v1683, %v1684
      %v1686 = vsel %vm1574, %v1648, 0.0
      %v1687 = vadd.f32 %v1685, %v1686
      %v1688 = vsel %vm1574, %v1649, 0.0
      %v1689 = vadd.f32 %v1687, %v1688
      %v1690 = vsel %vm1574, %v1650, 0.0
      %v1691 = vadd.f32 %v1689, %v1690
      %v1692 = vsel %vm1574, %v1651, 0.0
      %v1693 = vadd.f32 %v1691, %v1692
      %v1694 = vsel %vm1574, %v1652, 0.0
      %v1695 = vadd.f32 %v1693, %v1694
      %v1696 = vsel %vm1574, %v1653, 0.0
      %v1697 = vadd.f32 %v1695, %v1696
      %v1698 = vsel %vm1574, %v1654, 0.0
      %v1699 = vadd.f32 %v1697, %v1698
      %v1700 = vsel %vm1574, %v1655, 0.0
      %v1701 = vadd.f32 %v1699, %v1700
      %v1702 = vsel %vm1574, %v1656, 0.0
      %v1703 = vadd.f32 %v1701, %v1702
      %v1704 = vsel %vm1574, %v1657, 0.0
      %v1705 = vadd.f32 %v1703, %v1704
      %v1706 = vsel %vm1574, %v1658, 0.0
      %v1707 = vadd.f32 %v1705, %v1706
      %v1708 = vsel %vm1574, %v1659, 0.0
      %v1709 = vadd.f32 %v1707, %v1708
      %v1710 = vsel %vm1574, %v1660, 0.0
      %v1711 = vadd.f32 %v1709, %v1710
      %v1712 = vsel %vm1574, %v1661, 0.0
      %v1713 = vadd.f32 %v1711, %v1712
      %v1714 = vsel %vm1574, %v1662, 0.0
      %v1715 = vadd.f32 %v1713, %v1714
      %v1716 = vsel %vm1574, %v1663, 0.0
      %v1717 = vadd.f32 %v1715, %v1716
      %v1718 = vsel %vm1574, %v1664, 0.0
      %v1719 = vadd.f32 %v1717, %v1718
      %v1720 = vsel %vm1574, %v1665, 0.0
      %v1721 = vadd.f32 %v1719, %v1720
      %v1722 = vsel %vm1574, %v1666, 0.0
      %v1723 = vadd.f32 %v1721, %v1722
      %v1724 = vsel %vm1574, %v1667, 0.0
      %v1725 = vadd.f32 %v1723, %v1724
      %v1726 = vsel %vm1574, %v1668, 0.0
      %v1727 = vadd.f32 %v1725, %v1726
      %v1728 = vsel %vm1574, %v1669, 0.0
      %v1729 = vadd.f32 %v1727, %v1728
      %v1730 = vsel %vm1574, %v1670, 0.0
      %v1731 = vadd.f32 %v1729, %v1730
      %v1732 = vsel %vm1574, %v1671, 0.0
      %v1733 = vadd.f32 %v1731, %v1732
      %v1734 = vsel %vm1574, %v1672, 0.0
      %v1735 = vadd.f32 %v1733, %v1734
      %1736 = vadd.xlane.f32.xlu0 %v1735
      %v1737 = vpop.xlane.xlu0 %1736
      %v1738 = vmul.f32 %v1737, 0.00024414063
      %v1739 = vmul.f32 %v1640, %v1640
      %v1740 = vsub.f32 %v1738, %v1739
      %v1741 = vsub.f32 %v505, %v1640
      %v1742 = vsub.f32 %v507, %v1640
      %v1743 = vsub.f32 %v576, %v1640
      %v1744 = vsub.f32 %v578, %v1640
      %v1745 = vsub.f32 %v647, %v1640
      %v1746 = vsub.f32 %v649, %v1640
      %v1747 = vsub.f32 %v718, %v1640
      %v1748 = vsub.f32 %v720, %v1640
      %v1749 = vsub.f32 %v789, %v1640
      %v1750 = vsub.f32 %v791, %v1640
      %v1751 = vsub.f32 %v860, %v1640
      %v1752 = vsub.f32 %v862, %v1640
      %v1753 = vsub.f32 %v931, %v1640
      %v1754 = vsub.f32 %v933, %v1640
      %v1755 = vsub.f32 %v1002, %v1640
      %v1756 = vsub.f32 %v1004, %v1640
      %v1757 = vsub.f32 %v1073, %v1640
      %v1758 = vsub.f32 %v1075, %v1640
      %v1759 = vsub.f32 %v1144, %v1640
      %v1760 = vsub.f32 %v1146, %v1640
      %v1761 = vsub.f32 %v1215, %v1640
      %v1762 = vsub.f32 %v1217, %v1640
      %v1763 = vsub.f32 %v1286, %v1640
      %v1764 = vsub.f32 %v1288, %v1640
      %v1765 = vsub.f32 %v1357, %v1640
      %v1766 = vsub.f32 %v1359, %v1640
      %v1767 = vsub.f32 %v1428, %v1640
      %v1768 = vsub.f32 %v1430, %v1640
      %v1769 = vsub.f32 %v1499, %v1640
      %v1770 = vsub.f32 %v1501, %v1640
      %v1771 = vsub.f32 %v1570, %v1640
      %v1772 = vsub.f32 %v1572, %v1640
      %v1773 = vadd.f32 %v1740, 1e-05
      %v1774 = vrsqrt.pop %v1773
      %v1775 = vmul.f32 %v1741, %v1774
      %v1776 = vmul.f32 %v1742, %v1774
      %v1777 = vmul.f32 %v1743, %v1774
      %v1778 = vmul.f32 %v1744, %v1774
      %v1779 = vmul.f32 %v1745, %v1774
      %v1780 = vmul.f32 %v1746, %v1774
      %v1781 = vmul.f32 %v1747, %v1774
      %v1782 = vmul.f32 %v1748, %v1774
      %v1783 = vmul.f32 %v1749, %v1774
      %v1784 = vmul.f32 %v1750, %v1774
      %v1785 = vmul.f32 %v1751, %v1774
      %v1786 = vmul.f32 %v1752, %v1774
      %v1787 = vmul.f32 %v1753, %v1774
      %v1788 = vmul.f32 %v1754, %v1774
      %v1789 = vmul.f32 %v1755, %v1774
      %v1790 = vmul.f32 %v1756, %v1774
      %v1791 = vmul.f32 %v1757, %v1774
      %v1792 = vmul.f32 %v1758, %v1774
      %v1793 = vmul.f32 %v1759, %v1774
      %v1794 = vmul.f32 %v1760, %v1774
      %v1795 = vmul.f32 %v1761, %v1774
      %v1796 = vmul.f32 %v1762, %v1774
      %v1797 = vmul.f32 %v1763, %v1774
      %v1798 = vmul.f32 %v1764, %v1774
      %v1799 = vmul.f32 %v1765, %v1774
      %v1800 = vmul.f32 %v1766, %v1774
      %v1801 = vmul.f32 %v1767, %v1774
      %v1802 = vmul.f32 %v1768, %v1774
      %v1803 = vmul.f32 %v1769, %v1774
      %v1804 = vmul.f32 %v1770, %v1774
      %v1805 = vmul.f32 %v1771, %v1774
      %v1806 = vmul.f32 %v1772, %v1774
      %vm1807 = vcmp.ge.f32.partialorder %v1775, 0.0
      %vm1808 = vcmp.ge.f32.partialorder %v1776, 0.0
      %vm1809 = vcmp.ge.f32.partialorder %v1777, 0.0
      %vm1810 = vcmp.ge.f32.partialorder %v1778, 0.0
      %vm1811 = vcmp.ge.f32.partialorder %v1779, 0.0
      %vm1812 = vcmp.ge.f32.partialorder %v1780, 0.0
      %vm1813 = vcmp.ge.f32.partialorder %v1781, 0.0
      %vm1814 = vcmp.ge.f32.partialorder %v1782, 0.0
      %vm1815 = vcmp.ge.f32.partialorder %v1783, 0.0
      %vm1816 = vcmp.ge.f32.partialorder %v1784, 0.0
      %vm1817 = vcmp.ge.f32.partialorder %v1785, 0.0
      %vm1818 = vcmp.ge.f32.partialorder %v1786, 0.0
      %vm1819 = vcmp.ge.f32.partialorder %v1787, 0.0
      %vm1820 = vcmp.ge.f32.partialorder %v1788, 0.0
      %vm1821 = vcmp.ge.f32.partialorder %v1789, 0.0
      %vm1822 = vcmp.ge.f32.partialorder %v1790, 0.0
      %vm1823 = vcmp.ge.f32.partialorder %v1791, 0.0
      %vm1824 = vcmp.ge.f32.partialorder %v1792, 0.0
      %vm1825 = vcmp.ge.f32.partialorder %v1793, 0.0
      %vm1826 = vcmp.ge.f32.partialorder %v1794, 0.0
      %vm1827 = vcmp.ge.f32.partialorder %v1795, 0.0
      %vm1828 = vcmp.ge.f32.partialorder %v1796, 0.0
      %vm1829 = vcmp.ge.f32.partialorder %v1797, 0.0
      %vm1830 = vcmp.ge.f32.partialorder %v1798, 0.0
      %vm1831 = vcmp.ge.f32.partialorder %v1799, 0.0
      %vm1832 = vcmp.ge.f32.partialorder %v1800, 0.0
      %vm1833 = vcmp.ge.f32.partialorder %v1801, 0.0
      %vm1834 = vcmp.ge.f32.partialorder %v1802, 0.0
      %vm1835 = vcmp.ge.f32.partialorder %v1803, 0.0
      %vm1836 = vcmp.ge.f32.partialorder %v1804, 0.0
      %vm1837 = vcmp.ge.f32.partialorder %v1805, 0.0
      %vm1838 = vcmp.ge.f32.partialorder %v1806, 0.0
      %v1839 = vmul.f32 %v1775, 0.01
      %v1840 = vmul.f32 %v1776, 0.01
      %v1841 = vmul.f32 %v1777, 0.01
      %v1842 = vmul.f32 %v1778, 0.01
      %v1843 = vmul.f32 %v1779, 0.01
      %v1844 = vmul.f32 %v1780, 0.01
      %v1845 = vmul.f32 %v1781, 0.01
      %v1846 = vmul.f32 %v1782, 0.01
      %v1847 = vmul.f32 %v1783, 0.01
      %v1848 = vmul.f32 %v1784, 0.01
      %v1849 = vmul.f32 %v1785, 0.01
      %v1850 = vmul.f32 %v1786, 0.01
      %v1851 = vmul.f32 %v1787, 0.01
      %v1852 = vmul.f32 %v1788, 0.01
      %v1853 = vmul.f32 %v1789, 0.01
      %v1854 = vmul.f32 %v1790, 0.01
      %v1855 = vmul.f32 %v1791, 0.01
      %v1856 = vmul.f32 %v1792, 0.01
      %v1857 = vmul.f32 %v1793, 0.01
      %v1858 = vmul.f32 %v1794, 0.01
      %v1859 = vmul.f32 %v1795, 0.01
      %v1860 = vmul.f32 %v1796, 0.01
      %v1861 = vmul.f32 %v1797, 0.01
      %v1862 = vmul.f32 %v1798, 0.01
      %v1863 = vmul.f32 %v1799, 0.01
      %v1864 = vmul.f32 %v1800, 0.01
      %v1865 = vmul.f32 %v1801, 0.01
      %v1866 = vmul.f32 %v1802, 0.01
      %v1867 = vmul.f32 %v1803, 0.01
      %v1868 = vmul.f32 %v1804, 0.01
      %v1869 = vmul.f32 %v1805, 0.01
      %v1870 = vmul.f32 %v1806, 0.01
      %v1871 = vsel %vm1807, %v1775, %v1839
      %v1872 = vsel %vm1808, %v1776, %v1840
      %v1873 = vsel %vm1809, %v1777, %v1841
      %v1874 = vsel %vm1810, %v1778, %v1842
      %v1875 = vsel %vm1811, %v1779, %v1843
      %v1876 = vsel %vm1812, %v1780, %v1844
      %v1877 = vsel %vm1813, %v1781, %v1845
      %v1878 = vsel %vm1814, %v1782, %v1846
      %v1879 = vsel %vm1815, %v1783, %v1847
      %v1880 = vsel %vm1816, %v1784, %v1848
      %v1881 = vsel %vm1817, %v1785, %v1849
      %v1882 = vsel %vm1818, %v1786, %v1850
      %v1883 = vsel %vm1819, %v1787, %v1851
      %v1884 = vsel %vm1820, %v1788, %v1852
      %v1885 = vsel %vm1821, %v1789, %v1853
      %v1886 = vsel %vm1822, %v1790, %v1854
      %v1887 = vsel %vm1823, %v1791, %v1855
      %v1888 = vsel %vm1824, %v1792, %v1856
      %v1889 = vsel %vm1825, %v1793, %v1857
      %v1890 = vsel %vm1826, %v1794, %v1858
      %v1891 = vsel %vm1827, %v1795, %v1859
      %v1892 = vsel %vm1828, %v1796, %v1860
      %v1893 = vsel %vm1829, %v1797, %v1861
      %v1894 = vsel %vm1830, %v1798, %v1862
      %v1895 = vsel %vm1831, %v1799, %v1863
      %v1896 = vsel %vm1832, %v1800, %v1864
      %v1897 = vsel %vm1833, %v1801, %v1865
      %v1898 = vsel %vm1834, %v1802, %v1866
      %v1899 = vsel %vm1835, %v1803, %v1867
      %v1900 = vsel %vm1836, %v1804, %v1868
      %v1901 = vsel %vm1837, %v1805, %v1869
      %v1902 = vsel %vm1838, %v1806, %v1870
      %v1935 = vcombine.low %v1871, %v1872
      %v1936 = vcombine.low %v1873, %v1874
      %v1937 = vcombine.low %v1875, %v1876
      %v1938 = vcombine.low %v1877, %v1878
      %v1939 = vcombine.low %v1879, %v1880
      %v1940 = vcombine.low %v1881, %v1882
      %v1941 = vcombine.low %v1883, %v1884
      %v1942 = vcombine.low %v1885, %v1886
      %v1943 = vcombine.low %v1887, %v1888
      %v1944 = vcombine.low %v1889, %v1890
      %v1945 = vcombine.low %v1891, %v1892
      %v1946 = vcombine.low %v1893, %v1894
      %v1947 = vcombine.low %v1895, %v1896
      %v1948 = vcombine.low %v1897, %v1898
      %v1949 = vcombine.low %v1899, %v1900
      %v1950 = vcombine.low %v1901, %v1902
      %1967 = vst [vmem:[%s170] sm:$0xff] %v1935
      %1968 = vst [vmem:[%s170 + $0x8] sm:$0xff] %v1936
      %1969 = vst [vmem:[%s170 + $0x10] sm:$0xff] %v1937
      %1970 = vst [vmem:[%s170 + $0x18] sm:$0xff] %v1938
      %1971 = vst [vmem:[%s170 + $0x20] sm:$0xff] %v1939
      %1972 = vst [vmem:[%s170 + $0x28] sm:$0xff] %v1940
      %1973 = vst [vmem:[%s170 + $0x30] sm:$0xff] %v1941
      %1974 = vst [vmem:[%s170 + $0x38] sm:$0xff] %v1942
      %1975 = vst [vmem:[%s170 + $0x40] sm:$0xff] %v1943
      %1976 = vst [vmem:[%s170 + $0x48] sm:$0xff] %v1944
      %1977 = vst [vmem:[%s170 + $0x50] sm:$0xff] %v1945
      %1978 = vst [vmem:[%s170 + $0x58] sm:$0xff] %v1946
      %1979 = vst [vmem:[%s170 + $0x60] sm:$0xff] %v1947
      %1980 = vst [vmem:[%s170 + $0x68] sm:$0xff] %v1948
      %1981 = vst [vmem:[%s170 + $0x70] sm:$0xff] %v1949
      %1982 = vst [vmem:[%s170 + $0x78] sm:$0xff] %v1950
      %p1983 = scmp.lt.s32.totalorder %s14, 1
      %s1984 = scalar_select %p1983, %s14, 1
      %s1985 = smul.addr %s1984, 32
      %s1986 = smul.addr %s1985, 4
      %s1987 = scalar_lea.vmem %s3, %s1986
      // Predicated region
      $region33: #{classifier_forward.5} parent=31 // pred_check
        %p1988 = pneg %p100
      $region34: #{classifier_forward.5} parent=31 // pred_check_branch
        %1990 = sbr.rel (%p1988) target = $region36
      $region35: #{classifier_forward.5} parent=31 // pred_region
        _
      $region36: #{classifier_forward.5} parent=31 // pred_fallthru
        _
    $region32: #{classifier_forward.5} parent=5 // pred_fallthru
      _
    %p1991 = scmp.le.s32.totalorder 2, %s9
    // Predicated region
    $region37: #{classifier_forward.5} parent=5 // pred_check
      %p1992 = pneg %p1991
    $region38: #{classifier_forward.5} parent=5 // pred_check_branch
      %1994 = sbr.rel (%p1992) target = $region40
    $region39: #{classifier_forward.5} parent=5 // pred_region
      %s1995 = ssub.s32 %s9, 2
      // Predicated region
      $region41: #{classifier_forward.5} parent=39 // pred_check
        %p1996 = pneg %p106
      $region42: #{classifier_forward.5} parent=39 // pred_check_branch
        %1998 = sbr.rel (%p1996) target = $region44
      $region43: #{classifier_forward.5} parent=39 // pred_region
        %p1999 = scmp.lt.s32.totalorder %s15, 1
        %s2000 = scalar_select %p1999, %s15, 1
        %s2001 = smul.addr %s2000, 32
        %s2002 = smul.addr %s2001, 4
        %s2003 = scalar_lea.vmem %s3, %s2002
      $region44: #{classifier_forward.5} parent=39 // pred_fallthru
        _
    $region40: #{classifier_forward.5} parent=5 // pred_fallthru
      _
  $region6: #{classifier_forward.5} parent=0 // loop_footer
    %s13 = sadd.s32 1, %s9
  $region7: #{classifier_forward.5} parent=0 // loop_footer_branch
    %8 = sbr.rel target = $region3
  $region8: #{classifier_forward.5} parent=0 // loop_exit
    _

// kernel: classifier_forward.6
$region0: #{classifier_forward.6}
  #allocation0 [shape = 'u32[]', space=smem, size = 0x4, offset = 0x4, fixed_abs, tag = 'smem constant byte address 0x4 - core index']
  #allocation1 [shape = 'u32[144,128]{1,0:T(1,128)}', space=vmem, size = 0x12000, scoped, tag = 'internal scratch']
  %s0 = inlined_call_operand.vmem [shape: f32[2,256,512], index: 0, kind: input, shape index: {}]
  %s1 = inlined_call_operand.vmem [shape: f32[8,256], index: 1, kind: input, shape index: {}]
  %s2 = inlined_call_operand.vmem [shape: f32[8,1], index: 2, kind: input, shape index: {}]
  %s3 = inlined_call_operand.vmem [shape: f32[2,8,512], index: 3, kind: output, shape index: {}]
  %s4 = sld [smem:[#allocation0]]
  $region45: #{classifier_forward.6} parent=0
    _
  %s6 = ssub.s32 1, %s4
  %s7 = scalar_select 0, %s6, %s4
  loop: start=0, step=1, limit=4
  $region2: #{classifier_forward.6} parent=0 // loop_pre_header
    _
  $region3: #{classifier_forward.6} parent=0 // loop_header
    %s9 = sphi 0, %s13
    %p10 = scmp.ge.s32.totalorder %s9, 4
    %s19 = sphi 0, %s21
    %s22 = sphi 0, %s19
    %s23 = sphi 0, %s22
    %s39 = sphi 0, %s23
    %s43 = sphi 0, %s43
    %s45 = sphi 0, %s43
    %s46 = sphi 0, %s45
    %s60 = sphi 0, %s46
    %s64 = sphi 0, %s64
    %s66 = sphi 0, %s64
    %s67 = sphi 0, %s66
    %s81 = sphi 0, %s67
    %s87 = sphi 0, %s89
    %s90 = sphi 0, %s87
    %s91 = sphi 0, %s90
    %s107 = sphi 0, %s91
  $region4: #{classifier_forward.6} parent=0 // loop_header_branch
    %12 = sbr.rel (%p10) target = $region8
  $region5: #{classifier_forward.6} parent=0 // loop_body
    %s14 = ssub.s32 %s9, 1
    %s15 = ssub.s32 %s9, 2
    %s16 = sadd.s32 %s9, 1
    %s17 = ssub.s32 %s9, %s16
    %p18 = scmp.eq.s32.totalorder %s17, 0
    %s20 = sadd.s32 %s19, 1
    %s21 = scalar_select %p18, %s19, %s20
    %p24 = pneg %p18
    %p25 = scmp.eq.s32.totalorder %s9, 1
    %p26 = por %p24, %p25
    %p27 = scmp.ne.s32.totalorder %s19, %s22
    %p28 = scmp.eq.s32.totalorder %s9, 0
    %p29 = por %p27, %p28
    %p30 = scmp.ne.s32.totalorder %s19, %s22
    %p31 = scmp.eq.s32.totalorder %s14, 1
    %p32 = por %p30, %p31
    %p33 = scmp.ne.s32.totalorder %s22, %s23
    %p34 = scmp.eq.s32.totalorder %s14, 0
    %p35 = por %p33, %p34
    %p36 = scmp.ne.s32.totalorder %s22, %s23
    %p37 = scmp.eq.s32.totalorder %s15, 1
    %p38 = por %p36, %p37
    %p40 = scmp.ne.s32.totalorder %s23, %s39
    %p41 = scmp.eq.s32.totalorder %s15, 0
    %p42 = por %p40, %p41
    %s44 = sadd.s32 %s43, 1
    %p47 = scmp.eq.s32.totalorder %s9, 1
    %p48 = scmp.ne.s32.totalorder %s43, %s45
    %p49 = scmp.eq.s32.totalorder %s9, 0
    %p50 = por %p48, %p49
    %p51 = scmp.ne.s32.totalorder %s43, %s45
    %p52 = scmp.eq.s32.totalorder %s14, 1
    %p53 = por %p51, %p52
    %p54 = scmp.ne.s32.totalorder %s45, %s46
    %p55 = scmp.eq.s32.totalorder %s14, 0
    %p56 = por %p54, %p55
    %p57 = scmp.ne.s32.totalorder %s45, %s46
    %p58 = scmp.eq.s32.totalorder %s15, 1
    %p59 = por %p57, %p58
    %p61 = scmp.ne.s32.totalorder %s46, %s60
    %p62 = scmp.eq.s32.totalorder %s15, 0
    %p63 = por %p61, %p62
    %s65 = sadd.s32 %s64, 1
    %p68 = scmp.eq.s32.totalorder %s9, 1
    %p69 = scmp.ne.s32.totalorder %s64, %s66
    %p70 = scmp.eq.s32.totalorder %s9, 0
    %p71 = por %p69, %p70
    %p72 = scmp.ne.s32.totalorder %s64, %s66
    %p73 = scmp.eq.s32.totalorder %s14, 1
    %p74 = por %p72, %p73
    %p75 = scmp.ne.s32.totalorder %s66, %s67
    %p76 = scmp.eq.s32.totalorder %s14, 0
    %p77 = por %p75, %p76
    %p78 = scmp.ne.s32.totalorder %s66, %s67
    %p79 = scmp.eq.s32.totalorder %s15, 1
    %p80 = por %p78, %p79
    %p82 = scmp.ne.s32.totalorder %s67, %s81
    %p83 = scmp.eq.s32.totalorder %s15, 0
    %p84 = por %p82, %p83
    %s85 = ssub.s32 %s9, %s16
    %p86 = scmp.eq.s32.totalorder %s85, 0
    %s88 = sadd.s32 %s87, 1
    %s89 = scalar_select %p86, %s87, %s88
    %p92 = pneg %p86
    %p93 = scmp.eq.s32.totalorder %s9, 1
    %p94 = por %p92, %p93
    %p95 = scmp.ne.s32.totalorder %s87, %s90
    %p96 = scmp.eq.s32.totalorder %s9, 0
    %p97 = por %p95, %p96
    %p98 = scmp.ne.s32.totalorder %s87, %s90
    %p99 = scmp.eq.s32.totalorder %s14, 1
    %p100 = por %p98, %p99
    %p101 = scmp.ne.s32.totalorder %s90, %s91
    %p102 = scmp.eq.s32.totalorder %s14, 0
    %p103 = por %p101, %p102
    %p104 = scmp.ne.s32.totalorder %s90, %s91
    %p105 = scmp.eq.s32.totalorder %s15, 1
    %p106 = por %p104, %p105
    %p108 = scmp.ne.s32.totalorder %s91, %s107
    %p109 = scmp.eq.s32.totalorder %s15, 0
    %p110 = por %p108, %p109
    %p111 = scmp.le.s32.totalorder 1, %s9
    %p112 = scmp.lt.s32.totalorder %s9, 3
    %p113 = pnand %p111, %p112
    %p114 = pneg %p113
    // Predicated region
    $region9: #{classifier_forward.6} parent=5 // pred_check
      _
    $region10: #{classifier_forward.6} parent=5 // pred_check_branch
      %116 = sbr.rel (%p113) target = $region12
    $region11: #{classifier_forward.6} parent=5 // pred_region
      %s117 = ssub.s32 %s9, 1
      // Predicated region
      $region13: #{classifier_forward.6} parent=11 // pred_check
        %p118 = pneg %p56
      $region14: #{classifier_forward.6} parent=11 // pred_check_branch
        %120 = sbr.rel (%p118) target = $region16
      $region15: #{classifier_forward.6} parent=11 // pred_region
        _
      $region16: #{classifier_forward.6} parent=11 // pred_fallthru
        _
      // Predicated region
      $region17: #{classifier_forward.6} parent=11 // pred_check
        %p121 = pneg %p77
      $region18: #{classifier_forward.6} parent=11 // pred_check_branch
        %123 = sbr.rel (%p121) target = $region20
      $region19: #{classifier_forward.6} parent=11 // pred_region
        _
      $region20: #{classifier_forward.6} parent=11 // pred_fallthru
        _
    $region12: #{classifier_forward.6} parent=5 // pred_fallthru
      _
    %p124 = scmp.lt.s32.totalorder %s9, 2
    // Predicated region
    $region21: #{classifier_forward.6} parent=5 // pred_check
      %p125 = pneg %p124
    $region22: #{classifier_forward.6} parent=5 // pred_check_branch
      %127 = sbr.rel (%p125) target = $region24
    $region23: #{classifier_forward.6} parent=5 // pred_region
      // Predicated region
      $region25: #{classifier_forward.6} parent=23 // pred_check
        %p128 = pneg %p29
      $region26: #{classifier_forward.6} parent=23 // pred_check_branch
        %130 = sbr.rel (%p128) target = $region28
      $region27: #{classifier_forward.6} parent=23 // pred_region
        %p131 = scmp.lt.s32.totalorder %s9, 1
        %s132 = scalar_select %p131, %s9, 1
        %s133 = smul.addr %s132, 128
        %s134 = smul.addr %s133, 8
        %s135 = scalar_lea.vmem %s0, %s134
      $region28: #{classifier_forward.6} parent=23 // pred_fallthru
        _
    $region24: #{classifier_forward.6} parent=5 // pred_fallthru
      _
    %p136 = scmp.le.s32.totalorder 1, %s9
    %p137 = scmp.lt.s32.totalorder %s9, 3
    %p138 = pnand %p136, %p137
    %p139 = pneg %p138
    // Predicated region
    $region29: #{classifier_forward.6} parent=5 // pred_check
      _
    $region30: #{classifier_forward.6} parent=5 // pred_check_branch
      %141 = sbr.rel (%p138) target = $region32
    $region31: #{classifier_forward.6} parent=5 // pred_region
      %s142 = ssub.s32 %s9, 1
      %p143 = scmp.lt.s32.totalorder %s14, 1
      %s144 = scalar_select %p143, %s14, 1
      %s145 = smul.addr %s144, 128
      %s146 = smul.addr %s145, 8
      %s147 = scalar_lea.vmem %s0, %s146
      %p148 = pneg %p35
      %p149 = pneg %p32
      %p150 = pneg %p56
      %p151 = pneg %p53
      %p152 = pneg %p77
      %p153 = pneg %p74
      %p154 = pneg %p103
      %p155 = pneg %p100
      %p156 = scmp.lt.s32.totalorder %s14, 1
      %s157 = scalar_select %p156, %s14, 1
      %s158 = smul.addr %s157, 4
      %s159 = smul.addr %s158, 8
      %s160 = scalar_lea.vmem %s3, %s159
      %p161 = scmp.lt.s32.totalorder %s14, 1
      %s162 = scalar_select %p161, %s14, 1
      %s163 = smul.addr %s162, 128
      %s164 = smul.addr %s163, 8
      %s165 = scalar_lea.vmem %s0, %s164
      %p166 = scmp.lt.s32.totalorder %s14, 1
      %s167 = scalar_select %p166, %s14, 1
      %s168 = smul.addr %s167, 4
      %s169 = smul.addr %s168, 8
      %s170 = scalar_lea.vmem %s3, %s169
      %v171 = vld [vmem:[%s1] sm:$0xff]
      %v172 = vld [vmem:[%s1 + $0x8] sm:$0xff]
      %v173 = vld [vmem:[%s165] sm:$0xff]
      %v174 = vld [vmem:[%s165 + $0x8] sm:$0xff]
      %v175 = vld [vmem:[%s165 + $0x10] sm:$0xff]
      %v176 = vld [vmem:[%s165 + $0x18] sm:$0xff]
      %v177 = vld [vmem:[%s165 + $0x20] sm:$0xff]
      %v178 = vld [vmem:[%s165 + $0x28] sm:$0xff]
      %v179 = vld [vmem:[%s165 + $0x30] sm:$0xff]
      %v180 = vld [vmem:[%s165 + $0x38] sm:$0xff]
      %v181 = vld [vmem:[%s165 + $0x40] sm:$0xff]
      %v182 = vld [vmem:[%s165 + $0x48] sm:$0xff]
      %v183 = vld [vmem:[%s165 + $0x50] sm:$0xff]
      %v184 = vld [vmem:[%s165 + $0x58] sm:$0xff]
      %v185 = vld [vmem:[%s165 + $0x60] sm:$0xff]
      %v186 = vld [vmem:[%s165 + $0x68] sm:$0xff]
      %v187 = vld [vmem:[%s165 + $0x70] sm:$0xff]
      %v188 = vld [vmem:[%s165 + $0x78] sm:$0xff]
      %v189 = vld [vmem:[%s165 + $0x80] sm:$0xff]
      %v190 = vld [vmem:[%s165 + $0x88] sm:$0xff]
      %v191 = vld [vmem:[%s165 + $0x90] sm:$0xff]
      %v192 = vld [vmem:[%s165 + $0x98] sm:$0xff]
      %v193 = vld [vmem:[%s165 + $0xa0] sm:$0xff]
      %v194 = vld [vmem:[%s165 + $0xa8] sm:$0xff]
      %v195 = vld [vmem:[%s165 + $0xb0] sm:$0xff]
      %v196 = vld [vmem:[%s165 + $0xb8] sm:$0xff]
      %v197 = vld [vmem:[%s165 + $0xc0] sm:$0xff]
      %v198 = vld [vmem:[%s165 + $0xc8] sm:$0xff]
      %v199 = vld [vmem:[%s165 + $0xd0] sm:$0xff]
      %v200 = vld [vmem:[%s165 + $0xd8] sm:$0xff]
      %v201 = vld [vmem:[%s165 + $0xe0] sm:$0xff]
      %v202 = vld [vmem:[%s165 + $0xe8] sm:$0xff]
      %v203 = vld [vmem:[%s165 + $0xf0] sm:$0xff]
      %v204 = vld [vmem:[%s165 + $0xf8] sm:$0xff]
      %v205 = vld [vmem:[%s165 + $0x100] sm:$0xff]
      %v206 = vld [vmem:[%s165 + $0x108] sm:$0xff]
      %v207 = vld [vmem:[%s165 + $0x110] sm:$0xff]
      %v208 = vld [vmem:[%s165 + $0x118] sm:$0xff]
      %v209 = vld [vmem:[%s165 + $0x120] sm:$0xff]
      %v210 = vld [vmem:[%s165 + $0x128] sm:$0xff]
      %v211 = vld [vmem:[%s165 + $0x130] sm:$0xff]
      %v212 = vld [vmem:[%s165 + $0x138] sm:$0xff]
      %v213 = vld [vmem:[%s165 + $0x140] sm:$0xff]
      %v214 = vld [vmem:[%s165 + $0x148] sm:$0xff]
      %v215 = vld [vmem:[%s165 + $0x150] sm:$0xff]
      %v216 = vld [vmem:[%s165 + $0x158] sm:$0xff]
      %v217 = vld [vmem:[%s165 + $0x160] sm:$0xff]
      %v218 = vld [vmem:[%s165 + $0x168] sm:$0xff]
      %v219 = vld [vmem:[%s165 + $0x170] sm:$0xff]
      %v220 = vld [vmem:[%s165 + $0x178] sm:$0xff]
      %v221 = vld [vmem:[%s165 + $0x180] sm:$0xff]
      %v222 = vld [vmem:[%s165 + $0x188] sm:$0xff]
      %v223 = vld [vmem:[%s165 + $0x190] sm:$0xff]
      %v224 = vld [vmem:[%s165 + $0x198] sm:$0xff]
      %v225 = vld [vmem:[%s165 + $0x1a0] sm:$0xff]
      %v226 = vld [vmem:[%s165 + $0x1a8] sm:$0xff]
      %v227 = vld [vmem:[%s165 + $0x1b0] sm:$0xff]
      %v228 = vld [vmem:[%s165 + $0x1b8] sm:$0xff]
      %v229 = vld [vmem:[%s165 + $0x1c0] sm:$0xff]
      %v230 = vld [vmem:[%s165 + $0x1c8] sm:$0xff]
      %v231 = vld [vmem:[%s165 + $0x1d0] sm:$0xff]
      %v232 = vld [vmem:[%s165 + $0x1d8] sm:$0xff]
      %v233 = vld [vmem:[%s165 + $0x1e0] sm:$0xff]
      %v234 = vld [vmem:[%s165 + $0x1e8] sm:$0xff]
      %v235 = vld [vmem:[%s165 + $0x1f0] sm:$0xff]
      %v236 = vld [vmem:[%s165 + $0x1f8] sm:$0xff]
      %v237 = vld [vmem:[%s165 + $0x200] sm:$0xff]
      %v238 = vld [vmem:[%s165 + $0x208] sm:$0xff]
      %v239 = vld [vmem:[%s165 + $0x210] sm:$0xff]
      %v240 = vld [vmem:[%s165 + $0x218] sm:$0xff]
      %v241 = vld [vmem:[%s165 + $0x220] sm:$0xff]
      %v242 = vld [vmem:[%s165 + $0x228] sm:$0xff]
      %v243 = vld [vmem:[%s165 + $0x230] sm:$0xff]
      %v244 = vld [vmem:[%s165 + $0x238] sm:$0xff]
      %v245 = vld [vmem:[%s165 + $0x240] sm:$0xff]
      %v246 = vld [vmem:[%s165 + $0x248] sm:$0xff]
      %v247 = vld [vmem:[%s165 + $0x250] sm:$0xff]
      %v248 = vld [vmem:[%s165 + $0x258] sm:$0xff]
      %v249 = vld [vmem:[%s165 + $0x260] sm:$0xff]
      %v250 = vld [vmem:[%s165 + $0x268] sm:$0xff]
      %v251 = vld [vmem:[%s165 + $0x270] sm:$0xff]
      %v252 = vld [vmem:[%s165 + $0x278] sm:$0xff]
      %v253 = vld [vmem:[%s165 + $0x280] sm:$0xff]
      %v254 = vld [vmem:[%s165 + $0x288] sm:$0xff]
      %v255 = vld [vmem:[%s165 + $0x290] sm:$0xff]
      %v256 = vld [vmem:[%s165 + $0x298] sm:$0xff]
      %v257 = vld [vmem:[%s165 + $0x2a0] sm:$0xff]
      %v258 = vld [vmem:[%s165 + $0x2a8] sm:$0xff]
      %v259 = vld [vmem:[%s165 + $0x2b0] sm:$0xff]
      %v260 = vld [vmem:[%s165 + $0x2b8] sm:$0xff]
      %v261 = vld [vmem:[%s165 + $0x2c0] sm:$0xff]
      %v262 = vld [vmem:[%s165 + $0x2c8] sm:$0xff]
      %v263 = vld [vmem:[%s165 + $0x2d0] sm:$0xff]
      %v264 = vld [vmem:[%s165 + $0x2d8] sm:$0xff]
      %v265 = vld [vmem:[%s165 + $0x2e0] sm:$0xff]
      %v266 = vld [vmem:[%s165 + $0x2e8] sm:$0xff]
      %v267 = vld [vmem:[%s165 + $0x2f0] sm:$0xff]
      %v268 = vld [vmem:[%s165 + $0x2f8] sm:$0xff]
      %v269 = vld [vmem:[%s165 + $0x300] sm:$0xff]
      %v270 = vld [vmem:[%s165 + $0x308] sm:$0xff]
      %v271 = vld [vmem:[%s165 + $0x310] sm:$0xff]
      %v272 = vld [vmem:[%s165 + $0x318] sm:$0xff]
      %v273 = vld [vmem:[%s165 + $0x320] sm:$0xff]
      %v274 = vld [vmem:[%s165 + $0x328] sm:$0xff]
      %v275 = vld [vmem:[%s165 + $0x330] sm:$0xff]
      %v276 = vld [vmem:[%s165 + $0x338] sm:$0xff]
      %v277 = vld [vmem:[%s165 + $0x340] sm:$0xff]
      %v278 = vld [vmem:[%s165 + $0x348] sm:$0xff]
      %v279 = vld [vmem:[%s165 + $0x350] sm:$0xff]
      %v280 = vld [vmem:[%s165 + $0x358] sm:$0xff]
      %v281 = vld [vmem:[%s165 + $0x360] sm:$0xff]
      %v282 = vld [vmem:[%s165 + $0x368] sm:$0xff]
      %v283 = vld [vmem:[%s165 + $0x370] sm:$0xff]
      %v284 = vld [vmem:[%s165 + $0x378] sm:$0xff]
      %v285 = vld [vmem:[%s165 + $0x380] sm:$0xff]
      %v286 = vld [vmem:[%s165 + $0x388] sm:$0xff]
      %v287 = vld [vmem:[%s165 + $0x390] sm:$0xff]
      %v288 = vld [vmem:[%s165 + $0x398] sm:$0xff]
      %v289 = vld [vmem:[%s165 + $0x3a0] sm:$0xff]
      %v290 = vld [vmem:[%s165 + $0x3a8] sm:$0xff]
      %v291 = vld [vmem:[%s165 + $0x3b0] sm:$0xff]
      %v292 = vld [vmem:[%s165 + $0x3b8] sm:$0xff]
      %v293 = vld [vmem:[%s165 + $0x3c0] sm:$0xff]
      %v294 = vld [vmem:[%s165 + $0x3c8] sm:$0xff]
      %v295 = vld [vmem:[%s165 + $0x3d0] sm:$0xff]
      %v296 = vld [vmem:[%s165 + $0x3d8] sm:$0xff]
      %v297 = vld [vmem:[%s165 + $0x3e0] sm:$0xff]
      %v298 = vld [vmem:[%s165 + $0x3e8] sm:$0xff]
      %v299 = vld [vmem:[%s165 + $0x3f0] sm:$0xff]
      %v300 = vld [vmem:[%s165 + $0x3f8] sm:$0xff]
      %v301 = vld [vmem:[%s2] sm:$0xff]
      %303 = vset.pattern.permute.xlu0 0
      %304 = vperm.xlu0 %303, %v301
      %v305 = vpop.permute.xlu0 %304
      %307 = vmatprep.subr.mxu0 %v234
      %308 = vmatpush1.msra.mxu0 %v233
      %309 = vmatprep.subr.mxu0 %v230
      %310 = vmatpush1.msra.mxu0 %v229
      %311 = vmatprep.subr.mxu0 %v226
      %312 = vmatpush1.msra.mxu0 %v225
      %313 = vmatprep.subr.mxu0 %v222
      %314 = vmatpush1.msra.mxu0 %v221
      %315 = vmatprep.subr.mxu0 %v218
      %316 = vmatpush1.msra.mxu0 %v217
      %317 = vmatprep.subr.mxu0 %v214
      %318 = vmatpush1.msra.mxu0 %v213
      %319 = vmatprep.subr.mxu0 %v210
      %320 = vmatpush1.msra.mxu0 %v209
      %321 = vmatprep.subr.mxu0 %v206
      %322 = vmatpush1.msra.mxu0 %v205
      %323 = vmatprep.subr.mxu0 %v202
      %324 = vmatpush1.msra.mxu0 %v201
      %325 = vmatprep.subr.mxu0 %v198
      %326 = vmatpush1.msra.mxu0 %v197
      %327 = vmatprep.subr.mxu0 %v194
      %328 = vmatpush1.msra.mxu0 %v193
      %329 = vmatprep.subr.mxu0 %v190
      %330 = vmatpush1.msra.mxu0 %v189
      %331 = vmatprep.subr.mxu0 %v186
      %332 = vmatpush1.msra.mxu0 %v185
      %333 = vmatprep.subr.mxu0 %v182
      %334 = vmatpush1.msra.mxu0 %v181
      %335 = vmatprep.subr.mxu0 %v178
      %336 = vmatpush1.msra.mxu0 %v177
      %337 = vmatprep.subr.mxu0 %v174
      %338 = vmatpush1.msra.mxu0 %v173
      %339 = vmatprep.subr.mxu0 %v298
      %340 = vmatpush2.msra.mxu0 %v297
      %341 = vmatprep.subr.mxu0 %v294
      %342 = vmatpush2.msra.mxu0 %v293
      %343 = vmatprep.subr.mxu0 %v290
      %344 = vmatpush2.msra.mxu0 %v289
      %345 = vmatprep.subr.mxu0 %v286
      %346 = vmatpush2.msra.mxu0 %v285
      %347 = vmatprep.subr.mxu0 %v282
      %348 = vmatpush2.msra.mxu0 %v281
      %349 = vmatprep.subr.mxu0 %v278
      %350 = vmatpush2.msra.mxu0 %v277
      %351 = vmatprep.subr.mxu0 %v274
      %352 = vmatpush2.msra.mxu0 %v273
      %353 = vmatprep.subr.mxu0 %v270
      %354 = vmatpush2.msra.mxu0 %v269
      %355 = vmatprep.subr.mxu0 %v266
      %356 = vmatpush2.msra.mxu0 %v265
      %357 = vmatprep.subr.mxu0 %v262
      %358 = vmatpush2.msra.mxu0 %v261
      %359 = vmatprep.subr.mxu0 %v258
      %360 = vmatpush2.msra.mxu0 %v257
      %361 = vmatprep.subr.mxu0 %v254
      %362 = vmatpush2.msra.mxu0 %v253
      %363 = vmatprep.subr.mxu0 %v250
      %364 = vmatpush2.msra.mxu0 %v249
      %365 = vmatprep.subr.mxu0 %v246
      %366 = vmatpush2.msra.mxu0 %v245
      %367 = vmatprep.subr.mxu0 %v242
      %368 = vmatpush2.msra.mxu0 %v241
      %369 = vmatprep.subr.mxu0 %v238
      %370 = vmatpush2.msra.mxu0 %v237
      %371 = vmatprep.mubr.f32.mxu0 %v172
      %372 = vmatmul.mubr.f32.gmra.mxu0 %v171
      %v373 = vpop.f32.mrf.mxu0
      %v374 = vadd.f32 %v305, %v373
      %v375 = vpop.f32.mrf.mxu0
      %v376 = vadd.f32 %v305, %v375
      %377 = vdwg.mxu0
      %378 = vmatprep.subr.mxu0 %v236
      %379 = vmatpush1.msra.mxu0 %v235
      %380 = vmatprep.subr.mxu0 %v232
      %381 = vmatpush1.msra.mxu0 %v231
      %382 = vmatprep.subr.mxu0 %v228
      %383 = vmatpush1.msra.mxu0 %v227
      %384 = vmatprep.subr.mxu0 %v224
      %385 = vmatpush1.msra.mxu0 %v223
      %386 = vmatprep.subr.mxu0 %v220
      %387 = vmatpush1.msra.mxu0 %v219
      %388 = vmatprep.subr.mxu0 %v216
      %389 = vmatpush1.msra.mxu0 %v215
      %390 = vmatprep.subr.mxu0 %v212
      %391 = vmatpush1.msra.mxu0 %v211
      %392 = vmatprep.subr.mxu0 %v208
      %393 = vmatpush1.msra.mxu0 %v207
      %394 = vmatprep.subr.mxu0 %v204
      %395 = vmatpush1.msra.mxu0 %v203
      %396 = vmatprep.subr.mxu0 %v200
      %397 = vmatpush1.msra.mxu0 %v199
      %398 = vmatprep.subr.mxu0 %v196
      %399 = vmatpush1.msra.mxu0 %v195
      %400 = vmatprep.subr.mxu0 %v192
      %401 = vmatpush1.msra.mxu0 %v191
      %402 = vmatprep.subr.mxu0 %v188
      %403 = vmatpush1.msra.mxu0 %v187
      %404 = vmatprep.subr.mxu0 %v184
      %405 = vmatpush1.msra.mxu0 %v183
      %406 = vmatprep.subr.mxu0 %v180
      %407 = vmatpush1.msra.mxu0 %v179
      %408 = vmatprep.subr.mxu0 %v176
      %409 = vmatpush1.msra.mxu0 %v175
      %410 = vmatprep.subr.mxu0 %v300
      %411 = vmatpush2.msra.mxu0 %v299
      %412 = vmatprep.subr.mxu0 %v296
      %413 = vmatpush2.msra.mxu0 %v295
      %414 = vmatprep.subr.mxu0 %v292
      %415 = vmatpush2.msra.mxu0 %v291
      %416 = vmatprep.subr.mxu0 %v288
      %417 = vmatpush2.msra.mxu0 %v287
      %418 = vmatprep.subr.mxu0 %v284
      %419 = vmatpush2.msra.mxu0 %v283
      %420 = vmatprep.subr.mxu0 %v280
      %421 = vmatpush2.msra.mxu0 %v279
      %422 = vmatprep.subr.mxu0 %v276
      %423 = vmatpush2.msra.mxu0 %v275
      %424 = vmatprep.subr.mxu0 %v272
      %425 = vmatpush2.msra.mxu0 %v271
      %426 = vmatprep.subr.mxu0 %v268
      %427 = vmatpush2.msra.mxu0 %v267
      %428 = vmatprep.subr.mxu0 %v264
      %429 = vmatpush2.msra.mxu0 %v263
      %430 = vmatprep.subr.mxu0 %v260
      %431 = vmatpush2.msra.mxu0 %v259
      %432 = vmatprep.subr.mxu0 %v256
      %433 = vmatpush2.msra.mxu0 %v255
      %434 = vmatprep.subr.mxu0 %v252
      %435 = vmatpush2.msra.mxu0 %v251
      %436 = vmatprep.subr.mxu0 %v248
      %437 = vmatpush2.msra.mxu0 %v247
      %438 = vmatprep.subr.mxu0 %v244
      %439 = vmatpush2.msra.mxu0 %v243
      %440 = vmatprep.subr.mxu0 %v240
      %441 = vmatpush2.msra.mxu0 %v239
      %442 = vmatprep.mubr.f32.mxu0 %v172
      %443 = vmatmul.mubr.f32.gmra.mxu0 %v171
      %v444 = vpop.f32.mrf.mxu0
      %v445 = vadd.f32 %v305, %v444
      %v446 = vpop.f32.mrf.mxu0
      %v447 = vadd.f32 %v305, %v446
      %448 = vdwg.mxu0
      %v449 = vadd.f32 %v374, %v376
      %v450 = vadd.f32 %v449, %v445
      %v451 = vadd.f32 %v450, %v447
      %452 = vadd.xlane.f32.xlu0 %v451
      %v453 = vpop.xlane.xlu0 %452
      %v454 = vmul.f32 %v453, 0.001953125
      %v455 = vmul.f32 %v374, %v374
      %v456 = vmul.f32 %v376, %v376
      %v457 = vmul.f32 %v445, %v445
      %v458 = vmul.f32 %v447, %v447
      %v459 = vadd.f32 %v455, %v456
      %v460 = vadd.f32 %v459, %v457
      %v461 = vadd.f32 %v460, %v458
      %462 = vadd.xlane.f32.xlu0 %v461
      %v463 = vpop.xlane.xlu0 %462
      %v464 = vmul.f32 %v463, 0.001953125
      %v465 = vmul.f32 %v454, %v454
      %v466 = vsub.f32 %v464, %v465
      %v467 = vsub.f32 %v374, %v454
      %v468 = vsub.f32 %v376, %v454
      %v469 = vsub.f32 %v445, %v454
      %v470 = vsub.f32 %v447, %v454
      %v471 = vadd.f32 %v466, 1e-05
      %v472 = vrsqrt.pop %v471
      %v473 = vmul.f32 %v467, %v472
      %v474 = vmul.f32 %v468, %v472
      %v475 = vmul.f32 %v469, %v472
      %v476 = vmul.f32 %v470, %v472
      %vm477 = vcmp.ge.f32.partialorder %v473, 0.0
      %vm478 = vcmp.ge.f32.partialorder %v474, 0.0
      %vm479 = vcmp.ge.f32.partialorder %v475, 0.0
      %vm480 = vcmp.ge.f32.partialorder %v476, 0.0
      %v481 = vmul.f32 %v473, 0.01
      %v482 = vmul.f32 %v474, 0.01
      %v483 = vmul.f32 %v475, 0.01
      %v484 = vmul.f32 %v476, 0.01
      %v485 = vsel %vm477, %v473, %v481
      %v486 = vsel %vm478, %v474, %v482
      %v487 = vsel %vm479, %v475, %v483
      %v488 = vsel %vm480, %v476, %v484
      %489 = vst [vmem:[%s170] sm:$0xff] %v485
      %490 = vst [vmem:[%s170 + $0x8] sm:$0xff] %v486
      %491 = vst [vmem:[%s170 + $0x10] sm:$0xff] %v487
      %492 = vst [vmem:[%s170 + $0x18] sm:$0xff] %v488
      %p493 = scmp.lt.s32.totalorder %s14, 1
      %s494 = scalar_select %p493, %s14, 1
      %s495 = smul.addr %s494, 4
      %s496 = smul.addr %s495, 8
      %s497 = scalar_lea.vmem %s3, %s496
      // Predicated region
      $region33: #{classifier_forward.6} parent=31 // pred_check
        %p498 = pneg %p100
      $region34: #{classifier_forward.6} parent=31 // pred_check_branch
        %500 = sbr.rel (%p498) target = $region36
      $region35: #{classifier_forward.6} parent=31 // pred_region
        _
      $region36: #{classifier_forward.6} parent=31 // pred_fallthru
        _
    $region32: #{classifier_forward.6} parent=5 // pred_fallthru
      _
    %p501 = scmp.le.s32.totalorder 2, %s9
    // Predicated region
    $region37: #{classifier_forward.6} parent=5 // pred_check
      %p502 = pneg %p501
    $region38: #{classifier_forward.6} parent=5 // pred_check_branch
      %504 = sbr.rel (%p502) target = $region40
    $region39: #{classifier_forward.6} parent=5 // pred_region
      %s505 = ssub.s32 %s9, 2
      // Predicated region
      $region41: #{classifier_forward.6} parent=39 // pred_check
        %p506 = pneg %p106
      $region42: #{classifier_forward.6} parent=39 // pred_check_branch
        %508 = sbr.rel (%p506) target = $region44
      $region43: #{classifier_forward.6} parent=39 // pred_region
        %p509 = scmp.lt.s32.totalorder %s15, 1
        %s510 = scalar_select %p509, %s15, 1
        %s511 = smul.addr %s510, 4
        %s512 = smul.addr %s511, 8
        %s513 = scalar_lea.vmem %s3, %s512
      $region44: #{classifier_forward.6} parent=39 // pred_fallthru
        _
    $region40: #{classifier_forward.6} parent=5 // pred_fallthru
      _
  $region6: #{classifier_forward.6} parent=0 // loop_footer
    %s13 = sadd.s32 1, %s9
  $region7: #{classifier_forward.6} parent=0 // loop_footer_branch
    %8 = sbr.rel target = $region3
  $region8: #{classifier_forward.6} parent=0 // loop_exit
    _

// kernel: classifier_forward.7
$region0: #{classifier_forward.7}
  #allocation0 [shape = 'u32[]', space=smem, size = 0x4, offset = 0x4, fixed_abs, tag = 'smem constant byte address 0x4 - core index']
  #allocation1 [shape = 'u32[144,128]{1,0:T(1,128)}', space=vmem, size = 0x12000, scoped, tag = 'internal scratch']
  %s0 = inlined_call_operand.vmem [shape: f32[2,512,64], index: 0, kind: input, shape index: {}]
  %s1 = inlined_call_operand.vmem [shape: f32[16,512], index: 1, kind: input, shape index: {}]
  %s2 = inlined_call_operand.vmem [shape: f32[16,1], index: 2, kind: input, shape index: {}]
  %s3 = inlined_call_operand.vmem [shape: f32[2,16,64], index: 3, kind: output, shape index: {}]
  %s4 = sld [smem:[#allocation0]]
  $region45: #{classifier_forward.7} parent=0
    _
  %s6 = ssub.s32 1, %s4
  %s7 = scalar_select 0, %s6, %s4
  loop: start=0, step=1, limit=4
  $region2: #{classifier_forward.7} parent=0 // loop_pre_header
    _
  $region3: #{classifier_forward.7} parent=0 // loop_header
    %s9 = sphi 0, %s13
    %p10 = scmp.ge.s32.totalorder %s9, 4
    %s19 = sphi 0, %s21
    %s22 = sphi 0, %s19
    %s23 = sphi 0, %s22
    %s39 = sphi 0, %s23
    %s43 = sphi 0, %s43
    %s45 = sphi 0, %s43
    %s46 = sphi 0, %s45
    %s60 = sphi 0, %s46
    %s64 = sphi 0, %s64
    %s66 = sphi 0, %s64
    %s67 = sphi 0, %s66
    %s81 = sphi 0, %s67
    %s87 = sphi 0, %s89
    %s90 = sphi 0, %s87
    %s91 = sphi 0, %s90
    %s107 = sphi 0, %s91
  $region4: #{classifier_forward.7} parent=0 // loop_header_branch
    %12 = sbr.rel (%p10) target = $region8
  $region5: #{classifier_forward.7} parent=0 // loop_body
    %s14 = ssub.s32 %s9, 1
    %s15 = ssub.s32 %s9, 2
    %s16 = sadd.s32 %s9, 1
    %s17 = ssub.s32 %s9, %s16
    %p18 = scmp.eq.s32.totalorder %s17, 0
    %s20 = sadd.s32 %s19, 1
    %s21 = scalar_select %p18, %s19, %s20
    %p24 = pneg %p18
    %p25 = scmp.eq.s32.totalorder %s9, 1
    %p26 = por %p24, %p25
    %p27 = scmp.ne.s32.totalorder %s19, %s22
    %p28 = scmp.eq.s32.totalorder %s9, 0
    %p29 = por %p27, %p28
    %p30 = scmp.ne.s32.totalorder %s19, %s22
    %p31 = scmp.eq.s32.totalorder %s14, 1
    %p32 = por %p30, %p31
    %p33 = scmp.ne.s32.totalorder %s22, %s23
    %p34 = scmp.eq.s32.totalorder %s14, 0
    %p35 = por %p33, %p34
    %p36 = scmp.ne.s32.totalorder %s22, %s23
    %p37 = scmp.eq.s32.totalorder %s15, 1
    %p38 = por %p36, %p37
    %p40 = scmp.ne.s32.totalorder %s23, %s39
    %p41 = scmp.eq.s32.totalorder %s15, 0
    %p42 = por %p40, %p41
    %s44 = sadd.s32 %s43, 1
    %p47 = scmp.eq.s32.totalorder %s9, 1
    %p48 = scmp.ne.s32.totalorder %s43, %s45
    %p49 = scmp.eq.s32.totalorder %s9, 0
    %p50 = por %p48, %p49
    %p51 = scmp.ne.s32.totalorder %s43, %s45
    %p52 = scmp.eq.s32.totalorder %s14, 1
    %p53 = por %p51, %p52
    %p54 = scmp.ne.s32.totalorder %s45, %s46
    %p55 = scmp.eq.s32.totalorder %s14, 0
    %p56 = por %p54, %p55
    %p57 = scmp.ne.s32.totalorder %s45, %s46
    %p58 = scmp.eq.s32.totalorder %s15, 1
    %p59 = por %p57, %p58
    %p61 = scmp.ne.s32.totalorder %s46, %s60
    %p62 = scmp.eq.s32.totalorder %s15, 0
    %p63 = por %p61, %p62
    %s65 = sadd.s32 %s64, 1
    %p68 = scmp.eq.s32.totalorder %s9, 1
    %p69 = scmp.ne.s32.totalorder %s64, %s66
    %p70 = scmp.eq.s32.totalorder %s9, 0
    %p71 = por %p69, %p70
    %p72 = scmp.ne.s32.totalorder %s64, %s66
    %p73 = scmp.eq.s32.totalorder %s14, 1
    %p74 = por %p72, %p73
    %p75 = scmp.ne.s32.totalorder %s66, %s67
    %p76 = scmp.eq.s32.totalorder %s14, 0
    %p77 = por %p75, %p76
    %p78 = scmp.ne.s32.totalorder %s66, %s67
    %p79 = scmp.eq.s32.totalorder %s15, 1
    %p80 = por %p78, %p79
    %p82 = scmp.ne.s32.totalorder %s67, %s81
    %p83 = scmp.eq.s32.totalorder %s15, 0
    %p84 = por %p82, %p83
    %s85 = ssub.s32 %s9, %s16
    %p86 = scmp.eq.s32.totalorder %s85, 0
    %s88 = sadd.s32 %s87, 1
    %s89 = scalar_select %p86, %s87, %s88
    %p92 = pneg %p86
    %p93 = scmp.eq.s32.totalorder %s9, 1
    %p94 = por %p92, %p93
    %p95 = scmp.ne.s32.totalorder %s87, %s90
    %p96 = scmp.eq.s32.totalorder %s9, 0
    %p97 = por %p95, %p96
    %p98 = scmp.ne.s32.totalorder %s87, %s90
    %p99 = scmp.eq.s32.totalorder %s14, 1
    %p100 = por %p98, %p99
    %p101 = scmp.ne.s32.totalorder %s90, %s91
    %p102 = scmp.eq.s32.totalorder %s14, 0
    %p103 = por %p101, %p102
    %p104 = scmp.ne.s32.totalorder %s90, %s91
    %p105 = scmp.eq.s32.totalorder %s15, 1
    %p106 = por %p104, %p105
    %p108 = scmp.ne.s32.totalorder %s91, %s107
    %p109 = scmp.eq.s32.totalorder %s15, 0
    %p110 = por %p108, %p109
    %p111 = scmp.le.s32.totalorder 1, %s9
    %p112 = scmp.lt.s32.totalorder %s9, 3
    %p113 = pnand %p111, %p112
    %p114 = pneg %p113
    // Predicated region
    $region9: #{classifier_forward.7} parent=5 // pred_check
      _
    $region10: #{classifier_forward.7} parent=5 // pred_check_branch
      %116 = sbr.rel (%p113) target = $region12
    $region11: #{classifier_forward.7} parent=5 // pred_region
      %s117 = ssub.s32 %s9, 1
      // Predicated region
      $region13: #{classifier_forward.7} parent=11 // pred_check
        %p118 = pneg %p56
      $region14: #{classifier_forward.7} parent=11 // pred_check_branch
        %120 = sbr.rel (%p118) target = $region16
      $region15: #{classifier_forward.7} parent=11 // pred_region
        _
      $region16: #{classifier_forward.7} parent=11 // pred_fallthru
        _
      // Predicated region
      $region17: #{classifier_forward.7} parent=11 // pred_check
        %p121 = pneg %p77
      $region18: #{classifier_forward.7} parent=11 // pred_check_branch
        %123 = sbr.rel (%p121) target = $region20
      $region19: #{classifier_forward.7} parent=11 // pred_region
        _
      $region20: #{classifier_forward.7} parent=11 // pred_fallthru
        _
    $region12: #{classifier_forward.7} parent=5 // pred_fallthru
      _
    %p124 = scmp.lt.s32.totalorder %s9, 2
    // Predicated region
    $region21: #{classifier_forward.7} parent=5 // pred_check
      %p125 = pneg %p124
    $region22: #{classifier_forward.7} parent=5 // pred_check_branch
      %127 = sbr.rel (%p125) target = $region24
    $region23: #{classifier_forward.7} parent=5 // pred_region
      // Predicated region
      $region25: #{classifier_forward.7} parent=23 // pred_check
        %p128 = pneg %p29
      $region26: #{classifier_forward.7} parent=23 // pred_check_branch
        %130 = sbr.rel (%p128) target = $region28
      $region27: #{classifier_forward.7} parent=23 // pred_region
        %p131 = scmp.lt.s32.totalorder %s9, 1
        %s132 = scalar_select %p131, %s9, 1
        %s133 = smul.addr %s132, 64
        %s134 = smul.addr %s133, 8
        %s135 = scalar_lea.vmem %s0, %s134
      $region28: #{classifier_forward.7} parent=23 // pred_fallthru
        _
    $region24: #{classifier_forward.7} parent=5 // pred_fallthru
      _
    %p136 = scmp.le.s32.totalorder 1, %s9
    %p137 = scmp.lt.s32.totalorder %s9, 3
    %p138 = pnand %p136, %p137
    %p139 = pneg %p138
    // Predicated region
    $region29: #{classifier_forward.7} parent=5 // pred_check
      _
    $region30: #{classifier_forward.7} parent=5 // pred_check_branch
      %141 = sbr.rel (%p138) target = $region32
    $region31: #{classifier_forward.7} parent=5 // pred_region
      %s142 = ssub.s32 %s9, 1
      %p143 = scmp.lt.s32.totalorder %s14, 1
      %s144 = scalar_select %p143, %s14, 1
      %s145 = smul.addr %s144, 64
      %s146 = smul.addr %s145, 8
      %s147 = scalar_lea.vmem %s0, %s146
      %p148 = pneg %p35
      %p149 = pneg %p32
      %p150 = pneg %p56
      %p151 = pneg %p53
      %p152 = pneg %p77
      %p153 = pneg %p74
      %p154 = pneg %p103
      %p155 = pneg %p100
      %p156 = scmp.lt.s32.totalorder %s14, 1
      %s157 = scalar_select %p156, %s14, 1
      %s158 = smul.addr %s157, 2
      %s159 = smul.addr %s158, 8
      %s160 = scalar_lea.vmem %s3, %s159
      %p161 = scmp.lt.s32.totalorder %s14, 1
      %s162 = scalar_select %p161, %s14, 1
      %s163 = smul.addr %s162, 64
      %s164 = smul.addr %s163, 8
      %s165 = scalar_lea.vmem %s0, %s164
      %p166 = scmp.lt.s32.totalorder %s14, 1
      %s167 = scalar_select %p166, %s14, 1
      %s168 = smul.addr %s167, 2
      %s169 = smul.addr %s168, 8
      %s170 = scalar_lea.vmem %s3, %s169
      %v171 = vld [vmem:[%s1] sm:$0xff]
      %v172 = vld [vmem:[%s1 + $0x8] sm:$0xff]
      %v173 = vld [vmem:[%s1 + $0x10] sm:$0xff]
      %v174 = vld [vmem:[%s1 + $0x18] sm:$0xff]
      %v175 = vld [vmem:[%s1 + $0x20] sm:$0xff]
      %v176 = vld [vmem:[%s1 + $0x28] sm:$0xff]
      %v177 = vld [vmem:[%s1 + $0x30] sm:$0xff]
      %v178 = vld [vmem:[%s1 + $0x38] sm:$0xff]
      %v179 = vld [vmem:[%s165] sm:$0xff]
      %v180 = vld [vmem:[%s165 + $0x8] sm:$0xff]
      %v181 = vld [vmem:[%s165 + $0x10] sm:$0xff]
      %v182 = vld [vmem:[%s165 + $0x18] sm:$0xff]
      %v183 = vld [vmem:[%s165 + $0x20] sm:$0xff]
      %v184 = vld [vmem:[%s165 + $0x28] sm:$0xff]
      %v185 = vld [vmem:[%s165 + $0x30] sm:$0xff]
      %v186 = vld [vmem:[%s165 + $0x38] sm:$0xff]
      %v187 = vld [vmem:[%s165 + $0x40] sm:$0xff]
      %v188 = vld [vmem:[%s165 + $0x48] sm:$0xff]
      %v189 = vld [vmem:[%s165 + $0x50] sm:$0xff]
      %v190 = vld [vmem:[%s165 + $0x58] sm:$0xff]
      %v191 = vld [vmem:[%s165 + $0x60] sm:$0xff]
      %v192 = vld [vmem:[%s165 + $0x68] sm:$0xff]
      %v193 = vld [vmem:[%s165 + $0x70] sm:$0xff]
      %v194 = vld [vmem:[%s165 + $0x78] sm:$0xff]
      %v195 = vld [vmem:[%s165 + $0x80] sm:$0xff]
      %v196 = vld [vmem:[%s165 + $0x88] sm:$0xff]
      %v197 = vld [vmem:[%s165 + $0x90] sm:$0xff]
      %v198 = vld [vmem:[%s165 + $0x98] sm:$0xff]
      %v199 = vld [vmem:[%s165 + $0xa0] sm:$0xff]
      %v200 = vld [vmem:[%s165 + $0xa8] sm:$0xff]
      %v201 = vld [vmem:[%s165 + $0xb0] sm:$0xff]
      %v202 = vld [vmem:[%s165 + $0xb8] sm:$0xff]
      %v203 = vld [vmem:[%s165 + $0xc0] sm:$0xff]
      %v204 = vld [vmem:[%s165 + $0xc8] sm:$0xff]
      %v205 = vld [vmem:[%s165 + $0xd0] sm:$0xff]
      %v206 = vld [vmem:[%s165 + $0xd8] sm:$0xff]
      %v207 = vld [vmem:[%s165 + $0xe0] sm:$0xff]
      %v208 = vld [vmem:[%s165 + $0xe8] sm:$0xff]
      %v209 = vld [vmem:[%s165 + $0xf0] sm:$0xff]
      %v210 = vld [vmem:[%s165 + $0xf8] sm:$0xff]
      %v211 = vld [vmem:[%s165 + $0x100] sm:$0xff]
      %v212 = vld [vmem:[%s165 + $0x108] sm:$0xff]
      %v213 = vld [vmem:[%s165 + $0x110] sm:$0xff]
      %v214 = vld [vmem:[%s165 + $0x118] sm:$0xff]
      %v215 = vld [vmem:[%s165 + $0x120] sm:$0xff]
      %v216 = vld [vmem:[%s165 + $0x128] sm:$0xff]
      %v217 = vld [vmem:[%s165 + $0x130] sm:$0xff]
      %v218 = vld [vmem:[%s165 + $0x138] sm:$0xff]
      %v219 = vld [vmem:[%s165 + $0x140] sm:$0xff]
      %v220 = vld [vmem:[%s165 + $0x148] sm:$0xff]
      %v221 = vld [vmem:[%s165 + $0x150] sm:$0xff]
      %v222 = vld [vmem:[%s165 + $0x158] sm:$0xff]
      %v223 = vld [vmem:[%s165 + $0x160] sm:$0xff]
      %v224 = vld [vmem:[%s165 + $0x168] sm:$0xff]
      %v225 = vld [vmem:[%s165 + $0x170] sm:$0xff]
      %v226 = vld [vmem:[%s165 + $0x178] sm:$0xff]
      %v227 = vld [vmem:[%s165 + $0x180] sm:$0xff]
      %v228 = vld [vmem:[%s165 + $0x188] sm:$0xff]
      %v229 = vld [vmem:[%s165 + $0x190] sm:$0xff]
      %v230 = vld [vmem:[%s165 + $0x198] sm:$0xff]
      %v231 = vld [vmem:[%s165 + $0x1a0] sm:$0xff]
      %v232 = vld [vmem:[%s165 + $0x1a8] sm:$0xff]
      %v233 = vld [vmem:[%s165 + $0x1b0] sm:$0xff]
      %v234 = vld [vmem:[%s165 + $0x1b8] sm:$0xff]
      %v235 = vld [vmem:[%s165 + $0x1c0] sm:$0xff]
      %v236 = vld [vmem:[%s165 + $0x1c8] sm:$0xff]
      %v237 = vld [vmem:[%s165 + $0x1d0] sm:$0xff]
      %v238 = vld [vmem:[%s165 + $0x1d8] sm:$0xff]
      %v239 = vld [vmem:[%s165 + $0x1e0] sm:$0xff]
      %v240 = vld [vmem:[%s165 + $0x1e8] sm:$0xff]
      %v241 = vld [vmem:[%s165 + $0x1f0] sm:$0xff]
      %v242 = vld [vmem:[%s165 + $0x1f8] sm:$0xff]
      %v243 = vld [vmem:[%s2] sm:$0xff]
      %v244 = vld [vmem:[%s2 + $0x8] sm:$0xff]
      %246 = vset.pattern.permute.xlu0 0
      %247 = vperm.xlu0 %246, %v243
      %v248 = vpop.permute.xlu0 %247
      %251 = vset.pattern.permute.xlu0 0
      %252 = vperm.xlu0 %251, %v244
      %v253 = vpop.permute.xlu0 %252
      %255 = vmatprep.subr.mxu0 0.0
      %256 = vmatpush1.msra.mxu0 %v194
      %257 = vmatprep.subr.mxu0 0.0
      %258 = vmatpush1.msra.mxu0 %v193
      %259 = vmatprep.subr.mxu0 0.0
      %260 = vmatpush1.msra.mxu0 %v192
      %261 = vmatprep.subr.mxu0 0.0
      %262 = vmatpush1.msra.mxu0 %v191
      %263 = vmatprep.subr.mxu0 0.0
      %264 = vmatpush1.msra.mxu0 %v190
      %265 = vmatprep.subr.mxu0 0.0
      %266 = vmatpush1.msra.mxu0 %v189
      %267 = vmatprep.subr.mxu0 0.0
      %268 = vmatpush1.msra.mxu0 %v188
      %269 = vmatprep.subr.mxu0 0.0
      %270 = vmatpush1.msra.mxu0 %v187
      %271 = vmatprep.subr.mxu0 0.0
      %272 = vmatpush1.msra.mxu0 %v186
      %273 = vmatprep.subr.mxu0 0.0
      %274 = vmatpush1.msra.mxu0 %v185
      %275 = vmatprep.subr.mxu0 0.0
      %276 = vmatpush1.msra.mxu0 %v184
      %277 = vmatprep.subr.mxu0 0.0
      %278 = vmatpush1.msra.mxu0 %v183
      %279 = vmatprep.subr.mxu0 0.0
      %280 = vmatpush1.msra.mxu0 %v182
      %281 = vmatprep.subr.mxu0 0.0
      %282 = vmatpush1.msra.mxu0 %v181
      %283 = vmatprep.subr.mxu0 0.0
      %284 = vmatpush1.msra.mxu0 %v180
      %285 = vmatprep.subr.mxu0 0.0
      %286 = vmatpush1.msra.mxu0 %v179
      %287 = vmatprep.subr.mxu0 0.0
      %288 = vmatpush2.msra.mxu0 %v210
      %289 = vmatprep.subr.mxu0 0.0
      %290 = vmatpush2.msra.mxu0 %v209
      %291 = vmatprep.subr.mxu0 0.0
      %292 = vmatpush2.msra.mxu0 %v208
      %293 = vmatprep.subr.mxu0 0.0
      %294 = vmatpush2.msra.mxu0 %v207
      %295 = vmatprep.subr.mxu0 0.0
      %296 = vmatpush2.msra.mxu0 %v206
      %297 = vmatprep.subr.mxu0 0.0
      %298 = vmatpush2.msra.mxu0 %v205
      %299 = vmatprep.subr.mxu0 0.0
      %300 = vmatpush2.msra.mxu0 %v204
      %301 = vmatprep.subr.mxu0 0.0
      %302 = vmatpush2.msra.mxu0 %v203
      %303 = vmatprep.subr.mxu0 0.0
      %304 = vmatpush2.msra.mxu0 %v202
      %305 = vmatprep.subr.mxu0 0.0
      %306 = vmatpush2.msra.mxu0 %v201
      %307 = vmatprep.subr.mxu0 0.0
      %308 = vmatpush2.msra.mxu0 %v200
      %309 = vmatprep.subr.mxu0 0.0
      %310 = vmatpush2.msra.mxu0 %v199
      %311 = vmatprep.subr.mxu0 0.0
      %312 = vmatpush2.msra.mxu0 %v198
      %313 = vmatprep.subr.mxu0 0.0
      %314 = vmatpush2.msra.mxu0 %v197
      %315 = vmatprep.subr.mxu0 0.0
      %316 = vmatpush2.msra.mxu0 %v196
      %317 = vmatprep.subr.mxu0 0.0
      %318 = vmatpush2.msra.mxu0 %v195
      %319 = vmatprep.mubr.f32.mxu0 %v172
      %320 = vmatmul.mubr.f32.gmra.mxu0 %v171
      %v321 = vpop.f32.mrf.mxu0
      %v322 = vadd.f32 %v248, %v321
      %v323 = vpop.f32.mrf.mxu0
      %324 = vmatprep.mubr.f32.mxu0 %v176
      %325 = vmatmul.mubr.f32.gmra.mxu0 %v175
      %v326 = vpop.f32.mrf.mxu0
      %v327 = vadd.f32 %v253, %v326
      %v328 = vpop.f32.mrf.mxu0
      %329 = vdwg.mxu0
      %330 = vmatprep.subr.mxu0 0.0
      %331 = vmatpush1.msra.mxu0 %v226
      %332 = vmatprep.subr.mxu0 0.0
      %333 = vmatpush1.msra.mxu0 %v225
      %334 = vmatprep.subr.mxu0 0.0
      %335 = vmatpush1.msra.mxu0 %v224
      %336 = vmatprep.subr.mxu0 0.0
      %337 = vmatpush1.msra.mxu0 %v223
      %338 = vmatprep.subr.mxu0 0.0
      %339 = vmatpush1.msra.mxu0 %v222
      %340 = vmatprep.subr.mxu0 0.0
      %341 = vmatpush1.msra.mxu0 %v221
      %342 = vmatprep.subr.mxu0 0.0
      %343 = vmatpush1.msra.mxu0 %v220
      %344 = vmatprep.subr.mxu0 0.0
      %345 = vmatpush1.msra.mxu0 %v219
      %346 = vmatprep.subr.mxu0 0.0
      %347 = vmatpush1.msra.mxu0 %v218
      %348 = vmatprep.subr.mxu0 0.0
      %349 = vmatpush1.msra.mxu0 %v217
      %350 = vmatprep.subr.mxu0 0.0
      %351 = vmatpush1.msra.mxu0 %v216
      %352 = vmatprep.subr.mxu0 0.0
      %353 = vmatpush1.msra.mxu0 %v215
      %354 = vmatprep.subr.mxu0 0.0
      %355 = vmatpush1.msra.mxu0 %v214
      %356 = vmatprep.subr.mxu0 0.0
      %357 = vmatpush1.msra.mxu0 %v213
      %358 = vmatprep.subr.mxu0 0.0
      %359 = vmatpush1.msra.mxu0 %v212
      %360 = vmatprep.subr.mxu0 0.0
      %361 = vmatpush1.msra.mxu0 %v211
      %362 = vmatprep.subr.mxu0 0.0
      %363 = vmatpush2.msra.mxu0 %v242
      %364 = vmatprep.subr.mxu0 0.0
      %365 = vmatpush2.msra.mxu0 %v241
      %366 = vmatprep.subr.mxu0 0.0
      %367 = vmatpush2.msra.mxu0 %v240
      %368 = vmatprep.subr.mxu0 0.0
      %369 = vmatpush2.msra.mxu0 %v239
      %370 = vmatprep.subr.mxu0 0.0
      %371 = vmatpush2.msra.mxu0 %v238
      %372 = vmatprep.subr.mxu0 0.0
      %373 = vmatpush2.msra.mxu0 %v237
      %374 = vmatprep.subr.mxu0 0.0
      %375 = vmatpush2.msra.mxu0 %v236
      %376 = vmatprep.subr.mxu0 0.0
      %377 = vmatpush2.msra.mxu0 %v235
      %378 = vmatprep.subr.mxu0 0.0
      %379 = vmatpush2.msra.mxu0 %v234
      %380 = vmatprep.subr.mxu0 0.0
      %381 = vmatpush2.msra.mxu0 %v233
      %382 = vmatprep.subr.mxu0 0.0
      %383 = vmatpush2.msra.mxu0 %v232
      %384 = vmatprep.subr.mxu0 0.0
      %385 = vmatpush2.msra.mxu0 %v231
      %386 = vmatprep.subr.mxu0 0.0
      %387 = vmatpush2.msra.mxu0 %v230
      %388 = vmatprep.subr.mxu0 0.0
      %389 = vmatpush2.msra.mxu0 %v229
      %390 = vmatprep.subr.mxu0 0.0
      %391 = vmatpush2.msra.mxu0 %v228
      %392 = vmatprep.subr.mxu0 0.0
      %393 = vmatpush2.msra.mxu0 %v227
      %394 = vmatprep.mubr.f32.mxu0 %v174
      %395 = vmatmul.mubr.f32.gmra.mxu0 %v173
      %v396 = vpop.f32.mrf.mxu0
      %v397 = vadd.f32 %v322, %v396
      %v398 = vpop.f32.mrf.mxu0
      %399 = vmatprep.mubr.f32.mxu0 %v178
      %400 = vmatmul.mubr.f32.gmra.mxu0 %v177
      %v401 = vpop.f32.mrf.mxu0
      %v402 = vadd.f32 %v327, %v401
      %v403 = vpop.f32.mrf.mxu0
      %404 = vdwg.mxu0
      %vm405 = vcmask 523264
      %v406 = vsel %vm405, %v397, 0.0
      %407 = vadd.xlane.f32.xlu0 %v406
      %v408 = vpop.xlane.xlu0 %407
      %v409 = vsel %vm405, %v402, 0.0
      %410 = vadd.xlane.f32.xlu0 %v409
      %v411 = vpop.xlane.xlu0 %410
      %v412 = vmul.f32 %v408, 0.015625
      %v413 = vmul.f32 %v411, 0.015625
      %v414 = vmul.f32 %v397, %v397
      %v415 = vmul.f32 %v402, %v402
      %v416 = vsel %vm405, %v414, 0.0
      %417 = vadd.xlane.f32.xlu0 %v416
      %v418 = vpop.xlane.xlu0 %417
      %v419 = vsel %vm405, %v415, 0.0
      %420 = vadd.xlane.f32.xlu0 %v419
      %v421 = vpop.xlane.xlu0 %420
      %v422 = vmul.f32 %v418, 0.015625
      %v423 = vmul.f32 %v421, 0.015625
      %v424 = vmul.f32 %v412, %v412
      %v425 = vmul.f32 %v413, %v413
      %v426 = vsub.f32 %v422, %v424
      %v427 = vsub.f32 %v423, %v425
      %v428 = vsub.f32 %v397, %v412
      %v429 = vsub.f32 %v402, %v413
      %v430 = vadd.f32 %v426, 1e-05
      %v431 = vadd.f32 %v427, 1e-05
      %v432 = vrsqrt.pop %v430
      %v433 = vrsqrt.pop %v431
      %v434 = vmul.f32 %v428, %v432
      %v435 = vmul.f32 %v429, %v433
      %vm436 = vcmp.ge.f32.partialorder %v434, 0.0
      %vm437 = vcmp.ge.f32.partialorder %v435, 0.0
      %v438 = vmul.f32 %v434, 0.01
      %v439 = vmul.f32 %v435, 0.01
      %v440 = vsel %vm436, %v434, %v438
      %v441 = vsel %vm437, %v435, %v439
      %442 = vst.msk [vmem:[%s170] sm:$0xff] %vm405, %v440
      %443 = vst.msk [vmem:[%s170 + $0x8] sm:$0xff] %vm405, %v441
      %p444 = scmp.lt.s32.totalorder %s14, 1
      %s445 = scalar_select %p444, %s14, 1
      %s446 = smul.addr %s445, 2
      %s447 = smul.addr %s446, 8
      %s448 = scalar_lea.vmem %s3, %s447
      // Predicated region
      $region33: #{classifier_forward.7} parent=31 // pred_check
        %p449 = pneg %p100
      $region34: #{classifier_forward.7} parent=31 // pred_check_branch
        %451 = sbr.rel (%p449) target = $region36
      $region35: #{classifier_forward.7} parent=31 // pred_region
        _
      $region36: #{classifier_forward.7} parent=31 // pred_fallthru
        _
    $region32: #{classifier_forward.7} parent=5 // pred_fallthru
      _
    %p452 = scmp.le.s32.totalorder 2, %s9
    // Predicated region
    $region37: #{classifier_forward.7} parent=5 // pred_check
      %p453 = pneg %p452
    $region38: #{classifier_forward.7} parent=5 // pred_check_branch
      %455 = sbr.rel (%p453) target = $region40
    $region39: #{classifier_forward.7} parent=5 // pred_region
      %s456 = ssub.s32 %s9, 2
      // Predicated region
      $region41: #{classifier_forward.7} parent=39 // pred_check
        %p457 = pneg %p106
      $region42: #{classifier_forward.7} parent=39 // pred_check_branch
        %459 = sbr.rel (%p457) target = $region44
      $region43: #{classifier_forward.7} parent=39 // pred_region
        %p460 = scmp.lt.s32.totalorder %s15, 1
        %s461 = scalar_select %p460, %s15, 1
        %s462 = smul.addr %s461, 2
        %s463 = smul.addr %s462, 8
        %s464 = scalar_lea.vmem %s3, %s463
      $region44: #{classifier_forward.7} parent=39 // pred_fallthru
        _
    $region40: #{classifier_forward.7} parent=5 // pred_fallthru
      _
  $region6: #{classifier_forward.7} parent=0 // loop_footer
    %s13 = sadd.s32 1, %s9
  $region7: #{classifier_forward.7} parent=0 // loop_footer_branch
    %8 = sbr.rel target = $region3
  $region8: #{classifier_forward.7} parent=0 // loop_exit
    _

// kernel: classifier_forward.8
$region0: #{classifier_forward.8}
  #allocation0 [shape = 'u32[]', space=smem, size = 0x4, offset = 0x4, fixed_abs, tag = 'smem constant byte address 0x4 - core index']
  #allocation1 [shape = 'u32[144,128]{1,0:T(1,128)}', space=vmem, size = 0x12000, scoped, tag = 'internal scratch']
  %s0 = inlined_call_operand.vmem [shape: f32[2,1024,8], index: 0, kind: input, shape index: {}]
  %s1 = inlined_call_operand.vmem [shape: f32[32,1024], index: 1, kind: input, shape index: {}]
  %s2 = inlined_call_operand.vmem [shape: f32[32,1], index: 2, kind: input, shape index: {}]
  %s3 = inlined_call_operand.vmem [shape: f32[2,32,8], index: 3, kind: output, shape index: {}]
  %s4 = sld [smem:[#allocation0]]
  $region45: #{classifier_forward.8} parent=0
    _
  %s6 = ssub.s32 1, %s4
  %s7 = scalar_select 0, %s6, %s4
  loop: start=0, step=1, limit=4
  $region2: #{classifier_forward.8} parent=0 // loop_pre_header
    _
  $region3: #{classifier_forward.8} parent=0 // loop_header
    %s9 = sphi 0, %s13
    %p10 = scmp.ge.s32.totalorder %s9, 4
    %s19 = sphi 0, %s21
    %s22 = sphi 0, %s19
    %s23 = sphi 0, %s22
    %s39 = sphi 0, %s23
    %s43 = sphi 0, %s43
    %s45 = sphi 0, %s43
    %s46 = sphi 0, %s45
    %s60 = sphi 0, %s46
    %s64 = sphi 0, %s64
    %s66 = sphi 0, %s64
    %s67 = sphi 0, %s66
    %s81 = sphi 0, %s67
    %s87 = sphi 0, %s89
    %s90 = sphi 0, %s87
    %s91 = sphi 0, %s90
    %s107 = sphi 0, %s91
  $region4: #{classifier_forward.8} parent=0 // loop_header_branch
    %12 = sbr.rel (%p10) target = $region8
  $region5: #{classifier_forward.8} parent=0 // loop_body
    %s14 = ssub.s32 %s9, 1
    %s15 = ssub.s32 %s9, 2
    %s16 = sadd.s32 %s9, 1
    %s17 = ssub.s32 %s9, %s16
    %p18 = scmp.eq.s32.totalorder %s17, 0
    %s20 = sadd.s32 %s19, 1
    %s21 = scalar_select %p18, %s19, %s20
    %p24 = pneg %p18
    %p25 = scmp.eq.s32.totalorder %s9, 1
    %p26 = por %p24, %p25
    %p27 = scmp.ne.s32.totalorder %s19, %s22
    %p28 = scmp.eq.s32.totalorder %s9, 0
    %p29 = por %p27, %p28
    %p30 = scmp.ne.s32.totalorder %s19, %s22
    %p31 = scmp.eq.s32.totalorder %s14, 1
    %p32 = por %p30, %p31
    %p33 = scmp.ne.s32.totalorder %s22, %s23
    %p34 = scmp.eq.s32.totalorder %s14, 0
    %p35 = por %p33, %p34
    %p36 = scmp.ne.s32.totalorder %s22, %s23
    %p37 = scmp.eq.s32.totalorder %s15, 1
    %p38 = por %p36, %p37
    %p40 = scmp.ne.s32.totalorder %s23, %s39
    %p41 = scmp.eq.s32.totalorder %s15, 0
    %p42 = por %p40, %p41
    %s44 = sadd.s32 %s43, 1
    %p47 = scmp.eq.s32.totalorder %s9, 1
    %p48 = scmp.ne.s32.totalorder %s43, %s45
    %p49 = scmp.eq.s32.totalorder %s9, 0
    %p50 = por %p48, %p49
    %p51 = scmp.ne.s32.totalorder %s43, %s45
    %p52 = scmp.eq.s32.totalorder %s14, 1
    %p53 = por %p51, %p52
    %p54 = scmp.ne.s32.totalorder %s45, %s46
    %p55 = scmp.eq.s32.totalorder %s14, 0
    %p56 = por %p54, %p55
    %p57 = scmp.ne.s32.totalorder %s45, %s46
    %p58 = scmp.eq.s32.totalorder %s15, 1
    %p59 = por %p57, %p58
    %p61 = scmp.ne.s32.totalorder %s46, %s60
    %p62 = scmp.eq.s32.totalorder %s15, 0
    %p63 = por %p61, %p62
    %s65 = sadd.s32 %s64, 1
    %p68 = scmp.eq.s32.totalorder %s9, 1
    %p69 = scmp.ne.s32.totalorder %s64, %s66
    %p70 = scmp.eq.s32.totalorder %s9, 0
    %p71 = por %p69, %p70
    %p72 = scmp.ne.s32.totalorder %s64, %s66
    %p73 = scmp.eq.s32.totalorder %s14, 1
    %p74 = por %p72, %p73
    %p75 = scmp.ne.s32.totalorder %s66, %s67
    %p76 = scmp.eq.s32.totalorder %s14, 0
    %p77 = por %p75, %p76
    %p78 = scmp.ne.s32.totalorder %s66, %s67
    %p79 = scmp.eq.s32.totalorder %s15, 1
    %p80 = por %p78, %p79
    %p82 = scmp.ne.s32.totalorder %s67, %s81
    %p83 = scmp.eq.s32.totalorder %s15, 0
    %p84 = por %p82, %p83
    %s85 = ssub.s32 %s9, %s16
    %p86 = scmp.eq.s32.totalorder %s85, 0
    %s88 = sadd.s32 %s87, 1
    %s89 = scalar_select %p86, %s87, %s88
    %p92 = pneg %p86
    %p93 = scmp.eq.s32.totalorder %s9, 1
    %p94 = por %p92, %p93
    %p95 = scmp.ne.s32.totalorder %s87, %s90
    %p96 = scmp.eq.s32.totalorder %s9, 0
    %p97 = por %p95, %p96
    %p98 = scmp.ne.s32.totalorder %s87, %s90
    %p99 = scmp.eq.s32.totalorder %s14, 1
    %p100 = por %p98, %p99
    %p101 = scmp.ne.s32.totalorder %s90, %s91
    %p102 = scmp.eq.s32.totalorder %s14, 0
    %p103 = por %p101, %p102
    %p104 = scmp.ne.s32.totalorder %s90, %s91
    %p105 = scmp.eq.s32.totalorder %s15, 1
    %p106 = por %p104, %p105
    %p108 = scmp.ne.s32.totalorder %s91, %s107
    %p109 = scmp.eq.s32.totalorder %s15, 0
    %p110 = por %p108, %p109
    %p111 = scmp.le.s32.totalorder 1, %s9
    %p112 = scmp.lt.s32.totalorder %s9, 3
    %p113 = pnand %p111, %p112
    %p114 = pneg %p113
    // Predicated region
    $region9: #{classifier_forward.8} parent=5 // pred_check
      _
    $region10: #{classifier_forward.8} parent=5 // pred_check_branch
      %116 = sbr.rel (%p113) target = $region12
    $region11: #{classifier_forward.8} parent=5 // pred_region
      %s117 = ssub.s32 %s9, 1
      // Predicated region
      $region13: #{classifier_forward.8} parent=11 // pred_check
        %p118 = pneg %p56
      $region14: #{classifier_forward.8} parent=11 // pred_check_branch
        %120 = sbr.rel (%p118) target = $region16
      $region15: #{classifier_forward.8} parent=11 // pred_region
        _
      $region16: #{classifier_forward.8} parent=11 // pred_fallthru
        _
      // Predicated region
      $region17: #{classifier_forward.8} parent=11 // pred_check
        %p121 = pneg %p77
      $region18: #{classifier_forward.8} parent=11 // pred_check_branch
        %123 = sbr.rel (%p121) target = $region20
      $region19: #{classifier_forward.8} parent=11 // pred_region
        _
      $region20: #{classifier_forward.8} parent=11 // pred_fallthru
        _
    $region12: #{classifier_forward.8} parent=5 // pred_fallthru
      _
    %p124 = scmp.lt.s32.totalorder %s9, 2
    // Predicated region
    $region21: #{classifier_forward.8} parent=5 // pred_check
      %p125 = pneg %p124
    $region22: #{classifier_forward.8} parent=5 // pred_check_branch
      %127 = sbr.rel (%p125) target = $region24
    $region23: #{classifier_forward.8} parent=5 // pred_region
      // Predicated region
      $region25: #{classifier_forward.8} parent=23 // pred_check
        %p128 = pneg %p29
      $region26: #{classifier_forward.8} parent=23 // pred_check_branch
        %130 = sbr.rel (%p128) target = $region28
      $region27: #{classifier_forward.8} parent=23 // pred_region
        %p131 = scmp.lt.s32.totalorder %s9, 1
        %s132 = scalar_select %p131, %s9, 1
        %s133 = smul.addr %s132, 128
        %s134 = smul.addr %s133, 8
        %s135 = scalar_lea.vmem %s0, %s134
      $region28: #{classifier_forward.8} parent=23 // pred_fallthru
        _
    $region24: #{classifier_forward.8} parent=5 // pred_fallthru
      _
    %p136 = scmp.le.s32.totalorder 1, %s9
    %p137 = scmp.lt.s32.totalorder %s9, 3
    %p138 = pnand %p136, %p137
    %p139 = pneg %p138
    // Predicated region
    $region29: #{classifier_forward.8} parent=5 // pred_check
      _
    $region30: #{classifier_forward.8} parent=5 // pred_check_branch
      %141 = sbr.rel (%p138) target = $region32
    $region31: #{classifier_forward.8} parent=5 // pred_region
      %s142 = ssub.s32 %s9, 1
      %p143 = scmp.lt.s32.totalorder %s14, 1
      %s144 = scalar_select %p143, %s14, 1
      %s145 = smul.addr %s144, 128
      %s146 = smul.addr %s145, 8
      %s147 = scalar_lea.vmem %s0, %s146
      %p148 = pneg %p35
      %p149 = pneg %p32
      %p150 = pneg %p56
      %p151 = pneg %p53
      %p152 = pneg %p77
      %p153 = pneg %p74
      %p154 = pneg %p103
      %p155 = pneg %p100
      %p156 = scmp.lt.s32.totalorder %s14, 1
      %s157 = scalar_select %p156, %s14, 1
      %s158 = smul.addr %s157, 4
      %s159 = smul.addr %s158, 8
      %s160 = scalar_lea.vmem %s3, %s159
      %p161 = scmp.lt.s32.totalorder %s14, 1
      %s162 = scalar_select %p161, %s14, 1
      %s163 = smul.addr %s162, 128
      %s164 = smul.addr %s163, 8
      %s165 = scalar_lea.vmem %s0, %s164
      %p166 = scmp.lt.s32.totalorder %s14, 1
      %s167 = scalar_select %p166, %s14, 1
      %s168 = smul.addr %s167, 4
      %s169 = smul.addr %s168, 8
      %s170 = scalar_lea.vmem %s3, %s169
      %v171 = vld [vmem:[%s1] sm:$0xff]
      %v172 = vld [vmem:[%s1 + $0x8] sm:$0xff]
      %v173 = vld [vmem:[%s1 + $0x10] sm:$0xff]
      %v174 = vld [vmem:[%s1 + $0x18] sm:$0xff]
      %v175 = vld [vmem:[%s1 + $0x20] sm:$0xff]
      %v176 = vld [vmem:[%s1 + $0x28] sm:$0xff]
      %v177 = vld [vmem:[%s1 + $0x30] sm:$0xff]
      %v178 = vld [vmem:[%s1 + $0x38] sm:$0xff]
      %v179 = vld [vmem:[%s1 + $0x40] sm:$0xff]
      %v180 = vld [vmem:[%s1 + $0x48] sm:$0xff]
      %v181 = vld [vmem:[%s1 + $0x50] sm:$0xff]
      %v182 = vld [vmem:[%s1 + $0x58] sm:$0xff]
      %v183 = vld [vmem:[%s1 + $0x60] sm:$0xff]
      %v184 = vld [vmem:[%s1 + $0x68] sm:$0xff]
      %v185 = vld [vmem:[%s1 + $0x70] sm:$0xff]
      %v186 = vld [vmem:[%s1 + $0x78] sm:$0xff]
      %v187 = vld [vmem:[%s1 + $0x80] sm:$0xff]
      %v188 = vld [vmem:[%s1 + $0x88] sm:$0xff]
      %v189 = vld [vmem:[%s1 + $0x90] sm:$0xff]
      %v190 = vld [vmem:[%s1 + $0x98] sm:$0xff]
      %v191 = vld [vmem:[%s1 + $0xa0] sm:$0xff]
      %v192 = vld [vmem:[%s1 + $0xa8] sm:$0xff]
      %v193 = vld [vmem:[%s1 + $0xb0] sm:$0xff]
      %v194 = vld [vmem:[%s1 + $0xb8] sm:$0xff]
      %v195 = vld [vmem:[%s1 + $0xc0] sm:$0xff]
      %v196 = vld [vmem:[%s1 + $0xc8] sm:$0xff]
      %v197 = vld [vmem:[%s1 + $0xd0] sm:$0xff]
      %v198 = vld [vmem:[%s1 + $0xd8] sm:$0xff]
      %v199 = vld [vmem:[%s1 + $0xe0] sm:$0xff]
      %v200 = vld [vmem:[%s1 + $0xe8] sm:$0xff]
      %v201 = vld [vmem:[%s1 + $0xf0] sm:$0xff]
      %v202 = vld [vmem:[%s1 + $0xf8] sm:$0xff]
      %v203 = vld [vmem:[%s165] sm:$0xff]
      %v204 = vld [vmem:[%s165 + $0x8] sm:$0xff]
      %v205 = vld [vmem:[%s165 + $0x10] sm:$0xff]
      %v206 = vld [vmem:[%s165 + $0x18] sm:$0xff]
      %v207 = vld [vmem:[%s165 + $0x20] sm:$0xff]
      %v208 = vld [vmem:[%s165 + $0x28] sm:$0xff]
      %v209 = vld [vmem:[%s165 + $0x30] sm:$0xff]
      %v210 = vld [vmem:[%s165 + $0x38] sm:$0xff]
      %v211 = vld [vmem:[%s165 + $0x40] sm:$0xff]
      %v212 = vld [vmem:[%s165 + $0x48] sm:$0xff]
      %v213 = vld [vmem:[%s165 + $0x50] sm:$0xff]
      %v214 = vld [vmem:[%s165 + $0x58] sm:$0xff]
      %v215 = vld [vmem:[%s165 + $0x60] sm:$0xff]
      %v216 = vld [vmem:[%s165 + $0x68] sm:$0xff]
      %v217 = vld [vmem:[%s165 + $0x70] sm:$0xff]
      %v218 = vld [vmem:[%s165 + $0x78] sm:$0xff]
      %v219 = vld [vmem:[%s165 + $0x80] sm:$0xff]
      %v220 = vld [vmem:[%s165 + $0x88] sm:$0xff]
      %v221 = vld [vmem:[%s165 + $0x90] sm:$0xff]
      %v222 = vld [vmem:[%s165 + $0x98] sm:$0xff]
      %v223 = vld [vmem:[%s165 + $0xa0] sm:$0xff]
      %v224 = vld [vmem:[%s165 + $0xa8] sm:$0xff]
      %v225 = vld [vmem:[%s165 + $0xb0] sm:$0xff]
      %v226 = vld [vmem:[%s165 + $0xb8] sm:$0xff]
      %v227 = vld [vmem:[%s165 + $0xc0] sm:$0xff]
      %v228 = vld [vmem:[%s165 + $0xc8] sm:$0xff]
      %v229 = vld [vmem:[%s165 + $0xd0] sm:$0xff]
      %v230 = vld [vmem:[%s165 + $0xd8] sm:$0xff]
      %v231 = vld [vmem:[%s165 + $0xe0] sm:$0xff]
      %v232 = vld [vmem:[%s165 + $0xe8] sm:$0xff]
      %v233 = vld [vmem:[%s165 + $0xf0] sm:$0xff]
      %v234 = vld [vmem:[%s165 + $0xf8] sm:$0xff]
      %v235 = vld [vmem:[%s165 + $0x100] sm:$0xff]
      %v236 = vld [vmem:[%s165 + $0x108] sm:$0xff]
      %v237 = vld [vmem:[%s165 + $0x110] sm:$0xff]
      %v238 = vld [vmem:[%s165 + $0x118] sm:$0xff]
      %v239 = vld [vmem:[%s165 + $0x120] sm:$0xff]
      %v240 = vld [vmem:[%s165 + $0x128] sm:$0xff]
      %v241 = vld [vmem:[%s165 + $0x130] sm:$0xff]
      %v242 = vld [vmem:[%s165 + $0x138] sm:$0xff]
      %v243 = vld [vmem:[%s165 + $0x140] sm:$0xff]
      %v244 = vld [vmem:[%s165 + $0x148] sm:$0xff]
      %v245 = vld [vmem:[%s165 + $0x150] sm:$0xff]
      %v246 = vld [vmem:[%s165 + $0x158] sm:$0xff]
      %v247 = vld [vmem:[%s165 + $0x160] sm:$0xff]
      %v248 = vld [vmem:[%s165 + $0x168] sm:$0xff]
      %v249 = vld [vmem:[%s165 + $0x170] sm:$0xff]
      %v250 = vld [vmem:[%s165 + $0x178] sm:$0xff]
      %v251 = vld [vmem:[%s165 + $0x180] sm:$0xff]
      %v252 = vld [vmem:[%s165 + $0x188] sm:$0xff]
      %v253 = vld [vmem:[%s165 + $0x190] sm:$0xff]
      %v254 = vld [vmem:[%s165 + $0x198] sm:$0xff]
      %v255 = vld [vmem:[%s165 + $0x1a0] sm:$0xff]
      %v256 = vld [vmem:[%s165 + $0x1a8] sm:$0xff]
      %v257 = vld [vmem:[%s165 + $0x1b0] sm:$0xff]
      %v258 = vld [vmem:[%s165 + $0x1b8] sm:$0xff]
      %v259 = vld [vmem:[%s165 + $0x1c0] sm:$0xff]
      %v260 = vld [vmem:[%s165 + $0x1c8] sm:$0xff]
      %v261 = vld [vmem:[%s165 + $0x1d0] sm:$0xff]
      %v262 = vld [vmem:[%s165 + $0x1d8] sm:$0xff]
      %v263 = vld [vmem:[%s165 + $0x1e0] sm:$0xff]
      %v264 = vld [vmem:[%s165 + $0x1e8] sm:$0xff]
      %v265 = vld [vmem:[%s165 + $0x1f0] sm:$0xff]
      %v266 = vld [vmem:[%s165 + $0x1f8] sm:$0xff]
      %v267 = vld [vmem:[%s165 + $0x200] sm:$0xff]
      %v268 = vld [vmem:[%s165 + $0x208] sm:$0xff]
      %v269 = vld [vmem:[%s165 + $0x210] sm:$0xff]
      %v270 = vld [vmem:[%s165 + $0x218] sm:$0xff]
      %v271 = vld [vmem:[%s165 + $0x220] sm:$0xff]
      %v272 = vld [vmem:[%s165 + $0x228] sm:$0xff]
      %v273 = vld [vmem:[%s165 + $0x230] sm:$0xff]
      %v274 = vld [vmem:[%s165 + $0x238] sm:$0xff]
      %v275 = vld [vmem:[%s165 + $0x240] sm:$0xff]
      %v276 = vld [vmem:[%s165 + $0x248] sm:$0xff]
      %v277 = vld [vmem:[%s165 + $0x250] sm:$0xff]
      %v278 = vld [vmem:[%s165 + $0x258] sm:$0xff]
      %v279 = vld [vmem:[%s165 + $0x260] sm:$0xff]
      %v280 = vld [vmem:[%s165 + $0x268] sm:$0xff]
      %v281 = vld [vmem:[%s165 + $0x270] sm:$0xff]
      %v282 = vld [vmem:[%s165 + $0x278] sm:$0xff]
      %v283 = vld [vmem:[%s165 + $0x280] sm:$0xff]
      %v284 = vld [vmem:[%s165 + $0x288] sm:$0xff]
      %v285 = vld [vmem:[%s165 + $0x290] sm:$0xff]
      %v286 = vld [vmem:[%s165 + $0x298] sm:$0xff]
      %v287 = vld [vmem:[%s165 + $0x2a0] sm:$0xff]
      %v288 = vld [vmem:[%s165 + $0x2a8] sm:$0xff]
      %v289 = vld [vmem:[%s165 + $0x2b0] sm:$0xff]
      %v290 = vld [vmem:[%s165 + $0x2b8] sm:$0xff]
      %v291 = vld [vmem:[%s165 + $0x2c0] sm:$0xff]
      %v292 = vld [vmem:[%s165 + $0x2c8] sm:$0xff]
      %v293 = vld [vmem:[%s165 + $0x2d0] sm:$0xff]
      %v294 = vld [vmem:[%s165 + $0x2d8] sm:$0xff]
      %v295 = vld [vmem:[%s165 + $0x2e0] sm:$0xff]
      %v296 = vld [vmem:[%s165 + $0x2e8] sm:$0xff]
      %v297 = vld [vmem:[%s165 + $0x2f0] sm:$0xff]
      %v298 = vld [vmem:[%s165 + $0x2f8] sm:$0xff]
      %v299 = vld [vmem:[%s165 + $0x300] sm:$0xff]
      %v300 = vld [vmem:[%s165 + $0x308] sm:$0xff]
      %v301 = vld [vmem:[%s165 + $0x310] sm:$0xff]
      %v302 = vld [vmem:[%s165 + $0x318] sm:$0xff]
      %v303 = vld [vmem:[%s165 + $0x320] sm:$0xff]
      %v304 = vld [vmem:[%s165 + $0x328] sm:$0xff]
      %v305 = vld [vmem:[%s165 + $0x330] sm:$0xff]
      %v306 = vld [vmem:[%s165 + $0x338] sm:$0xff]
      %v307 = vld [vmem:[%s165 + $0x340] sm:$0xff]
      %v308 = vld [vmem:[%s165 + $0x348] sm:$0xff]
      %v309 = vld [vmem:[%s165 + $0x350] sm:$0xff]
      %v310 = vld [vmem:[%s165 + $0x358] sm:$0xff]
      %v311 = vld [vmem:[%s165 + $0x360] sm:$0xff]
      %v312 = vld [vmem:[%s165 + $0x368] sm:$0xff]
      %v313 = vld [vmem:[%s165 + $0x370] sm:$0xff]
      %v314 = vld [vmem:[%s165 + $0x378] sm:$0xff]
      %v315 = vld [vmem:[%s165 + $0x380] sm:$0xff]
      %v316 = vld [vmem:[%s165 + $0x388] sm:$0xff]
      %v317 = vld [vmem:[%s165 + $0x390] sm:$0xff]
      %v318 = vld [vmem:[%s165 + $0x398] sm:$0xff]
      %v319 = vld [vmem:[%s165 + $0x3a0] sm:$0xff]
      %v320 = vld [vmem:[%s165 + $0x3a8] sm:$0xff]
      %v321 = vld [vmem:[%s165 + $0x3b0] sm:$0xff]
      %v322 = vld [vmem:[%s165 + $0x3b8] sm:$0xff]
      %v323 = vld [vmem:[%s165 + $0x3c0] sm:$0xff]
      %v324 = vld [vmem:[%s165 + $0x3c8] sm:$0xff]
      %v325 = vld [vmem:[%s165 + $0x3d0] sm:$0xff]
      %v326 = vld [vmem:[%s165 + $0x3d8] sm:$0xff]
      %v327 = vld [vmem:[%s165 + $0x3e0] sm:$0xff]
      %v328 = vld [vmem:[%s165 + $0x3e8] sm:$0xff]
      %v329 = vld [vmem:[%s165 + $0x3f0] sm:$0xff]
      %v330 = vld [vmem:[%s165 + $0x3f8] sm:$0xff]
      %v331 = vld [vmem:[%s2] sm:$0xff]
      %v332 = vld [vmem:[%s2 + $0x8] sm:$0xff]
      %v333 = vld [vmem:[%s2 + $0x10] sm:$0xff]
      %v334 = vld [vmem:[%s2 + $0x18] sm:$0xff]
      %336 = vset.pattern.permute.xlu0 0
      %337 = vperm.xlu0 %336, %v331
      %v338 = vpop.permute.xlu0 %337
      %341 = vset.pattern.permute.xlu0 0
      %342 = vperm.xlu0 %341, %v332
      %v343 = vpop.permute.xlu0 %342
      %346 = vset.pattern.permute.xlu0 0
      %347 = vperm.xlu0 %346, %v333
      %v348 = vpop.permute.xlu0 %347
      %351 = vset.pattern.permute.xlu0 0
      %352 = vperm.xlu0 %351, %v334
      %v353 = vpop.permute.xlu0 %352
      %355 = vmatprep.subr.mxu0 0.0
      %356 = vmatpush1.msra.mxu0 %v218
      %357 = vmatprep.subr.mxu0 0.0
      %358 = vmatpush1.msra.mxu0 %v217
      %359 = vmatprep.subr.mxu0 0.0
      %360 = vmatpush1.msra.mxu0 %v216
      %361 = vmatprep.subr.mxu0 0.0
      %362 = vmatpush1.msra.mxu0 %v215
      %363 = vmatprep.subr.mxu0 0.0
      %364 = vmatpush1.msra.mxu0 %v214
      %365 = vmatprep.subr.mxu0 0.0
      %366 = vmatpush1.msra.mxu0 %v213
      %367 = vmatprep.subr.mxu0 0.0
      %368 = vmatpush1.msra.mxu0 %v212
      %369 = vmatprep.subr.mxu0 0.0
      %370 = vmatpush1.msra.mxu0 %v211
      %371 = vmatprep.subr.mxu0 0.0
      %372 = vmatpush1.msra.mxu0 %v210
      %373 = vmatprep.subr.mxu0 0.0
      %374 = vmatpush1.msra.mxu0 %v209
      %375 = vmatprep.subr.mxu0 0.0
      %376 = vmatpush1.msra.mxu0 %v208
      %377 = vmatprep.subr.mxu0 0.0
      %378 = vmatpush1.msra.mxu0 %v207
      %379 = vmatprep.subr.mxu0 0.0
      %380 = vmatpush1.msra.mxu0 %v206
      %381 = vmatprep.subr.mxu0 0.0
      %382 = vmatpush1.msra.mxu0 %v205
      %383 = vmatprep.subr.mxu0 0.0
      %384 = vmatpush1.msra.mxu0 %v204
      %385 = vmatprep.subr.mxu0 0.0
      %386 = vmatpush1.msra.mxu0 %v203
      %387 = vmatprep.subr.mxu0 0.0
      %388 = vmatpush2.msra.mxu0 %v234
      %389 = vmatprep.subr.mxu0 0.0
      %390 = vmatpush2.msra.mxu0 %v233
      %391 = vmatprep.subr.mxu0 0.0
      %392 = vmatpush2.msra.mxu0 %v232
      %393 = vmatprep.subr.mxu0 0.0
      %394 = vmatpush2.msra.mxu0 %v231
      %395 = vmatprep.subr.mxu0 0.0
      %396 = vmatpush2.msra.mxu0 %v230
      %397 = vmatprep.subr.mxu0 0.0
      %398 = vmatpush2.msra.mxu0 %v229
      %399 = vmatprep.subr.mxu0 0.0
      %400 = vmatpush2.msra.mxu0 %v228
      %401 = vmatprep.subr.mxu0 0.0
      %402 = vmatpush2.msra.mxu0 %v227
      %403 = vmatprep.subr.mxu0 0.0
      %404 = vmatpush2.msra.mxu0 %v226
      %405 = vmatprep.subr.mxu0 0.0
      %406 = vmatpush2.msra.mxu0 %v225
      %407 = vmatprep.subr.mxu0 0.0
      %408 = vmatpush2.msra.mxu0 %v224
      %409 = vmatprep.subr.mxu0 0.0
      %410 = vmatpush2.msra.mxu0 %v223
      %411 = vmatprep.subr.mxu0 0.0
      %412 = vmatpush2.msra.mxu0 %v222
      %413 = vmatprep.subr.mxu0 0.0
      %414 = vmatpush2.msra.mxu0 %v221
      %415 = vmatprep.subr.mxu0 0.0
      %416 = vmatpush2.msra.mxu0 %v220
      %417 = vmatprep.subr.mxu0 0.0
      %418 = vmatpush2.msra.mxu0 %v219
      %419 = vmatprep.mubr.f32.mxu0 %v172
      %420 = vmatmul.mubr.f32.gmra.mxu0 %v171
      %v421 = vpop.f32.mrf.mxu0
      %v422 = vadd.f32 %v338, %v421
      %v423 = vpop.f32.mrf.mxu0
      %424 = vmatprep.mubr.f32.mxu0 %v180
      %425 = vmatmul.mubr.f32.gmra.mxu0 %v179
      %v426 = vpop.f32.mrf.mxu0
      %v427 = vadd.f32 %v343, %v426
      %v428 = vpop.f32.mrf.mxu0
      %429 = vmatprep.mubr.f32.mxu0 %v188
      %430 = vmatmul.mubr.f32.gmra.mxu0 %v187
      %v431 = vpop.f32.mrf.mxu0
      %v432 = vadd.f32 %v348, %v431
      %v433 = vpop.f32.mrf.mxu0
      %434 = vmatprep.mubr.f32.mxu0 %v196
      %435 = vmatmul.mubr.f32.gmra.mxu0 %v195
      %v436 = vpop.f32.mrf.mxu0
      %v437 = vadd.f32 %v353, %v436
      %v438 = vpop.f32.mrf.mxu0
      %439 = vdwg.mxu0
      %440 = vmatprep.subr.mxu0 0.0
      %441 = vmatpush1.msra.mxu0 %v250
      %442 = vmatprep.subr.mxu0 0.0
      %443 = vmatpush1.msra.mxu0 %v249
      %444 = vmatprep.subr.mxu0 0.0
      %445 = vmatpush1.msra.mxu0 %v248
      %446 = vmatprep.subr.mxu0 0.0
      %447 = vmatpush1.msra.mxu0 %v247
      %448 = vmatprep.subr.mxu0 0.0
      %449 = vmatpush1.msra.mxu0 %v246
      %450 = vmatprep.subr.mxu0 0.0
      %451 = vmatpush1.msra.mxu0 %v245
      %452 = vmatprep.subr.mxu0 0.0
      %453 = vmatpush1.msra.mxu0 %v244
      %454 = vmatprep.subr.mxu0 0.0
      %455 = vmatpush1.msra.mxu0 %v243
      %456 = vmatprep.subr.mxu0 0.0
      %457 = vmatpush1.msra.mxu0 %v242
      %458 = vmatprep.subr.mxu0 0.0
      %459 = vmatpush1.msra.mxu0 %v241
      %460 = vmatprep.subr.mxu0 0.0
      %461 = vmatpush1.msra.mxu0 %v240
      %462 = vmatprep.subr.mxu0 0.0
      %463 = vmatpush1.msra.mxu0 %v239
      %464 = vmatprep.subr.mxu0 0.0
      %465 = vmatpush1.msra.mxu0 %v238
      %466 = vmatprep.subr.mxu0 0.0
      %467 = vmatpush1.msra.mxu0 %v237
      %468 = vmatprep.subr.mxu0 0.0
      %469 = vmatpush1.msra.mxu0 %v236
      %470 = vmatprep.subr.mxu0 0.0
      %471 = vmatpush1.msra.mxu0 %v235
      %472 = vmatprep.subr.mxu0 0.0
      %473 = vmatpush2.msra.mxu0 %v266
      %474 = vmatprep.subr.mxu0 0.0
      %475 = vmatpush2.msra.mxu0 %v265
      %476 = vmatprep.subr.mxu0 0.0
      %477 = vmatpush2.msra.mxu0 %v264
      %478 = vmatprep.subr.mxu0 0.0
      %479 = vmatpush2.msra.mxu0 %v263
      %480 = vmatprep.subr.mxu0 0.0
      %481 = vmatpush2.msra.mxu0 %v262
      %482 = vmatprep.subr.mxu0 0.0
      %483 = vmatpush2.msra.mxu0 %v261
      %484 = vmatprep.subr.mxu0 0.0
      %485 = vmatpush2.msra.mxu0 %v260
      %486 = vmatprep.subr.mxu0 0.0
      %487 = vmatpush2.msra.mxu0 %v259
      %488 = vmatprep.subr.mxu0 0.0
      %489 = vmatpush2.msra.mxu0 %v258
      %490 = vmatprep.subr.mxu0 0.0
      %491 = vmatpush2.msra.mxu0 %v257
      %492 = vmatprep.subr.mxu0 0.0
      %493 = vmatpush2.msra.mxu0 %v256
      %494 = vmatprep.subr.mxu0 0.0
      %495 = vmatpush2.msra.mxu0 %v255
      %496 = vmatprep.subr.mxu0 0.0
      %497 = vmatpush2.msra.mxu0 %v254
      %498 = vmatprep.subr.mxu0 0.0
      %499 = vmatpush2.msra.mxu0 %v253
      %500 = vmatprep.subr.mxu0 0.0
      %501 = vmatpush2.msra.mxu0 %v252
      %502 = vmatprep.subr.mxu0 0.0
      %503 = vmatpush2.msra.mxu0 %v251
      %504 = vmatprep.mubr.f32.mxu0 %v174
      %505 = vmatmul.mubr.f32.gmra.mxu0 %v173
      %v506 = vpop.f32.mrf.mxu0
      %v507 = vadd.f32 %v422, %v506
      %v508 = vpop.f32.mrf.mxu0
      %509 = vmatprep.mubr.f32.mxu0 %v182
      %510 = vmatmul.mubr.f32.gmra.mxu0 %v181
      %v511 = vpop.f32.mrf.mxu0
      %v512 = vadd.f32 %v427, %v511
      %v513 = vpop.f32.mrf.mxu0
      %514 = vmatprep.mubr.f32.mxu0 %v190
      %515 = vmatmul.mubr.f32.gmra.mxu0 %v189
      %v516 = vpop.f32.mrf.mxu0
      %v517 = vadd.f32 %v432, %v516
      %v518 = vpop.f32.mrf.mxu0
      %519 = vmatprep.mubr.f32.mxu0 %v198
      %520 = vmatmul.mubr.f32.gmra.mxu0 %v197
      %v521 = vpop.f32.mrf.mxu0
      %v522 = vadd.f32 %v437, %v521
      %v523 = vpop.f32.mrf.mxu0
      %524 = vdwg.mxu0
      %525 = vmatprep.subr.mxu0 0.0
      %526 = vmatpush1.msra.mxu0 %v282
      %527 = vmatprep.subr.mxu0 0.0
      %528 = vmatpush1.msra.mxu0 %v281
      %529 = vmatprep.subr.mxu0 0.0
      %530 = vmatpush1.msra.mxu0 %v280
      %531 = vmatprep.subr.mxu0 0.0
      %532 = vmatpush1.msra.mxu0 %v279
      %533 = vmatprep.subr.mxu0 0.0
      %534 = vmatpush1.msra.mxu0 %v278
      %535 = vmatprep.subr.mxu0 0.0
      %536 = vmatpush1.msra.mxu0 %v277
      %537 = vmatprep.subr.mxu0 0.0
      %538 = vmatpush1.msra.mxu0 %v276
      %539 = vmatprep.subr.mxu0 0.0
      %540 = vmatpush1.msra.mxu0 %v275
      %541 = vmatprep.subr.mxu0 0.0
      %542 = vmatpush1.msra.mxu0 %v274
      %543 = vmatprep.subr.mxu0 0.0
      %544 = vmatpush1.msra.mxu0 %v273
      %545 = vmatprep.subr.mxu0 0.0
      %546 = vmatpush1.msra.mxu0 %v272
      %547 = vmatprep.subr.mxu0 0.0
      %548 = vmatpush1.msra.mxu0 %v271
      %549 = vmatprep.subr.mxu0 0.0
      %550 = vmatpush1.msra.mxu0 %v270
      %551 = vmatprep.subr.mxu0 0.0
      %552 = vmatpush1.msra.mxu0 %v269
      %553 = vmatprep.subr.mxu0 0.0
      %554 = vmatpush1.msra.mxu0 %v268
      %555 = vmatprep.subr.mxu0 0.0
      %556 = vmatpush1.msra.mxu0 %v267
      %557 = vmatprep.subr.mxu0 0.0
      %558 = vmatpush2.msra.mxu0 %v298
      %559 = vmatprep.subr.mxu0 0.0
      %560 = vmatpush2.msra.mxu0 %v297
      %561 = vmatprep.subr.mxu0 0.0
      %562 = vmatpush2.msra.mxu0 %v296
      %563 = vmatprep.subr.mxu0 0.0
      %564 = vmatpush2.msra.mxu0 %v295
      %565 = vmatprep.subr.mxu0 0.0
      %566 = vmatpush2.msra.mxu0 %v294
      %567 = vmatprep.subr.mxu0 0.0
      %568 = vmatpush2.msra.mxu0 %v293
      %569 = vmatprep.subr.mxu0 0.0
      %570 = vmatpush2.msra.mxu0 %v292
      %571 = vmatprep.subr.mxu0 0.0
      %572 = vmatpush2.msra.mxu0 %v291
      %573 = vmatprep.subr.mxu0 0.0
      %574 = vmatpush2.msra.mxu0 %v290
      %575 = vmatprep.subr.mxu0 0.0
      %576 = vmatpush2.msra.mxu0 %v289
      %577 = vmatprep.subr.mxu0 0.0
      %578 = vmatpush2.msra.mxu0 %v288
      %579 = vmatprep.subr.mxu0 0.0
      %580 = vmatpush2.msra.mxu0 %v287
      %581 = vmatprep.subr.mxu0 0.0
      %582 = vmatpush2.msra.mxu0 %v286
      %583 = vmatprep.subr.mxu0 0.0
      %584 = vmatpush2.msra.mxu0 %v285
      %585 = vmatprep.subr.mxu0 0.0
      %586 = vmatpush2.msra.mxu0 %v284
      %587 = vmatprep.subr.mxu0 0.0
      %588 = vmatpush2.msra.mxu0 %v283
      %589 = vmatprep.mubr.f32.mxu0 %v176
      %590 = vmatmul.mubr.f32.gmra.mxu0 %v175
      %v591 = vpop.f32.mrf.mxu0
      %v592 = vadd.f32 %v507, %v591
      %v593 = vpop.f32.mrf.mxu0
      %594 = vmatprep.mubr.f32.mxu0 %v184
      %595 = vmatmul.mubr.f32.gmra.mxu0 %v183
      %v596 = vpop.f32.mrf.mxu0
      %v597 = vadd.f32 %v512, %v596
      %v598 = vpop.f32.mrf.mxu0
      %599 = vmatprep.mubr.f32.mxu0 %v192
      %600 = vmatmul.mubr.f32.gmra.mxu0 %v191
      %v601 = vpop.f32.mrf.mxu0
      %v602 = vadd.f32 %v517, %v601
      %v603 = vpop.f32.mrf.mxu0
      %604 = vmatprep.mubr.f32.mxu0 %v200
      %605 = vmatmul.mubr.f32.gmra.mxu0 %v199
      %v606 = vpop.f32.mrf.mxu0
      %v607 = vadd.f32 %v522, %v606
      %v608 = vpop.f32.mrf.mxu0
      %609 = vdwg.mxu0
      %610 = vmatprep.subr.mxu0 0.0
      %611 = vmatpush1.msra.mxu0 %v314
      %612 = vmatprep.subr.mxu0 0.0
      %613 = vmatpush1.msra.mxu0 %v313
      %614 = vmatprep.subr.mxu0 0.0
      %615 = vmatpush1.msra.mxu0 %v312
      %616 = vmatprep.subr.mxu0 0.0
      %617 = vmatpush1.msra.mxu0 %v311
      %618 = vmatprep.subr.mxu0 0.0
      %619 = vmatpush1.msra.mxu0 %v310
      %620 = vmatprep.subr.mxu0 0.0
      %621 = vmatpush1.msra.mxu0 %v309
      %622 = vmatprep.subr.mxu0 0.0
      %623 = vmatpush1.msra.mxu0 %v308
      %624 = vmatprep.subr.mxu0 0.0
      %625 = vmatpush1.msra.mxu0 %v307
      %626 = vmatprep.subr.mxu0 0.0
      %627 = vmatpush1.msra.mxu0 %v306
      %628 = vmatprep.subr.mxu0 0.0
      %629 = vmatpush1.msra.mxu0 %v305
      %630 = vmatprep.subr.mxu0 0.0
      %631 = vmatpush1.msra.mxu0 %v304
      %632 = vmatprep.subr.mxu0 0.0
      %633 = vmatpush1.msra.mxu0 %v303
      %634 = vmatprep.subr.mxu0 0.0
      %635 = vmatpush1.msra.mxu0 %v302
      %636 = vmatprep.subr.mxu0 0.0
      %637 = vmatpush1.msra.mxu0 %v301
      %638 = vmatprep.subr.mxu0 0.0
      %639 = vmatpush1.msra.mxu0 %v300
      %640 = vmatprep.subr.mxu0 0.0
      %641 = vmatpush1.msra.mxu0 %v299
      %642 = vmatprep.subr.mxu0 0.0
      %643 = vmatpush2.msra.mxu0 %v330
      %644 = vmatprep.subr.mxu0 0.0
      %645 = vmatpush2.msra.mxu0 %v329
      %646 = vmatprep.subr.mxu0 0.0
      %647 = vmatpush2.msra.mxu0 %v328
      %648 = vmatprep.subr.mxu0 0.0
      %649 = vmatpush2.msra.mxu0 %v327
      %650 = vmatprep.subr.mxu0 0.0
      %651 = vmatpush2.msra.mxu0 %v326
      %652 = vmatprep.subr.mxu0 0.0
      %653 = vmatpush2.msra.mxu0 %v325
      %654 = vmatprep.subr.mxu0 0.0
      %655 = vmatpush2.msra.mxu0 %v324
      %656 = vmatprep.subr.mxu0 0.0
      %657 = vmatpush2.msra.mxu0 %v323
      %658 = vmatprep.subr.mxu0 0.0
      %659 = vmatpush2.msra.mxu0 %v322
      %660 = vmatprep.subr.mxu0 0.0
      %661 = vmatpush2.msra.mxu0 %v321
      %662 = vmatprep.subr.mxu0 0.0
      %663 = vmatpush2.msra.mxu0 %v320
      %664 = vmatprep.subr.mxu0 0.0
      %665 = vmatpush2.msra.mxu0 %v319
      %666 = vmatprep.subr.mxu0 0.0
      %667 = vmatpush2.msra.mxu0 %v318
      %668 = vmatprep.subr.mxu0 0.0
      %669 = vmatpush2.msra.mxu0 %v317
      %670 = vmatprep.subr.mxu0 0.0
      %671 = vmatpush2.msra.mxu0 %v316
      %672 = vmatprep.subr.mxu0 0.0
      %673 = vmatpush2.msra.mxu0 %v315
      %674 = vmatprep.mubr.f32.mxu0 %v178
      %675 = vmatmul.mubr.f32.gmra.mxu0 %v177
      %v676 = vpop.f32.mrf.mxu0
      %v677 = vadd.f32 %v592, %v676
      %v678 = vpop.f32.mrf.mxu0
      %679 = vmatprep.mubr.f32.mxu0 %v186
      %680 = vmatmul.mubr.f32.gmra.mxu0 %v185
      %v681 = vpop.f32.mrf.mxu0
      %v682 = vadd.f32 %v597, %v681
      %v683 = vpop.f32.mrf.mxu0
      %684 = vmatprep.mubr.f32.mxu0 %v194
      %685 = vmatmul.mubr.f32.gmra.mxu0 %v193
      %v686 = vpop.f32.mrf.mxu0
      %v687 = vadd.f32 %v602, %v686
      %v688 = vpop.f32.mrf.mxu0
      %689 = vmatprep.mubr.f32.mxu0 %v202
      %690 = vmatmul.mubr.f32.gmra.mxu0 %v201
      %v691 = vpop.f32.mrf.mxu0
      %v692 = vadd.f32 %v607, %v691
      %v693 = vpop.f32.mrf.mxu0
      %694 = vdwg.mxu0
      %vm695 = vcmask 64512
      %v696 = vsel %vm695, %v677, 0.0
      %697 = vadd.xlane.f32.xlu0 %v696
      %v698 = vpop.xlane.xlu0 %697
      %v699 = vsel %vm695, %v682, 0.0
      %700 = vadd.xlane.f32.xlu0 %v699
      %v701 = vpop.xlane.xlu0 %700
      %v702 = vsel %vm695, %v687, 0.0
      %703 = vadd.xlane.f32.xlu0 %v702
      %v704 = vpop.xlane.xlu0 %703
      %v705 = vsel %vm695, %v692, 0.0
      %706 = vadd.xlane.f32.xlu0 %v705
      %v707 = vpop.xlane.xlu0 %706
      %v708 = vmul.f32 %v698, 0.125
      %v709 = vmul.f32 %v701, 0.125
      %v710 = vmul.f32 %v704, 0.125
      %v711 = vmul.f32 %v707, 0.125
      %v712 = vmul.f32 %v677, %v677
      %v713 = vmul.f32 %v682, %v682
      %v714 = vmul.f32 %v687, %v687
      %v715 = vmul.f32 %v692, %v692
      %v716 = vsel %vm695, %v712, 0.0
      %717 = vadd.xlane.f32.xlu0 %v716
      %v718 = vpop.xlane.xlu0 %717
      %v719 = vsel %vm695, %v713, 0.0
      %720 = vadd.xlane.f32.xlu0 %v719
      %v721 = vpop.xlane.xlu0 %720
      %v722 = vsel %vm695, %v714, 0.0
      %723 = vadd.xlane.f32.xlu0 %v722
      %v724 = vpop.xlane.xlu0 %723
      %v725 = vsel %vm695, %v715, 0.0
      %726 = vadd.xlane.f32.xlu0 %v725
      %v727 = vpop.xlane.xlu0 %726
      %v728 = vmul.f32 %v718, 0.125
      %v729 = vmul.f32 %v721, 0.125
      %v730 = vmul.f32 %v724, 0.125
      %v731 = vmul.f32 %v727, 0.125
      %v732 = vmul.f32 %v708, %v708
      %v733 = vmul.f32 %v709, %v709
      %v734 = vmul.f32 %v710, %v710
      %v735 = vmul.f32 %v711, %v711
      %v736 = vsub.f32 %v728, %v732
      %v737 = vsub.f32 %v729, %v733
      %v738 = vsub.f32 %v730, %v734
      %v739 = vsub.f32 %v731, %v735
      %v740 = vsub.f32 %v677, %v708
      %v741 = vsub.f32 %v682, %v709
      %v742 = vsub.f32 %v687, %v710
      %v743 = vsub.f32 %v692, %v711
      %v744 = vadd.f32 %v736, 1e-05
      %v745 = vadd.f32 %v737, 1e-05
      %v746 = vadd.f32 %v738, 1e-05
      %v747 = vadd.f32 %v739, 1e-05
      %v748 = vrsqrt.pop %v744
      %v749 = vrsqrt.pop %v745
      %v750 = vrsqrt.pop %v746
      %v751 = vrsqrt.pop %v747
      %v752 = vmul.f32 %v740, %v748
      %v753 = vmul.f32 %v741, %v749
      %v754 = vmul.f32 %v742, %v750
      %v755 = vmul.f32 %v743, %v751
      %vm756 = vcmp.ge.f32.partialorder %v752, 0.0
      %vm757 = vcmp.ge.f32.partialorder %v753, 0.0
      %vm758 = vcmp.ge.f32.partialorder %v754, 0.0
      %vm759 = vcmp.ge.f32.partialorder %v755, 0.0
      %v760 = vmul.f32 %v752, 0.01
      %v761 = vmul.f32 %v753, 0.01
      %v762 = vmul.f32 %v754, 0.01
      %v763 = vmul.f32 %v755, 0.01
      %v764 = vsel %vm756, %v752, %v760
      %v765 = vsel %vm757, %v753, %v761
      %v766 = vsel %vm758, %v754, %v762
      %v767 = vsel %vm759, %v755, %v763
      %768 = vst.msk [vmem:[%s170] sm:$0xff] %vm695, %v764
      %769 = vst.msk [vmem:[%s170 + $0x8] sm:$0xff] %vm695, %v765
      %770 = vst.msk [vmem:[%s170 + $0x10] sm:$0xff] %vm695, %v766
      %771 = vst.msk [vmem:[%s170 + $0x18] sm:$0xff] %vm695, %v767
      %p772 = scmp.lt.s32.totalorder %s14, 1
      %s773 = scalar_select %p772, %s14, 1
      %s774 = smul.addr %s773, 4
      %s775 = smul.addr %s774, 8
      %s776 = scalar_lea.vmem %s3, %s775
      // Predicated region
      $region33: #{classifier_forward.8} parent=31 // pred_check
        %p777 = pneg %p100
      $region34: #{classifier_forward.8} parent=31 // pred_check_branch
        %779 = sbr.rel (%p777) target = $region36
      $region35: #{classifier_forward.8} parent=31 // pred_region
        _
      $region36: #{classifier_forward.8} parent=31 // pred_fallthru
        _
    $region32: #{classifier_forward.8} parent=5 // pred_fallthru
      _
    %p780 = scmp.le.s32.totalorder 2, %s9
    // Predicated region
    $region37: #{classifier_forward.8} parent=5 // pred_check
      %p781 = pneg %p780
    $region38: #{classifier_forward.8} parent=5 // pred_check_branch
      %783 = sbr.rel (%p781) target = $region40
    $region39: #{classifier_forward.8} parent=5 // pred_region
      %s784 = ssub.s32 %s9, 2
      // Predicated region
      $region41: #{classifier_forward.8} parent=39 // pred_check
        %p785 = pneg %p106
      $region42: #{classifier_forward.8} parent=39 // pred_check_branch
        %787 = sbr.rel (%p785) target = $region44
      $region43: #{classifier_forward.8} parent=39 // pred_region
        %p788 = scmp.lt.s32.totalorder %s15, 1
        %s789 = scalar_select %p788, %s15, 1
        %s790 = smul.addr %s789, 4
        %s791 = smul.addr %s790, 8
        %s792 = scalar_lea.vmem %s3, %s791
      $region44: #{classifier_forward.8} parent=39 // pred_fallthru
        _
    $region40: #{classifier_forward.8} parent=5 // pred_fallthru
      _
  $region6: #{classifier_forward.8} parent=0 // loop_footer
    %s13 = sadd.s32 1, %s9
  $region7: #{classifier_forward.8} parent=0 // loop_footer_branch
    %8 = sbr.rel target = $region3
  $region8: #{classifier_forward.8} parent=0 // loop_exit
    _

// kernel: classifier_forward.9
$region0: #{classifier_forward.9}
  #allocation0 [shape = 'u32[]', space=smem, size = 0x4, offset = 0x4, fixed_abs, tag = 'smem constant byte address 0x4 - core index']
  #allocation1 [shape = 'u32[144,128]{1,0:T(1,128)}', space=vmem, size = 0x12000, scoped, tag = 'internal scratch']
  %s0 = inlined_call_operand.vmem [shape: f32[2,1,2048], index: 0, kind: input, shape index: {}]
  %s1 = inlined_call_operand.vmem [shape: f32[2048,32], index: 1, kind: input, shape index: {}]
  %s2 = inlined_call_operand.vmem [shape: f32[1,32], index: 2, kind: input, shape index: {}]
  %s3 = inlined_call_operand.vmem [shape: f32[32,8], index: 3, kind: input, shape index: {}]
  %s4 = inlined_call_operand.vmem [shape: f32[1,8], index: 4, kind: input, shape index: {}]
  %s5 = inlined_call_operand.hbm [shape: f32[2,1,8], index: 5, kind: output, shape index: {0}]
  %s6 = inlined_call_operand.hbm [shape: f32[2,1,32], index: 6, kind: output, shape index: {1}]
  %7 = xla_tuple %s5, %s6
  %s8 = sld [smem:[#allocation0]]
  $region61: #{classifier_forward.9} parent=0
    _
  %s10 = ssub.s32 1, %s8
  %s11 = scalar_select 0, %s10, %s8
  $region1: #{classifier_forward.9} parent=0
    #allocation2 [shape = 'u8[1024]{0}', space=vmem, size = 0x400, scoped, tag = 'output window, operand 0']
    #allocation3 [shape = 's32[2]{0}', space=sflag, size = 0x8, scoped, tag = 'scoped memory for classifier_forward.9']
    #allocation4 [shape = 'u8[1024]{0}', space=vmem, size = 0x400, scoped, tag = 'output window, operand 1']
    #allocation5 [shape = 's32[2]{0}', space=sflag, size = 0x8, scoped, tag = 'scoped memory for classifier_forward.9']
    %12 = vsyncpa [#allocation3], 0
    %s13 = scalar_lea.sflag [#allocation3], 1
    %14 = vsyncpa %s13, 0
    %15 = vsyncpa [#allocation5], 0
    %s16 = scalar_lea.sflag [#allocation5], 1
    %17 = vsyncpa %s16, 0
    loop: start=0, step=1, limit=4
    $region2: #{classifier_forward.9} parent=1 // loop_pre_header
      _
    $region3: #{classifier_forward.9} parent=1 // loop_header
      %s19 = sphi 0, %s23
      %p20 = scmp.ge.s32.totalorder %s19, 4
      %s29 = sphi 0, %s31
      %s32 = sphi 0, %s29
      %s33 = sphi 0, %s32
      %s49 = sphi 0, %s33
      %s53 = sphi 0, %s53
      %s55 = sphi 0, %s53
      %s56 = sphi 0, %s55
      %s70 = sphi 0, %s56
      %s74 = sphi 0, %s74
      %s76 = sphi 0, %s74
      %s77 = sphi 0, %s76
      %s91 = sphi 0, %s77
      %s95 = sphi 0, %s95
      %s97 = sphi 0, %s95
      %s98 = sphi 0, %s97
      %s112 = sphi 0, %s98
      %s116 = sphi 0, %s116
      %s118 = sphi 0, %s116
      %s119 = sphi 0, %s118
      %s133 = sphi 0, %s119
      %s139 = sphi 0, %s141
      %s142 = sphi 0, %s139
      %s143 = sphi 0, %s142
      %s159 = sphi 0, %s143
      %s165 = sphi 0, %s167
      %s168 = sphi 0, %s165
      %s169 = sphi 0, %s168
      %s185 = sphi 0, %s169
    $region4: #{classifier_forward.9} parent=1 // loop_header_branch
      %22 = sbr.rel (%p20) target = $region8
    $region5: #{classifier_forward.9} parent=1 // loop_body
      %s24 = ssub.s32 %s19, 1
      %s25 = ssub.s32 %s19, 2
      %s26 = sadd.s32 %s19, 1
      %s27 = ssub.s32 %s19, %s26
      %p28 = scmp.eq.s32.totalorder %s27, 0
      %s30 = sadd.s32 %s29, 1
      %s31 = scalar_select %p28, %s29, %s30
      %p34 = pneg %p28
      %p35 = scmp.eq.s32.totalorder %s19, 1
      %p36 = por %p34, %p35
      %p37 = scmp.ne.s32.totalorder %s29, %s32
      %p38 = scmp.eq.s32.totalorder %s19, 0
      %p39 = por %p37, %p38
      %p40 = scmp.ne.s32.totalorder %s29, %s32
      %p41 = scmp.eq.s32.totalorder %s24, 1
      %p42 = por %p40, %p41
      %p43 = scmp.ne.s32.totalorder %s32, %s33
      %p44 = scmp.eq.s32.totalorder %s24, 0
      %p45 = por %p43, %p44
      %p46 = scmp.ne.s32.totalorder %s32, %s33
      %p47 = scmp.eq.s32.totalorder %s25, 1
      %p48 = por %p46, %p47
      %p50 = scmp.ne.s32.totalorder %s33, %s49
      %p51 = scmp.eq.s32.totalorder %s25, 0
      %p52 = por %p50, %p51
      %s54 = sadd.s32 %s53, 1
      %p57 = scmp.eq.s32.totalorder %s19, 1
      %p58 = scmp.ne.s32.totalorder %s53, %s55
      %p59 = scmp.eq.s32.totalorder %s19, 0
      %p60 = por %p58, %p59
      %p61 = scmp.ne.s32.totalorder %s53, %s55
      %p62 = scmp.eq.s32.totalorder %s24, 1
      %p63 = por %p61, %p62
      %p64 = scmp.ne.s32.totalorder %s55, %s56
      %p65 = scmp.eq.s32.totalorder %s24, 0
      %p66 = por %p64, %p65
      %p67 = scmp.ne.s32.totalorder %s55, %s56
      %p68 = scmp.eq.s32.totalorder %s25, 1
      %p69 = por %p67, %p68
      %p71 = scmp.ne.s32.totalorder %s56, %s70
      %p72 = scmp.eq.s32.totalorder %s25, 0
      %p73 = por %p71, %p72
      %s75 = sadd.s32 %s74, 1
      %p78 = scmp.eq.s32.totalorder %s19, 1
      %p79 = scmp.ne.s32.totalorder %s74, %s76
      %p80 = scmp.eq.s32.totalorder %s19, 0
      %p81 = por %p79, %p80
      %p82 = scmp.ne.s32.totalorder %s74, %s76
      %p83 = scmp.eq.s32.totalorder %s24, 1
      %p84 = por %p82, %p83
      %p85 = scmp.ne.s32.totalorder %s76, %s77
      %p86 = scmp.eq.s32.totalorder %s24, 0
      %p87 = por %p85, %p86
      %p88 = scmp.ne.s32.totalorder %s76, %s77
      %p89 = scmp.eq.s32.totalorder %s25, 1
      %p90 = por %p88, %p89
      %p92 = scmp.ne.s32.totalorder %s77, %s91
      %p93 = scmp.eq.s32.totalorder %s25, 0
      %p94 = por %p92, %p93
      %s96 = sadd.s32 %s95, 1
      %p99 = scmp.eq.s32.totalorder %s19, 1
      %p100 = scmp.ne.s32.totalorder %s95, %s97
      %p101 = scmp.eq.s32.totalorder %s19, 0
      %p102 = por %p100, %p101
      %p103 = scmp.ne.s32.totalorder %s95, %s97
      %p104 = scmp.eq.s32.totalorder %s24, 1
      %p105 = por %p103, %p104
      %p106 = scmp.ne.s32.totalorder %s97, %s98
      %p107 = scmp.eq.s32.totalorder %s24, 0
      %p108 = por %p106, %p107
      %p109 = scmp.ne.s32.totalorder %s97, %s98
      %p110 = scmp.eq.s32.totalorder %s25, 1
      %p111 = por %p109, %p110
      %p113 = scmp.ne.s32.totalorder %s98, %s112
      %p114 = scmp.eq.s32.totalorder %s25, 0
      %p115 = por %p113, %p114
      %s117 = sadd.s32 %s116, 1
      %p120 = scmp.eq.s32.totalorder %s19, 1
      %p121 = scmp.ne.s32.totalorder %s116, %s118
      %p122 = scmp.eq.s32.totalorder %s19, 0
      %p123 = por %p121, %p122
      %p124 = scmp.ne.s32.totalorder %s116, %s118
      %p125 = scmp.eq.s32.totalorder %s24, 1
      %p126 = por %p124, %p125
      %p127 = scmp.ne.s32.totalorder %s118, %s119
      %p128 = scmp.eq.s32.totalorder %s24, 0
      %p129 = por %p127, %p128
      %p130 = scmp.ne.s32.totalorder %s118, %s119
      %p131 = scmp.eq.s32.totalorder %s25, 1
      %p132 = por %p130, %p131
      %p134 = scmp.ne.s32.totalorder %s119, %s133
      %p135 = scmp.eq.s32.totalorder %s25, 0
      %p136 = por %p134, %p135
      %s137 = ssub.s32 %s19, %s26
      %p138 = scmp.eq.s32.totalorder %s137, 0
      %s140 = sadd.s32 %s139, 1
      %s141 = scalar_select %p138, %s139, %s140
      %p144 = pneg %p138
      %p145 = scmp.eq.s32.totalorder %s19, 1
      %p146 = por %p144, %p145
      %p147 = scmp.ne.s32.totalorder %s139, %s142
      %p148 = scmp.eq.s32.totalorder %s19, 0
      %p149 = por %p147, %p148
      %p150 = scmp.ne.s32.totalorder %s139, %s142
      %p151 = scmp.eq.s32.totalorder %s24, 1
      %p152 = por %p150, %p151
      %p153 = scmp.ne.s32.totalorder %s142, %s143
      %p154 = scmp.eq.s32.totalorder %s24, 0
      %p155 = por %p153, %p154
      %p156 = scmp.ne.s32.totalorder %s142, %s143
      %p157 = scmp.eq.s32.totalorder %s25, 1
      %p158 = por %p156, %p157
      %p160 = scmp.ne.s32.totalorder %s143, %s159
      %p161 = scmp.eq.s32.totalorder %s25, 0
      %p162 = por %p160, %p161
      %s163 = ssub.s32 %s19, %s26
      %p164 = scmp.eq.s32.totalorder %s163, 0
      %s166 = sadd.s32 %s165, 1
      %s167 = scalar_select %p164, %s165, %s166
      %p170 = pneg %p164
      %p171 = scmp.eq.s32.totalorder %s19, 1
      %p172 = por %p170, %p171
      %p173 = scmp.ne.s32.totalorder %s165, %s168
      %p174 = scmp.eq.s32.totalorder %s19, 0
      %p175 = por %p173, %p174
      %p176 = scmp.ne.s32.totalorder %s165, %s168
      %p177 = scmp.eq.s32.totalorder %s24, 1
      %p178 = por %p176, %p177
      %p179 = scmp.ne.s32.totalorder %s168, %s169
      %p180 = scmp.eq.s32.totalorder %s24, 0
      %p181 = por %p179, %p180
      %p182 = scmp.ne.s32.totalorder %s168, %s169
      %p183 = scmp.eq.s32.totalorder %s25, 1
      %p184 = por %p182, %p183
      %p186 = scmp.ne.s32.totalorder %s169, %s185
      %p187 = scmp.eq.s32.totalorder %s25, 0
      %p188 = por %p186, %p187
      %p189 = scmp.le.s32.totalorder 1, %s19
      %p190 = scmp.lt.s32.totalorder %s19, 3
      %p191 = pnand %p189, %p190
      %p192 = pneg %p191
      // Predicated region
      $region9: #{classifier_forward.9} parent=5 // pred_check
        _
      $region10: #{classifier_forward.9} parent=5 // pred_check_branch
        %194 = sbr.rel (%p191) target = $region12
      $region11: #{classifier_forward.9} parent=5 // pred_region
        %s195 = ssub.s32 %s19, 1
        // Predicated region
        $region13: #{classifier_forward.9} parent=11 // pred_check
          %p196 = pneg %p66
        $region14: #{classifier_forward.9} parent=11 // pred_check_branch
          %198 = sbr.rel (%p196) target = $region16
        $region15: #{classifier_forward.9} parent=11 // pred_region
          _
        $region16: #{classifier_forward.9} parent=11 // pred_fallthru
          _
        // Predicated region
        $region17: #{classifier_forward.9} parent=11 // pred_check
          %p199 = pneg %p87
        $region18: #{classifier_forward.9} parent=11 // pred_check_branch
          %201 = sbr.rel (%p199) target = $region20
        $region19: #{classifier_forward.9} parent=11 // pred_region
          _
        $region20: #{classifier_forward.9} parent=11 // pred_fallthru
          _
        // Predicated region
        $region21: #{classifier_forward.9} parent=11 // pred_check
          %p202 = pneg %p108
        $region22: #{classifier_forward.9} parent=11 // pred_check_branch
          %204 = sbr.rel (%p202) target = $region24
        $region23: #{classifier_forward.9} parent=11 // pred_region
          _
        $region24: #{classifier_forward.9} parent=11 // pred_fallthru
          _
        // Predicated region
        $region25: #{classifier_forward.9} parent=11 // pred_check
          %p205 = pneg %p129
        $region26: #{classifier_forward.9} parent=11 // pred_check_branch
          %207 = sbr.rel (%p205) target = $region28
        $region27: #{classifier_forward.9} parent=11 // pred_region
          _
        $region28: #{classifier_forward.9} parent=11 // pred_fallthru
          _
      $region12: #{classifier_forward.9} parent=5 // pred_fallthru
        _
      %p208 = scmp.lt.s32.totalorder %s19, 2
      // Predicated region
      $region29: #{classifier_forward.9} parent=5 // pred_check
        %p209 = pneg %p208
      $region30: #{classifier_forward.9} parent=5 // pred_check_branch
        %211 = sbr.rel (%p209) target = $region32
      $region31: #{classifier_forward.9} parent=5 // pred_region
        // Predicated region
        $region33: #{classifier_forward.9} parent=31 // pred_check
          %p212 = pneg %p39
        $region34: #{classifier_forward.9} parent=31 // pred_check_branch
          %214 = sbr.rel (%p212) target = $region36
        $region35: #{classifier_forward.9} parent=31 // pred_region
          %p215 = scmp.lt.s32.totalorder %s19, 1
          %s216 = scalar_select %p215, %s19, 1
          %s217 = smul.addr %s216, 16
          %s218 = scalar_lea.vmem %s0, %s217
        $region36: #{classifier_forward.9} parent=31 // pred_fallthru
          _
      $region32: #{classifier_forward.9} parent=5 // pred_fallthru
        _
      %p219 = scmp.le.s32.totalorder 1, %s19
      %p220 = scmp.lt.s32.totalorder %s19, 3
      %p221 = pnand %p219, %p220
      %p222 = pneg %p221
      // Predicated region
      $region37: #{classifier_forward.9} parent=5 // pred_check
        _
      $region38: #{classifier_forward.9} parent=5 // pred_check_branch
        %224 = sbr.rel (%p221) target = $region40
      $region39: #{classifier_forward.9} parent=5 // pred_region
        %s225 = ssub.s32 %s19, 1
        %p226 = scmp.lt.s32.totalorder %s24, 1
        %s227 = scalar_select %p226, %s24, 1
        %s228 = smul.addr %s227, 16
        %s229 = scalar_lea.vmem %s0, %s228
        %p230 = pneg %p45
        %p231 = pneg %p42
        %p232 = pneg %p66
        %p233 = pneg %p63
        %p234 = pneg %p87
        %p235 = pneg %p84
        %p236 = pneg %p108
        %p237 = pneg %p105
        %p238 = pneg %p129
        %p239 = pneg %p126
        %p240 = pneg %p155
        %p241 = pneg %p152
        %s242 = sand.u32 %s142, 1
        %s243 = scalar_lea.sflag [#allocation3], %s242
        %s244 = sand.u32 %s142, 1
        %s245 = scalar_lea.vmem [#allocation2], %s244
        %p246 = pneg %p181
        %p247 = pneg %p178
        %s248 = sand.u32 %s168, 1
        %s249 = scalar_lea.sflag [#allocation5], %s248
        %s250 = sand.u32 %s168, 1
        %s251 = scalar_lea.vmem [#allocation4], %s250
        %p252 = scmp.lt.s32.totalorder %s24, 1
        %s253 = scalar_select %p252, %s24, 1
        %s254 = smul.addr %s253, 16
        %s255 = scalar_lea.vmem %s0, %s254
        %v256 = vld [vmem:[%s255] sm:$0xff]
        %v257 = vld [vmem:[%s255 + $0x8] sm:$0xff]
        %v258 = vld [vmem:[%s1] sm:$0xff]
        %v259 = vld [vmem:[%s1 + $0x8] sm:$0xff]
        %v260 = vld [vmem:[%s1 + $0x10] sm:$0xff]
        %v261 = vld [vmem:[%s1 + $0x18] sm:$0xff]
        %v262 = vld [vmem:[%s1 + $0x20] sm:$0xff]
        %v263 = vld [vmem:[%s1 + $0x28] sm:$0xff]
        %v264 = vld [vmem:[%s1 + $0x30] sm:$0xff]
        %v265 = vld [vmem:[%s1 + $0x38] sm:$0xff]
        %v266 = vld [vmem:[%s1 + $0x40] sm:$0xff]
        %v267 = vld [vmem:[%s1 + $0x48] sm:$0xff]
        %v268 = vld [vmem:[%s1 + $0x50] sm:$0xff]
        %v269 = vld [vmem:[%s1 + $0x58] sm:$0xff]
        %v270 = vld [vmem:[%s1 + $0x60] sm:$0xff]
        %v271 = vld [vmem:[%s1 + $0x68] sm:$0xff]
        %v272 = vld [vmem:[%s1 + $0x70] sm:$0xff]
        %v273 = vld [vmem:[%s1 + $0x78] sm:$0xff]
        %v274 = vld [vmem:[%s1 + $0x80] sm:$0xff]
        %v275 = vld [vmem:[%s1 + $0x88] sm:$0xff]
        %v276 = vld [vmem:[%s1 + $0x90] sm:$0xff]
        %v277 = vld [vmem:[%s1 + $0x98] sm:$0xff]
        %v278 = vld [vmem:[%s1 + $0xa0] sm:$0xff]
        %v279 = vld [vmem:[%s1 + $0xa8] sm:$0xff]
        %v280 = vld [vmem:[%s1 + $0xb0] sm:$0xff]
        %v281 = vld [vmem:[%s1 + $0xb8] sm:$0xff]
        %v282 = vld [vmem:[%s1 + $0xc0] sm:$0xff]
        %v283 = vld [vmem:[%s1 + $0xc8] sm:$0xff]
        %v284 = vld [vmem:[%s1 + $0xd0] sm:$0xff]
        %v285 = vld [vmem:[%s1 + $0xd8] sm:$0xff]
        %v286 = vld [vmem:[%s1 + $0xe0] sm:$0xff]
        %v287 = vld [vmem:[%s1 + $0xe8] sm:$0xff]
        %v288 = vld [vmem:[%s1 + $0xf0] sm:$0xff]
        %v289 = vld [vmem:[%s1 + $0xf8] sm:$0xff]
        %v290 = vld [vmem:[%s1 + $0x100] sm:$0xff]
        %v291 = vld [vmem:[%s1 + $0x108] sm:$0xff]
        %v292 = vld [vmem:[%s1 + $0x110] sm:$0xff]
        %v293 = vld [vmem:[%s1 + $0x118] sm:$0xff]
        %v294 = vld [vmem:[%s1 + $0x120] sm:$0xff]
        %v295 = vld [vmem:[%s1 + $0x128] sm:$0xff]
        %v296 = vld [vmem:[%s1 + $0x130] sm:$0xff]
        %v297 = vld [vmem:[%s1 + $0x138] sm:$0xff]
        %v298 = vld [vmem:[%s1 + $0x140] sm:$0xff]
        %v299 = vld [vmem:[%s1 + $0x148] sm:$0xff]
        %v300 = vld [vmem:[%s1 + $0x150] sm:$0xff]
        %v301 = vld [vmem:[%s1 + $0x158] sm:$0xff]
        %v302 = vld [vmem:[%s1 + $0x160] sm:$0xff]
        %v303 = vld [vmem:[%s1 + $0x168] sm:$0xff]
        %v304 = vld [vmem:[%s1 + $0x170] sm:$0xff]
        %v305 = vld [vmem:[%s1 + $0x178] sm:$0xff]
        %v306 = vld [vmem:[%s1 + $0x180] sm:$0xff]
        %v307 = vld [vmem:[%s1 + $0x188] sm:$0xff]
        %v308 = vld [vmem:[%s1 + $0x190] sm:$0xff]
        %v309 = vld [vmem:[%s1 + $0x198] sm:$0xff]
        %v310 = vld [vmem:[%s1 + $0x1a0] sm:$0xff]
        %v311 = vld [vmem:[%s1 + $0x1a8] sm:$0xff]
        %v312 = vld [vmem:[%s1 + $0x1b0] sm:$0xff]
        %v313 = vld [vmem:[%s1 + $0x1b8] sm:$0xff]
        %v314 = vld [vmem:[%s1 + $0x1c0] sm:$0xff]
        %v315 = vld [vmem:[%s1 + $0x1c8] sm:$0xff]
        %v316 = vld [vmem:[%s1 + $0x1d0] sm:$0xff]
        %v317 = vld [vmem:[%s1 + $0x1d8] sm:$0xff]
        %v318 = vld [vmem:[%s1 + $0x1e0] sm:$0xff]
        %v319 = vld [vmem:[%s1 + $0x1e8] sm:$0xff]
        %v320 = vld [vmem:[%s1 + $0x1f0] sm:$0xff]
        %v321 = vld [vmem:[%s1 + $0x1f8] sm:$0xff]
        %v322 = vld [vmem:[%s1 + $0x200] sm:$0xff]
        %v323 = vld [vmem:[%s1 + $0x208] sm:$0xff]
        %v324 = vld [vmem:[%s1 + $0x210] sm:$0xff]
        %v325 = vld [vmem:[%s1 + $0x218] sm:$0xff]
        %v326 = vld [vmem:[%s1 + $0x220] sm:$0xff]
        %v327 = vld [vmem:[%s1 + $0x228] sm:$0xff]
        %v328 = vld [vmem:[%s1 + $0x230] sm:$0xff]
        %v329 = vld [vmem:[%s1 + $0x238] sm:$0xff]
        %v330 = vld [vmem:[%s1 + $0x240] sm:$0xff]
        %v331 = vld [vmem:[%s1 + $0x248] sm:$0xff]
        %v332 = vld [vmem:[%s1 + $0x250] sm:$0xff]
        %v333 = vld [vmem:[%s1 + $0x258] sm:$0xff]
        %v334 = vld [vmem:[%s1 + $0x260] sm:$0xff]
        %v335 = vld [vmem:[%s1 + $0x268] sm:$0xff]
        %v336 = vld [vmem:[%s1 + $0x270] sm:$0xff]
        %v337 = vld [vmem:[%s1 + $0x278] sm:$0xff]
        %v338 = vld [vmem:[%s1 + $0x280] sm:$0xff]
        %v339 = vld [vmem:[%s1 + $0x288] sm:$0xff]
        %v340 = vld [vmem:[%s1 + $0x290] sm:$0xff]
        %v341 = vld [vmem:[%s1 + $0x298] sm:$0xff]
        %v342 = vld [vmem:[%s1 + $0x2a0] sm:$0xff]
        %v343 = vld [vmem:[%s1 + $0x2a8] sm:$0xff]
        %v344 = vld [vmem:[%s1 + $0x2b0] sm:$0xff]
        %v345 = vld [vmem:[%s1 + $0x2b8] sm:$0xff]
        %v346 = vld [vmem:[%s1 + $0x2c0] sm:$0xff]
        %v347 = vld [vmem:[%s1 + $0x2c8] sm:$0xff]
        %v348 = vld [vmem:[%s1 + $0x2d0] sm:$0xff]
        %v349 = vld [vmem:[%s1 + $0x2d8] sm:$0xff]
        %v350 = vld [vmem:[%s1 + $0x2e0] sm:$0xff]
        %v351 = vld [vmem:[%s1 + $0x2e8] sm:$0xff]
        %v352 = vld [vmem:[%s1 + $0x2f0] sm:$0xff]
        %v353 = vld [vmem:[%s1 + $0x2f8] sm:$0xff]
        %v354 = vld [vmem:[%s1 + $0x300] sm:$0xff]
        %v355 = vld [vmem:[%s1 + $0x308] sm:$0xff]
        %v356 = vld [vmem:[%s1 + $0x310] sm:$0xff]
        %v357 = vld [vmem:[%s1 + $0x318] sm:$0xff]
        %v358 = vld [vmem:[%s1 + $0x320] sm:$0xff]
        %v359 = vld [vmem:[%s1 + $0x328] sm:$0xff]
        %v360 = vld [vmem:[%s1 + $0x330] sm:$0xff]
        %v361 = vld [vmem:[%s1 + $0x338] sm:$0xff]
        %v362 = vld [vmem:[%s1 + $0x340] sm:$0xff]
        %v363 = vld [vmem:[%s1 + $0x348] sm:$0xff]
        %v364 = vld [vmem:[%s1 + $0x350] sm:$0xff]
        %v365 = vld [vmem:[%s1 + $0x358] sm:$0xff]
        %v366 = vld [vmem:[%s1 + $0x360] sm:$0xff]
        %v367 = vld [vmem:[%s1 + $0x368] sm:$0xff]
        %v368 = vld [vmem:[%s1 + $0x370] sm:$0xff]
        %v369 = vld [vmem:[%s1 + $0x378] sm:$0xff]
        %v370 = vld [vmem:[%s1 + $0x380] sm:$0xff]
        %v371 = vld [vmem:[%s1 + $0x388] sm:$0xff]
        %v372 = vld [vmem:[%s1 + $0x390] sm:$0xff]
        %v373 = vld [vmem:[%s1 + $0x398] sm:$0xff]
        %v374 = vld [vmem:[%s1 + $0x3a0] sm:$0xff]
        %v375 = vld [vmem:[%s1 + $0x3a8] sm:$0xff]
        %v376 = vld [vmem:[%s1 + $0x3b0] sm:$0xff]
        %v377 = vld [vmem:[%s1 + $0x3b8] sm:$0xff]
        %v378 = vld [vmem:[%s1 + $0x3c0] sm:$0xff]
        %v379 = vld [vmem:[%s1 + $0x3c8] sm:$0xff]
        %v380 = vld [vmem:[%s1 + $0x3d0] sm:$0xff]
        %v381 = vld [vmem:[%s1 + $0x3d8] sm:$0xff]
        %v382 = vld [vmem:[%s1 + $0x3e0] sm:$0xff]
        %v383 = vld [vmem:[%s1 + $0x3e8] sm:$0xff]
        %v384 = vld [vmem:[%s1 + $0x3f0] sm:$0xff]
        %v385 = vld [vmem:[%s1 + $0x3f8] sm:$0xff]
        %v386 = vld [vmem:[%s1 + $0x400] sm:$0xff]
        %v387 = vld [vmem:[%s1 + $0x408] sm:$0xff]
        %v388 = vld [vmem:[%s1 + $0x410] sm:$0xff]
        %v389 = vld [vmem:[%s1 + $0x418] sm:$0xff]
        %v390 = vld [vmem:[%s1 + $0x420] sm:$0xff]
        %v391 = vld [vmem:[%s1 + $0x428] sm:$0xff]
        %v392 = vld [vmem:[%s1 + $0x430] sm:$0xff]
        %v393 = vld [vmem:[%s1 + $0x438] sm:$0xff]
        %v394 = vld [vmem:[%s1 + $0x440] sm:$0xff]
        %v395 = vld [vmem:[%s1 + $0x448] sm:$0xff]
        %v396 = vld [vmem:[%s1 + $0x450] sm:$0xff]
        %v397 = vld [vmem:[%s1 + $0x458] sm:$0xff]
        %v398 = vld [vmem:[%s1 + $0x460] sm:$0xff]
        %v399 = vld [vmem:[%s1 + $0x468] sm:$0xff]
        %v400 = vld [vmem:[%s1 + $0x470] sm:$0xff]
        %v401 = vld [vmem:[%s1 + $0x478] sm:$0xff]
        %v402 = vld [vmem:[%s1 + $0x480] sm:$0xff]
        %v403 = vld [vmem:[%s1 + $0x488] sm:$0xff]
        %v404 = vld [vmem:[%s1 + $0x490] sm:$0xff]
        %v405 = vld [vmem:[%s1 + $0x498] sm:$0xff]
        %v406 = vld [vmem:[%s1 + $0x4a0] sm:$0xff]
        %v407 = vld [vmem:[%s1 + $0x4a8] sm:$0xff]
        %v408 = vld [vmem:[%s1 + $0x4b0] sm:$0xff]
        %v409 = vld [vmem:[%s1 + $0x4b8] sm:$0xff]
        %v410 = vld [vmem:[%s1 + $0x4c0] sm:$0xff]
        %v411 = vld [vmem:[%s1 + $0x4c8] sm:$0xff]
        %v412 = vld [vmem:[%s1 + $0x4d0] sm:$0xff]
        %v413 = vld [vmem:[%s1 + $0x4d8] sm:$0xff]
        %v414 = vld [vmem:[%s1 + $0x4e0] sm:$0xff]
        %v415 = vld [vmem:[%s1 + $0x4e8] sm:$0xff]
        %v416 = vld [vmem:[%s1 + $0x4f0] sm:$0xff]
        %v417 = vld [vmem:[%s1 + $0x4f8] sm:$0xff]
        %v418 = vld [vmem:[%s1 + $0x500] sm:$0xff]
        %v419 = vld [vmem:[%s1 + $0x508] sm:$0xff]
        %v420 = vld [vmem:[%s1 + $0x510] sm:$0xff]
        %v421 = vld [vmem:[%s1 + $0x518] sm:$0xff]
        %v422 = vld [vmem:[%s1 + $0x520] sm:$0xff]
        %v423 = vld [vmem:[%s1 + $0x528] sm:$0xff]
        %v424 = vld [vmem:[%s1 + $0x530] sm:$0xff]
        %v425 = vld [vmem:[%s1 + $0x538] sm:$0xff]
        %v426 = vld [vmem:[%s1 + $0x540] sm:$0xff]
        %v427 = vld [vmem:[%s1 + $0x548] sm:$0xff]
        %v428 = vld [vmem:[%s1 + $0x550] sm:$0xff]
        %v429 = vld [vmem:[%s1 + $0x558] sm:$0xff]
        %v430 = vld [vmem:[%s1 + $0x560] sm:$0xff]
        %v431 = vld [vmem:[%s1 + $0x568] sm:$0xff]
        %v432 = vld [vmem:[%s1 + $0x570] sm:$0xff]
        %v433 = vld [vmem:[%s1 + $0x578] sm:$0xff]
        %v434 = vld [vmem:[%s1 + $0x580] sm:$0xff]
        %v435 = vld [vmem:[%s1 + $0x588] sm:$0xff]
        %v436 = vld [vmem:[%s1 + $0x590] sm:$0xff]
        %v437 = vld [vmem:[%s1 + $0x598] sm:$0xff]
        %v438 = vld [vmem:[%s1 + $0x5a0] sm:$0xff]
        %v439 = vld [vmem:[%s1 + $0x5a8] sm:$0xff]
        %v440 = vld [vmem:[%s1 + $0x5b0] sm:$0xff]
        %v441 = vld [vmem:[%s1 + $0x5b8] sm:$0xff]
        %v442 = vld [vmem:[%s1 + $0x5c0] sm:$0xff]
        %v443 = vld [vmem:[%s1 + $0x5c8] sm:$0xff]
        %v444 = vld [vmem:[%s1 + $0x5d0] sm:$0xff]
        %v445 = vld [vmem:[%s1 + $0x5d8] sm:$0xff]
        %v446 = vld [vmem:[%s1 + $0x5e0] sm:$0xff]
        %v447 = vld [vmem:[%s1 + $0x5e8] sm:$0xff]
        %v448 = vld [vmem:[%s1 + $0x5f0] sm:$0xff]
        %v449 = vld [vmem:[%s1 + $0x5f8] sm:$0xff]
        %v450 = vld [vmem:[%s1 + $0x600] sm:$0xff]
        %v451 = vld [vmem:[%s1 + $0x608] sm:$0xff]
        %v452 = vld [vmem:[%s1 + $0x610] sm:$0xff]
        %v453 = vld [vmem:[%s1 + $0x618] sm:$0xff]
        %v454 = vld [vmem:[%s1 + $0x620] sm:$0xff]
        %v455 = vld [vmem:[%s1 + $0x628] sm:$0xff]
        %v456 = vld [vmem:[%s1 + $0x630] sm:$0xff]
        %v457 = vld [vmem:[%s1 + $0x638] sm:$0xff]
        %v458 = vld [vmem:[%s1 + $0x640] sm:$0xff]
        %v459 = vld [vmem:[%s1 + $0x648] sm:$0xff]
        %v460 = vld [vmem:[%s1 + $0x650] sm:$0xff]
        %v461 = vld [vmem:[%s1 + $0x658] sm:$0xff]
        %v462 = vld [vmem:[%s1 + $0x660] sm:$0xff]
        %v463 = vld [vmem:[%s1 + $0x668] sm:$0xff]
        %v464 = vld [vmem:[%s1 + $0x670] sm:$0xff]
        %v465 = vld [vmem:[%s1 + $0x678] sm:$0xff]
        %v466 = vld [vmem:[%s1 + $0x680] sm:$0xff]
        %v467 = vld [vmem:[%s1 + $0x688] sm:$0xff]
        %v468 = vld [vmem:[%s1 + $0x690] sm:$0xff]
        %v469 = vld [vmem:[%s1 + $0x698] sm:$0xff]
        %v470 = vld [vmem:[%s1 + $0x6a0] sm:$0xff]
        %v471 = vld [vmem:[%s1 + $0x6a8] sm:$0xff]
        %v472 = vld [vmem:[%s1 + $0x6b0] sm:$0xff]
        %v473 = vld [vmem:[%s1 + $0x6b8] sm:$0xff]
        %v474 = vld [vmem:[%s1 + $0x6c0] sm:$0xff]
        %v475 = vld [vmem:[%s1 + $0x6c8] sm:$0xff]
        %v476 = vld [vmem:[%s1 + $0x6d0] sm:$0xff]
        %v477 = vld [vmem:[%s1 + $0x6d8] sm:$0xff]
        %v478 = vld [vmem:[%s1 + $0x6e0] sm:$0xff]
        %v479 = vld [vmem:[%s1 + $0x6e8] sm:$0xff]
        %v480 = vld [vmem:[%s1 + $0x6f0] sm:$0xff]
        %v481 = vld [vmem:[%s1 + $0x6f8] sm:$0xff]
        %v482 = vld [vmem:[%s1 + $0x700] sm:$0xff]
        %v483 = vld [vmem:[%s1 + $0x708] sm:$0xff]
        %v484 = vld [vmem:[%s1 + $0x710] sm:$0xff]
        %v485 = vld [vmem:[%s1 + $0x718] sm:$0xff]
        %v486 = vld [vmem:[%s1 + $0x720] sm:$0xff]
        %v487 = vld [vmem:[%s1 + $0x728] sm:$0xff]
        %v488 = vld [vmem:[%s1 + $0x730] sm:$0xff]
        %v489 = vld [vmem:[%s1 + $0x738] sm:$0xff]
        %v490 = vld [vmem:[%s1 + $0x740] sm:$0xff]
        %v491 = vld [vmem:[%s1 + $0x748] sm:$0xff]
        %v492 = vld [vmem:[%s1 + $0x750] sm:$0xff]
        %v493 = vld [vmem:[%s1 + $0x758] sm:$0xff]
        %v494 = vld [vmem:[%s1 + $0x760] sm:$0xff]
        %v495 = vld [vmem:[%s1 + $0x768] sm:$0xff]
        %v496 = vld [vmem:[%s1 + $0x770] sm:$0xff]
        %v497 = vld [vmem:[%s1 + $0x778] sm:$0xff]
        %v498 = vld [vmem:[%s1 + $0x780] sm:$0xff]
        %v499 = vld [vmem:[%s1 + $0x788] sm:$0xff]
        %v500 = vld [vmem:[%s1 + $0x790] sm:$0xff]
        %v501 = vld [vmem:[%s1 + $0x798] sm:$0xff]
        %v502 = vld [vmem:[%s1 + $0x7a0] sm:$0xff]
        %v503 = vld [vmem:[%s1 + $0x7a8] sm:$0xff]
        %v504 = vld [vmem:[%s1 + $0x7b0] sm:$0xff]
        %v505 = vld [vmem:[%s1 + $0x7b8] sm:$0xff]
        %v506 = vld [vmem:[%s1 + $0x7c0] sm:$0xff]
        %v507 = vld [vmem:[%s1 + $0x7c8] sm:$0xff]
        %v508 = vld [vmem:[%s1 + $0x7d0] sm:$0xff]
        %v509 = vld [vmem:[%s1 + $0x7d8] sm:$0xff]
        %v510 = vld [vmem:[%s1 + $0x7e0] sm:$0xff]
        %v511 = vld [vmem:[%s1 + $0x7e8] sm:$0xff]
        %v512 = vld [vmem:[%s1 + $0x7f0] sm:$0xff]
        %v513 = vld [vmem:[%s1 + $0x7f8] sm:$0xff]
        %v514 = vld [vmem:[%s2] sm:$0x1]
        %v517 = vlaneseq
        %v518 = vshrl.u32 %v517, 7
        %v519 = vsub.s32 0, %v518
        %v520 = vrot.slane %v256, %v519
        %v521 = vlaneseq
        %v522 = vshrl.u32 %v521, 7
        %v523 = vsub.s32 1, %v522
        %v524 = vrot.slane %v256, %v523
        %v525 = vlaneseq
        %v526 = vshrl.u32 %v525, 7
        %v527 = vsub.s32 2, %v526
        %v528 = vrot.slane %v256, %v527
        %v529 = vlaneseq
        %v530 = vshrl.u32 %v529, 7
        %v531 = vsub.s32 3, %v530
        %v532 = vrot.slane %v256, %v531
        %v533 = vlaneseq
        %v534 = vshrl.u32 %v533, 7
        %v535 = vsub.s32 4, %v534
        %v536 = vrot.slane %v256, %v535
        %v537 = vlaneseq
        %v538 = vshrl.u32 %v537, 7
        %v539 = vsub.s32 5, %v538
        %v540 = vrot.slane %v256, %v539
        %v541 = vlaneseq
        %v542 = vshrl.u32 %v541, 7
        %v543 = vsub.s32 6, %v542
        %v544 = vrot.slane %v256, %v543
        %v545 = vlaneseq
        %v546 = vshrl.u32 %v545, 7
        %v547 = vsub.s32 7, %v546
        %v548 = vrot.slane %v256, %v547
        %v549 = vlaneseq
        %v550 = vshrl.u32 %v549, 7
        %v551 = vsub.s32 0, %v550
        %v552 = vrot.slane %v257, %v551
        %v553 = vlaneseq
        %v554 = vshrl.u32 %v553, 7
        %v555 = vsub.s32 1, %v554
        %v556 = vrot.slane %v257, %v555
        %v557 = vlaneseq
        %v558 = vshrl.u32 %v557, 7
        %v559 = vsub.s32 2, %v558
        %v560 = vrot.slane %v257, %v559
        %v561 = vlaneseq
        %v562 = vshrl.u32 %v561, 7
        %v563 = vsub.s32 3, %v562
        %v564 = vrot.slane %v257, %v563
        %v565 = vlaneseq
        %v566 = vshrl.u32 %v565, 7
        %v567 = vsub.s32 4, %v566
        %v568 = vrot.slane %v257, %v567
        %v569 = vlaneseq
        %v570 = vshrl.u32 %v569, 7
        %v571 = vsub.s32 5, %v570
        %v572 = vrot.slane %v257, %v571
        %v573 = vlaneseq
        %v574 = vshrl.u32 %v573, 7
        %v575 = vsub.s32 6, %v574
        %v576 = vrot.slane %v257, %v575
        %v577 = vlaneseq
        %v578 = vshrl.u32 %v577, 7
        %v579 = vsub.s32 7, %v578
        %v580 = vrot.slane %v257, %v579
        %597 = vmatprep.subr.mxu0 0.0
        %598 = vmatpush1.msra.mxu0 %v273
        %599 = vmatprep.subr.mxu0 0.0
        %600 = vmatpush1.msra.mxu0 %v272
        %601 = vmatprep.subr.mxu0 0.0
        %602 = vmatpush1.msra.mxu0 %v271
        %603 = vmatprep.subr.mxu0 0.0
        %604 = vmatpush1.msra.mxu0 %v270
        %605 = vmatprep.subr.mxu0 0.0
        %606 = vmatpush1.msra.mxu0 %v269
        %607 = vmatprep.subr.mxu0 0.0
        %608 = vmatpush1.msra.mxu0 %v268
        %609 = vmatprep.subr.mxu0 0.0
        %610 = vmatpush1.msra.mxu0 %v267
        %611 = vmatprep.subr.mxu0 0.0
        %612 = vmatpush1.msra.mxu0 %v266
        %613 = vmatprep.subr.mxu0 0.0
        %614 = vmatpush1.msra.mxu0 %v265
        %615 = vmatprep.subr.mxu0 0.0
        %616 = vmatpush1.msra.mxu0 %v264
        %617 = vmatprep.subr.mxu0 0.0
        %618 = vmatpush1.msra.mxu0 %v263
        %619 = vmatprep.subr.mxu0 0.0
        %620 = vmatpush1.msra.mxu0 %v262
        %621 = vmatprep.subr.mxu0 0.0
        %622 = vmatpush1.msra.mxu0 %v261
        %623 = vmatprep.subr.mxu0 0.0
        %624 = vmatpush1.msra.mxu0 %v260
        %625 = vmatprep.subr.mxu0 0.0
        %626 = vmatpush1.msra.mxu0 %v259
        %627 = vmatprep.subr.mxu0 0.0
        %628 = vmatpush1.msra.mxu0 %v258
        %629 = vmatprep.subr.mxu0 0.0
        %630 = vmatpush2.msra.mxu0 %v289
        %631 = vmatprep.subr.mxu0 0.0
        %632 = vmatpush2.msra.mxu0 %v288
        %633 = vmatprep.subr.mxu0 0.0
        %634 = vmatpush2.msra.mxu0 %v287
        %635 = vmatprep.subr.mxu0 0.0
        %636 = vmatpush2.msra.mxu0 %v286
        %637 = vmatprep.subr.mxu0 0.0
        %638 = vmatpush2.msra.mxu0 %v285
        %639 = vmatprep.subr.mxu0 0.0
        %640 = vmatpush2.msra.mxu0 %v284
        %641 = vmatprep.subr.mxu0 0.0
        %642 = vmatpush2.msra.mxu0 %v283
        %643 = vmatprep.subr.mxu0 0.0
        %644 = vmatpush2.msra.mxu0 %v282
        %645 = vmatprep.subr.mxu0 0.0
        %646 = vmatpush2.msra.mxu0 %v281
        %647 = vmatprep.subr.mxu0 0.0
        %648 = vmatpush2.msra.mxu0 %v280
        %649 = vmatprep.subr.mxu0 0.0
        %650 = vmatpush2.msra.mxu0 %v279
        %651 = vmatprep.subr.mxu0 0.0
        %652 = vmatpush2.msra.mxu0 %v278
        %653 = vmatprep.subr.mxu0 0.0
        %654 = vmatpush2.msra.mxu0 %v277
        %655 = vmatprep.subr.mxu0 0.0
        %656 = vmatpush2.msra.mxu0 %v276
        %657 = vmatprep.subr.mxu0 0.0
        %658 = vmatpush2.msra.mxu0 %v275
        %659 = vmatprep.subr.mxu0 0.0
        %660 = vmatpush2.msra.mxu0 %v274
        %661 = vmatprep.mubr.f32.mxu0 %v524
        %662 = vmatmul.mubr.f32.gmra.mxu0 %v520
        %v663 = vpop.f32.mrf.mxu0
        %v664 = vadd.f32 %v514, %v663
        %v665 = vpop.f32.mrf.mxu0
        %666 = vdwg.mxu0
        %667 = vmatprep.subr.mxu0 0.0
        %668 = vmatpush1.msra.mxu0 %v305
        %669 = vmatprep.subr.mxu0 0.0
        %670 = vmatpush1.msra.mxu0 %v304
        %671 = vmatprep.subr.mxu0 0.0
        %672 = vmatpush1.msra.mxu0 %v303
        %673 = vmatprep.subr.mxu0 0.0
        %674 = vmatpush1.msra.mxu0 %v302
        %675 = vmatprep.subr.mxu0 0.0
        %676 = vmatpush1.msra.mxu0 %v301
        %677 = vmatprep.subr.mxu0 0.0
        %678 = vmatpush1.msra.mxu0 %v300
        %679 = vmatprep.subr.mxu0 0.0
        %680 = vmatpush1.msra.mxu0 %v299
        %681 = vmatprep.subr.mxu0 0.0
        %682 = vmatpush1.msra.mxu0 %v298
        %683 = vmatprep.subr.mxu0 0.0
        %684 = vmatpush1.msra.mxu0 %v297
        %685 = vmatprep.subr.mxu0 0.0
        %686 = vmatpush1.msra.mxu0 %v296
        %687 = vmatprep.subr.mxu0 0.0
        %688 = vmatpush1.msra.mxu0 %v295
        %689 = vmatprep.subr.mxu0 0.0
        %690 = vmatpush1.msra.mxu0 %v294
        %691 = vmatprep.subr.mxu0 0.0
        %692 = vmatpush1.msra.mxu0 %v293
        %693 = vmatprep.subr.mxu0 0.0
        %694 = vmatpush1.msra.mxu0 %v292
        %695 = vmatprep.subr.mxu0 0.0
        %696 = vmatpush1.msra.mxu0 %v291
        %697 = vmatprep.subr.mxu0 0.0
        %698 = vmatpush1.msra.mxu0 %v290
        %699 = vmatprep.subr.mxu0 0.0
        %700 = vmatpush2.msra.mxu0 %v321
        %701 = vmatprep.subr.mxu0 0.0
        %702 = vmatpush2.msra.mxu0 %v320
        %703 = vmatprep.subr.mxu0 0.0
        %704 = vmatpush2.msra.mxu0 %v319
        %705 = vmatprep.subr.mxu0 0.0
        %706 = vmatpush2.msra.mxu0 %v318
        %707 = vmatprep.subr.mxu0 0.0
        %708 = vmatpush2.msra.mxu0 %v317
        %709 = vmatprep.subr.mxu0 0.0
        %710 = vmatpush2.msra.mxu0 %v316
        %711 = vmatprep.subr.mxu0 0.0
        %712 = vmatpush2.msra.mxu0 %v315
        %713 = vmatprep.subr.mxu0 0.0
        %714 = vmatpush2.msra.mxu0 %v314
        %715 = vmatprep.subr.mxu0 0.0
        %716 = vmatpush2.msra.mxu0 %v313
        %717 = vmatprep.subr.mxu0 0.0
        %718 = vmatpush2.msra.mxu0 %v312
        %719 = vmatprep.subr.mxu0 0.0
        %720 = vmatpush2.msra.mxu0 %v311
        %721 = vmatprep.subr.mxu0 0.0
        %722 = vmatpush2.msra.mxu0 %v310
        %723 = vmatprep.subr.mxu0 0.0
        %724 = vmatpush2.msra.mxu0 %v309
        %725 = vmatprep.subr.mxu0 0.0
        %726 = vmatpush2.msra.mxu0 %v308
        %727 = vmatprep.subr.mxu0 0.0
        %728 = vmatpush2.msra.mxu0 %v307
        %729 = vmatprep.subr.mxu0 0.0
        %730 = vmatpush2.msra.mxu0 %v306
        %731 = vmatprep.mubr.f32.mxu0 %v532
        %732 = vmatmul.mubr.f32.gmra.mxu0 %v528
        %v733 = vpop.f32.mrf.mxu0
        %v734 = vadd.f32 %v664, %v733
        %v735 = vpop.f32.mrf.mxu0
        %736 = vdwg.mxu0
        %737 = vmatprep.subr.mxu0 0.0
        %738 = vmatpush1.msra.mxu0 %v337
        %739 = vmatprep.subr.mxu0 0.0
        %740 = vmatpush1.msra.mxu0 %v336
        %741 = vmatprep.subr.mxu0 0.0
        %742 = vmatpush1.msra.mxu0 %v335
        %743 = vmatprep.subr.mxu0 0.0
        %744 = vmatpush1.msra.mxu0 %v334
        %745 = vmatprep.subr.mxu0 0.0
        %746 = vmatpush1.msra.mxu0 %v333
        %747 = vmatprep.subr.mxu0 0.0
        %748 = vmatpush1.msra.mxu0 %v332
        %749 = vmatprep.subr.mxu0 0.0
        %750 = vmatpush1.msra.mxu0 %v331
        %751 = vmatprep.subr.mxu0 0.0
        %752 = vmatpush1.msra.mxu0 %v330
        %753 = vmatprep.subr.mxu0 0.0
        %754 = vmatpush1.msra.mxu0 %v329
        %755 = vmatprep.subr.mxu0 0.0
        %756 = vmatpush1.msra.mxu0 %v328
        %757 = vmatprep.subr.mxu0 0.0
        %758 = vmatpush1.msra.mxu0 %v327
        %759 = vmatprep.subr.mxu0 0.0
        %760 = vmatpush1.msra.mxu0 %v326
        %761 = vmatprep.subr.mxu0 0.0
        %762 = vmatpush1.msra.mxu0 %v325
        %763 = vmatprep.subr.mxu0 0.0
        %764 = vmatpush1.msra.mxu0 %v324
        %765 = vmatprep.subr.mxu0 0.0
        %766 = vmatpush1.msra.mxu0 %v323
        %767 = vmatprep.subr.mxu0 0.0
        %768 = vmatpush1.msra.mxu0 %v322
        %769 = vmatprep.subr.mxu0 0.0
        %770 = vmatpush2.msra.mxu0 %v353
        %771 = vmatprep.subr.mxu0 0.0
        %772 = vmatpush2.msra.mxu0 %v352
        %773 = vmatprep.subr.mxu0 0.0
        %774 = vmatpush2.msra.mxu0 %v351
        %775 = vmatprep.subr.mxu0 0.0
        %776 = vmatpush2.msra.mxu0 %v350
        %777 = vmatprep.subr.mxu0 0.0
        %778 = vmatpush2.msra.mxu0 %v349
        %779 = vmatprep.subr.mxu0 0.0
        %780 = vmatpush2.msra.mxu0 %v348
        %781 = vmatprep.subr.mxu0 0.0
        %782 = vmatpush2.msra.mxu0 %v347
        %783 = vmatprep.subr.mxu0 0.0
        %784 = vmatpush2.msra.mxu0 %v346
        %785 = vmatprep.subr.mxu0 0.0
        %786 = vmatpush2.msra.mxu0 %v345
        %787 = vmatprep.subr.mxu0 0.0
        %788 = vmatpush2.msra.mxu0 %v344
        %789 = vmatprep.subr.mxu0 0.0
        %790 = vmatpush2.msra.mxu0 %v343
        %791 = vmatprep.subr.mxu0 0.0
        %792 = vmatpush2.msra.mxu0 %v342
        %793 = vmatprep.subr.mxu0 0.0
        %794 = vmatpush2.msra.mxu0 %v341
        %795 = vmatprep.subr.mxu0 0.0
        %796 = vmatpush2.msra.mxu0 %v340
        %797 = vmatprep.subr.mxu0 0.0
        %798 = vmatpush2.msra.mxu0 %v339
        %799 = vmatprep.subr.mxu0 0.0
        %800 = vmatpush2.msra.mxu0 %v338
        %801 = vmatprep.mubr.f32.mxu0 %v540
        %802 = vmatmul.mubr.f32.gmra.mxu0 %v536
        %v803 = vpop.f32.mrf.mxu0
        %v804 = vadd.f32 %v734, %v803
        %v805 = vpop.f32.mrf.mxu0
        %806 = vdwg.mxu0
        %807 = vmatprep.subr.mxu0 0.0
        %808 = vmatpush1.msra.mxu0 %v369
        %809 = vmatprep.subr.mxu0 0.0
        %810 = vmatpush1.msra.mxu0 %v368
        %811 = vmatprep.subr.mxu0 0.0
        %812 = vmatpush1.msra.mxu0 %v367
        %813 = vmatprep.subr.mxu0 0.0
        %814 = vmatpush1.msra.mxu0 %v366
        %815 = vmatprep.subr.mxu0 0.0
        %816 = vmatpush1.msra.mxu0 %v365
        %817 = vmatprep.subr.mxu0 0.0
        %818 = vmatpush1.msra.mxu0 %v364
        %819 = vmatprep.subr.mxu0 0.0
        %820 = vmatpush1.msra.mxu0 %v363
        %821 = vmatprep.subr.mxu0 0.0
        %822 = vmatpush1.msra.mxu0 %v362
        %823 = vmatprep.subr.mxu0 0.0
        %824 = vmatpush1.msra.mxu0 %v361
        %825 = vmatprep.subr.mxu0 0.0
        %826 = vmatpush1.msra.mxu0 %v360
        %827 = vmatprep.subr.mxu0 0.0
        %828 = vmatpush1.msra.mxu0 %v359
        %829 = vmatprep.subr.mxu0 0.0
        %830 = vmatpush1.msra.mxu0 %v358
        %831 = vmatprep.subr.mxu0 0.0
        %832 = vmatpush1.msra.mxu0 %v357
        %833 = vmatprep.subr.mxu0 0.0
        %834 = vmatpush1.msra.mxu0 %v356
        %835 = vmatprep.subr.mxu0 0.0
        %836 = vmatpush1.msra.mxu0 %v355
        %837 = vmatprep.subr.mxu0 0.0
        %838 = vmatpush1.msra.mxu0 %v354
        %839 = vmatprep.subr.mxu0 0.0
        %840 = vmatpush2.msra.mxu0 %v385
        %841 = vmatprep.subr.mxu0 0.0
        %842 = vmatpush2.msra.mxu0 %v384
        %843 = vmatprep.subr.mxu0 0.0
        %844 = vmatpush2.msra.mxu0 %v383
        %845 = vmatprep.subr.mxu0 0.0
        %846 = vmatpush2.msra.mxu0 %v382
        %847 = vmatprep.subr.mxu0 0.0
        %848 = vmatpush2.msra.mxu0 %v381
        %849 = vmatprep.subr.mxu0 0.0
        %850 = vmatpush2.msra.mxu0 %v380
        %851 = vmatprep.subr.mxu0 0.0
        %852 = vmatpush2.msra.mxu0 %v379
        %853 = vmatprep.subr.mxu0 0.0
        %854 = vmatpush2.msra.mxu0 %v378
        %855 = vmatprep.subr.mxu0 0.0
        %856 = vmatpush2.msra.mxu0 %v377
        %857 = vmatprep.subr.mxu0 0.0
        %858 = vmatpush2.msra.mxu0 %v376
        %859 = vmatprep.subr.mxu0 0.0
        %860 = vmatpush2.msra.mxu0 %v375
        %861 = vmatprep.subr.mxu0 0.0
        %862 = vmatpush2.msra.mxu0 %v374
        %863 = vmatprep.subr.mxu0 0.0
        %864 = vmatpush2.msra.mxu0 %v373
        %865 = vmatprep.subr.mxu0 0.0
        %866 = vmatpush2.msra.mxu0 %v372
        %867 = vmatprep.subr.mxu0 0.0
        %868 = vmatpush2.msra.mxu0 %v371
        %869 = vmatprep.subr.mxu0 0.0
        %870 = vmatpush2.msra.mxu0 %v370
        %871 = vmatprep.mubr.f32.mxu0 %v548
        %872 = vmatmul.mubr.f32.gmra.mxu0 %v544
        %v873 = vpop.f32.mrf.mxu0
        %v874 = vadd.f32 %v804, %v873
        %v875 = vpop.f32.mrf.mxu0
        %876 = vdwg.mxu0
        %877 = vmatprep.subr.mxu0 0.0
        %878 = vmatpush1.msra.mxu0 %v401
        %879 = vmatprep.subr.mxu0 0.0
        %880 = vmatpush1.msra.mxu0 %v400
        %881 = vmatprep.subr.mxu0 0.0
        %882 = vmatpush1.msra.mxu0 %v399
        %883 = vmatprep.subr.mxu0 0.0
        %884 = vmatpush1.msra.mxu0 %v398
        %885 = vmatprep.subr.mxu0 0.0
        %886 = vmatpush1.msra.mxu0 %v397
        %887 = vmatprep.subr.mxu0 0.0
        %888 = vmatpush1.msra.mxu0 %v396
        %889 = vmatprep.subr.mxu0 0.0
        %890 = vmatpush1.msra.mxu0 %v395
        %891 = vmatprep.subr.mxu0 0.0
        %892 = vmatpush1.msra.mxu0 %v394
        %893 = vmatprep.subr.mxu0 0.0
        %894 = vmatpush1.msra.mxu0 %v393
        %895 = vmatprep.subr.mxu0 0.0
        %896 = vmatpush1.msra.mxu0 %v392
        %897 = vmatprep.subr.mxu0 0.0
        %898 = vmatpush1.msra.mxu0 %v391
        %899 = vmatprep.subr.mxu0 0.0
        %900 = vmatpush1.msra.mxu0 %v390
        %901 = vmatprep.subr.mxu0 0.0
        %902 = vmatpush1.msra.mxu0 %v389
        %903 = vmatprep.subr.mxu0 0.0
        %904 = vmatpush1.msra.mxu0 %v388
        %905 = vmatprep.subr.mxu0 0.0
        %906 = vmatpush1.msra.mxu0 %v387
        %907 = vmatprep.subr.mxu0 0.0
        %908 = vmatpush1.msra.mxu0 %v386
        %909 = vmatprep.subr.mxu0 0.0
        %910 = vmatpush2.msra.mxu0 %v417
        %911 = vmatprep.subr.mxu0 0.0
        %912 = vmatpush2.msra.mxu0 %v416
        %913 = vmatprep.subr.mxu0 0.0
        %914 = vmatpush2.msra.mxu0 %v415
        %915 = vmatprep.subr.mxu0 0.0
        %916 = vmatpush2.msra.mxu0 %v414
        %917 = vmatprep.subr.mxu0 0.0
        %918 = vmatpush2.msra.mxu0 %v413
        %919 = vmatprep.subr.mxu0 0.0
        %920 = vmatpush2.msra.mxu0 %v412
        %921 = vmatprep.subr.mxu0 0.0
        %922 = vmatpush2.msra.mxu0 %v411
        %923 = vmatprep.subr.mxu0 0.0
        %924 = vmatpush2.msra.mxu0 %v410
        %925 = vmatprep.subr.mxu0 0.0
        %926 = vmatpush2.msra.mxu0 %v409
        %927 = vmatprep.subr.mxu0 0.0
        %928 = vmatpush2.msra.mxu0 %v408
        %929 = vmatprep.subr.mxu0 0.0
        %930 = vmatpush2.msra.mxu0 %v407
        %931 = vmatprep.subr.mxu0 0.0
        %932 = vmatpush2.msra.mxu0 %v406
        %933 = vmatprep.subr.mxu0 0.0
        %934 = vmatpush2.msra.mxu0 %v405
        %935 = vmatprep.subr.mxu0 0.0
        %936 = vmatpush2.msra.mxu0 %v404
        %937 = vmatprep.subr.mxu0 0.0
        %938 = vmatpush2.msra.mxu0 %v403
        %939 = vmatprep.subr.mxu0 0.0
        %940 = vmatpush2.msra.mxu0 %v402
        %941 = vmatprep.mubr.f32.mxu0 %v556
        %942 = vmatmul.mubr.f32.gmra.mxu0 %v552
        %v943 = vpop.f32.mrf.mxu0
        %v944 = vadd.f32 %v874, %v943
        %v945 = vpop.f32.mrf.mxu0
        %946 = vdwg.mxu0
        %947 = vmatprep.subr.mxu0 0.0
        %948 = vmatpush1.msra.mxu0 %v433
        %949 = vmatprep.subr.mxu0 0.0
        %950 = vmatpush1.msra.mxu0 %v432
        %951 = vmatprep.subr.mxu0 0.0
        %952 = vmatpush1.msra.mxu0 %v431
        %953 = vmatprep.subr.mxu0 0.0
        %954 = vmatpush1.msra.mxu0 %v430
        %955 = vmatprep.subr.mxu0 0.0
        %956 = vmatpush1.msra.mxu0 %v429
        %957 = vmatprep.subr.mxu0 0.0
        %958 = vmatpush1.msra.mxu0 %v428
        %959 = vmatprep.subr.mxu0 0.0
        %960 = vmatpush1.msra.mxu0 %v427
        %961 = vmatprep.subr.mxu0 0.0
        %962 = vmatpush1.msra.mxu0 %v426
        %963 = vmatprep.subr.mxu0 0.0
        %964 = vmatpush1.msra.mxu0 %v425
        %965 = vmatprep.subr.mxu0 0.0
        %966 = vmatpush1.msra.mxu0 %v424
        %967 = vmatprep.subr.mxu0 0.0
        %968 = vmatpush1.msra.mxu0 %v423
        %969 = vmatprep.subr.mxu0 0.0
        %970 = vmatpush1.msra.mxu0 %v422
        %971 = vmatprep.subr.mxu0 0.0
        %972 = vmatpush1.msra.mxu0 %v421
        %973 = vmatprep.subr.mxu0 0.0
        %974 = vmatpush1.msra.mxu0 %v420
        %975 = vmatprep.subr.mxu0 0.0
        %976 = vmatpush1.msra.mxu0 %v419
        %977 = vmatprep.subr.mxu0 0.0
        %978 = vmatpush1.msra.mxu0 %v418
        %979 = vmatprep.subr.mxu0 0.0
        %980 = vmatpush2.msra.mxu0 %v449
        %981 = vmatprep.subr.mxu0 0.0
        %982 = vmatpush2.msra.mxu0 %v448
        %983 = vmatprep.subr.mxu0 0.0
        %984 = vmatpush2.msra.mxu0 %v447
        %985 = vmatprep.subr.mxu0 0.0
        %986 = vmatpush2.msra.mxu0 %v446
        %987 = vmatprep.subr.mxu0 0.0
        %988 = vmatpush2.msra.mxu0 %v445
        %989 = vmatprep.subr.mxu0 0.0
        %990 = vmatpush2.msra.mxu0 %v444
        %991 = vmatprep.subr.mxu0 0.0
        %992 = vmatpush2.msra.mxu0 %v443
        %993 = vmatprep.subr.mxu0 0.0
        %994 = vmatpush2.msra.mxu0 %v442
        %995 = vmatprep.subr.mxu0 0.0
        %996 = vmatpush2.msra.mxu0 %v441
        %997 = vmatprep.subr.mxu0 0.0
        %998 = vmatpush2.msra.mxu0 %v440
        %999 = vmatprep.subr.mxu0 0.0
        %1000 = vmatpush2.msra.mxu0 %v439
        %1001 = vmatprep.subr.mxu0 0.0
        %1002 = vmatpush2.msra.mxu0 %v438
        %1003 = vmatprep.subr.mxu0 0.0
        %1004 = vmatpush2.msra.mxu0 %v437
        %1005 = vmatprep.subr.mxu0 0.0
        %1006 = vmatpush2.msra.mxu0 %v436
        %1007 = vmatprep.subr.mxu0 0.0
        %1008 = vmatpush2.msra.mxu0 %v435
        %1009 = vmatprep.subr.mxu0 0.0
        %1010 = vmatpush2.msra.mxu0 %v434
        %1011 = vmatprep.mubr.f32.mxu0 %v564
        %1012 = vmatmul.mubr.f32.gmra.mxu0 %v560
        %v1013 = vpop.f32.mrf.mxu0
        %v1014 = vadd.f32 %v944, %v1013
        %v1015 = vpop.f32.mrf.mxu0
        %1016 = vdwg.mxu0
        %1017 = vmatprep.subr.mxu0 0.0
        %1018 = vmatpush1.msra.mxu0 %v465
        %1019 = vmatprep.subr.mxu0 0.0
        %1020 = vmatpush1.msra.mxu0 %v464
        %1021 = vmatprep.subr.mxu0 0.0
        %1022 = vmatpush1.msra.mxu0 %v463
        %1023 = vmatprep.subr.mxu0 0.0
        %1024 = vmatpush1.msra.mxu0 %v462
        %1025 = vmatprep.subr.mxu0 0.0
        %1026 = vmatpush1.msra.mxu0 %v461
        %1027 = vmatprep.subr.mxu0 0.0
        %1028 = vmatpush1.msra.mxu0 %v460
        %1029 = vmatprep.subr.mxu0 0.0
        %1030 = vmatpush1.msra.mxu0 %v459
        %1031 = vmatprep.subr.mxu0 0.0
        %1032 = vmatpush1.msra.mxu0 %v458
        %1033 = vmatprep.subr.mxu0 0.0
        %1034 = vmatpush1.msra.mxu0 %v457
        %1035 = vmatprep.subr.mxu0 0.0
        %1036 = vmatpush1.msra.mxu0 %v456
        %1037 = vmatprep.subr.mxu0 0.0
        %1038 = vmatpush1.msra.mxu0 %v455
        %1039 = vmatprep.subr.mxu0 0.0
        %1040 = vmatpush1.msra.mxu0 %v454
        %1041 = vmatprep.subr.mxu0 0.0
        %1042 = vmatpush1.msra.mxu0 %v453
        %1043 = vmatprep.subr.mxu0 0.0
        %1044 = vmatpush1.msra.mxu0 %v452
        %1045 = vmatprep.subr.mxu0 0.0
        %1046 = vmatpush1.msra.mxu0 %v451
        %1047 = vmatprep.subr.mxu0 0.0
        %1048 = vmatpush1.msra.mxu0 %v450
        %1049 = vmatprep.subr.mxu0 0.0
        %1050 = vmatpush2.msra.mxu0 %v481
        %1051 = vmatprep.subr.mxu0 0.0
        %1052 = vmatpush2.msra.mxu0 %v480
        %1053 = vmatprep.subr.mxu0 0.0
        %1054 = vmatpush2.msra.mxu0 %v479
        %1055 = vmatprep.subr.mxu0 0.0
        %1056 = vmatpush2.msra.mxu0 %v478
        %1057 = vmatprep.subr.mxu0 0.0
        %1058 = vmatpush2.msra.mxu0 %v477
        %1059 = vmatprep.subr.mxu0 0.0
        %1060 = vmatpush2.msra.mxu0 %v476
        %1061 = vmatprep.subr.mxu0 0.0
        %1062 = vmatpush2.msra.mxu0 %v475
        %1063 = vmatprep.subr.mxu0 0.0
        %1064 = vmatpush2.msra.mxu0 %v474
        %1065 = vmatprep.subr.mxu0 0.0
        %1066 = vmatpush2.msra.mxu0 %v473
        %1067 = vmatprep.subr.mxu0 0.0
        %1068 = vmatpush2.msra.mxu0 %v472
        %1069 = vmatprep.subr.mxu0 0.0
        %1070 = vmatpush2.msra.mxu0 %v471
        %1071 = vmatprep.subr.mxu0 0.0
        %1072 = vmatpush2.msra.mxu0 %v470
        %1073 = vmatprep.subr.mxu0 0.0
        %1074 = vmatpush2.msra.mxu0 %v469
        %1075 = vmatprep.subr.mxu0 0.0
        %1076 = vmatpush2.msra.mxu0 %v468
        %1077 = vmatprep.subr.mxu0 0.0
        %1078 = vmatpush2.msra.mxu0 %v467
        %1079 = vmatprep.subr.mxu0 0.0
        %1080 = vmatpush2.msra.mxu0 %v466
        %1081 = vmatprep.mubr.f32.mxu0 %v572
        %1082 = vmatmul.mubr.f32.gmra.mxu0 %v568
        %v1083 = vpop.f32.mrf.mxu0
        %v1084 = vadd.f32 %v1014, %v1083
        %v1085 = vpop.f32.mrf.mxu0
        %1086 = vdwg.mxu0
        %1087 = vmatprep.subr.mxu0 0.0
        %1088 = vmatpush1.msra.mxu0 %v497
        %1089 = vmatprep.subr.mxu0 0.0
        %1090 = vmatpush1.msra.mxu0 %v496
        %1091 = vmatprep.subr.mxu0 0.0
        %1092 = vmatpush1.msra.mxu0 %v495
        %1093 = vmatprep.subr.mxu0 0.0
        %1094 = vmatpush1.msra.mxu0 %v494
        %1095 = vmatprep.subr.mxu0 0.0
        %1096 = vmatpush1.msra.mxu0 %v493
        %1097 = vmatprep.subr.mxu0 0.0
        %1098 = vmatpush1.msra.mxu0 %v492
        %1099 = vmatprep.subr.mxu0 0.0
        %1100 = vmatpush1.msra.mxu0 %v491
        %1101 = vmatprep.subr.mxu0 0.0
        %1102 = vmatpush1.msra.mxu0 %v490
        %1103 = vmatprep.subr.mxu0 0.0
        %1104 = vmatpush1.msra.mxu0 %v489
        %1105 = vmatprep.subr.mxu0 0.0
        %1106 = vmatpush1.msra.mxu0 %v488
        %1107 = vmatprep.subr.mxu0 0.0
        %1108 = vmatpush1.msra.mxu0 %v487
        %1109 = vmatprep.subr.mxu0 0.0
        %1110 = vmatpush1.msra.mxu0 %v486
        %1111 = vmatprep.subr.mxu0 0.0
        %1112 = vmatpush1.msra.mxu0 %v485
        %1113 = vmatprep.subr.mxu0 0.0
        %1114 = vmatpush1.msra.mxu0 %v484
        %1115 = vmatprep.subr.mxu0 0.0
        %1116 = vmatpush1.msra.mxu0 %v483
        %1117 = vmatprep.subr.mxu0 0.0
        %1118 = vmatpush1.msra.mxu0 %v482
        %1119 = vmatprep.subr.mxu0 0.0
        %1120 = vmatpush2.msra.mxu0 %v513
        %1121 = vmatprep.subr.mxu0 0.0
        %1122 = vmatpush2.msra.mxu0 %v512
        %1123 = vmatprep.subr.mxu0 0.0
        %1124 = vmatpush2.msra.mxu0 %v511
        %1125 = vmatprep.subr.mxu0 0.0
        %1126 = vmatpush2.msra.mxu0 %v510
        %1127 = vmatprep.subr.mxu0 0.0
        %1128 = vmatpush2.msra.mxu0 %v509
        %1129 = vmatprep.subr.mxu0 0.0
        %1130 = vmatpush2.msra.mxu0 %v508
        %1131 = vmatprep.subr.mxu0 0.0
        %1132 = vmatpush2.msra.mxu0 %v507
        %1133 = vmatprep.subr.mxu0 0.0
        %1134 = vmatpush2.msra.mxu0 %v506
        %1135 = vmatprep.subr.mxu0 0.0
        %1136 = vmatpush2.msra.mxu0 %v505
        %1137 = vmatprep.subr.mxu0 0.0
        %1138 = vmatpush2.msra.mxu0 %v504
        %1139 = vmatprep.subr.mxu0 0.0
        %1140 = vmatpush2.msra.mxu0 %v503
        %1141 = vmatprep.subr.mxu0 0.0
        %1142 = vmatpush2.msra.mxu0 %v502
        %1143 = vmatprep.subr.mxu0 0.0
        %1144 = vmatpush2.msra.mxu0 %v501
        %1145 = vmatprep.subr.mxu0 0.0
        %1146 = vmatpush2.msra.mxu0 %v500
        %1147 = vmatprep.subr.mxu0 0.0
        %1148 = vmatpush2.msra.mxu0 %v499
        %1149 = vmatprep.subr.mxu0 0.0
        %1150 = vmatpush2.msra.mxu0 %v498
        %1151 = vmatprep.mubr.f32.mxu0 %v580
        %1152 = vmatmul.mubr.f32.gmra.mxu0 %v576
        %v1153 = vpop.f32.mrf.mxu0
        %v1154 = vadd.f32 %v1084, %v1153
        %v1155 = vpop.f32.mrf.mxu0
        %1156 = vdwg.mxu0
        %v1157 = vadd.f32 %v1154, 0.0
        %vm1158 = vcmp.ge.f32.partialorder %v1157, 0.0
        %v1159 = vmul.f32 %v1157, 0.01
        %v1160 = vsel %vm1158, %v1157, %v1159
        %v1161 = vld [vmem:[%s3] sm:$0xff]
        %v1162 = vld [vmem:[%s3 + $0x8] sm:$0xff]
        %v1163 = vld [vmem:[%s3 + $0x10] sm:$0xff]
        %v1164 = vld [vmem:[%s3 + $0x18] sm:$0xff]
        %v1165 = vld [vmem:[%s4] sm:$0x1]
        %vm1166 = vcmask 261120
        %v1168 = vsel %vm1166, %v1160, 0
        %1170 = vmatprep.subr.mxu0 0.0
        %1171 = vmatpush1.msra.mxu0 0.0
        %1172 = vmatprep.subr.mxu0 0.0
        %1173 = vmatpush1.msra.mxu0 0.0
        %1174 = vmatprep.subr.mxu0 0.0
        %1175 = vmatpush1.msra.mxu0 0.0
        %1176 = vmatprep.subr.mxu0 0.0
        %1177 = vmatpush1.msra.mxu0 0.0
        %1178 = vmatprep.subr.mxu0 0.0
        %1179 = vmatpush1.msra.mxu0 0.0
        %1180 = vmatprep.subr.mxu0 0.0
        %1181 = vmatpush1.msra.mxu0 0.0
        %1182 = vmatprep.subr.mxu0 0.0
        %1183 = vmatpush1.msra.mxu0 0.0
        %1184 = vmatprep.subr.mxu0 0.0
        %1185 = vmatpush1.msra.mxu0 0.0
        %1186 = vmatprep.subr.mxu0 0.0
        %1187 = vmatpush1.msra.mxu0 0.0
        %1188 = vmatprep.subr.mxu0 0.0
        %1189 = vmatpush1.msra.mxu0 0.0
        %1190 = vmatprep.subr.mxu0 0.0
        %1191 = vmatpush1.msra.mxu0 0.0
        %1192 = vmatprep.subr.mxu0 0.0
        %1193 = vmatpush1.msra.mxu0 0.0
        %1194 = vmatprep.subr.mxu0 0.0
        %1195 = vmatpush1.msra.mxu0 %v1164
        %1196 = vmatprep.subr.mxu0 0.0
        %1197 = vmatpush1.msra.mxu0 %v1163
        %1198 = vmatprep.subr.mxu0 0.0
        %1199 = vmatpush1.msra.mxu0 %v1162
        %1200 = vmatprep.subr.mxu0 0.0
        %1201 = vmatpush1.msra.mxu0 %v1161
        %1202 = vmatprep.subr.mxu0 0.0
        %1203 = vmatpush2.msra.mxu0 0.0
        %1204 = vmatprep.subr.mxu0 0.0
        %1205 = vmatpush2.msra.mxu0 0.0
        %1206 = vmatprep.subr.mxu0 0.0
        %1207 = vmatpush2.msra.mxu0 0.0
        %1208 = vmatprep.subr.mxu0 0.0
        %1209 = vmatpush2.msra.mxu0 0.0
        %1210 = vmatprep.subr.mxu0 0.0
        %1211 = vmatpush2.msra.mxu0 0.0
        %1212 = vmatprep.subr.mxu0 0.0
        %1213 = vmatpush2.msra.mxu0 0.0
        %1214 = vmatprep.subr.mxu0 0.0
        %1215 = vmatpush2.msra.mxu0 0.0
        %1216 = vmatprep.subr.mxu0 0.0
        %1217 = vmatpush2.msra.mxu0 0.0
        %1218 = vmatprep.subr.mxu0 0.0
        %1219 = vmatpush2.msra.mxu0 0.0
        %1220 = vmatprep.subr.mxu0 0.0
        %1221 = vmatpush2.msra.mxu0 0.0
        %1222 = vmatprep.subr.mxu0 0.0
        %1223 = vmatpush2.msra.mxu0 0.0
        %1224 = vmatprep.subr.mxu0 0.0
        %1225 = vmatpush2.msra.mxu0 0.0
        %1226 = vmatprep.subr.mxu0 0.0
        %1227 = vmatpush2.msra.mxu0 0.0
        %1228 = vmatprep.subr.mxu0 0.0
        %1229 = vmatpush2.msra.mxu0 0.0
        %1230 = vmatprep.subr.mxu0 0.0
        %1231 = vmatpush2.msra.mxu0 0.0
        %1232 = vmatprep.subr.mxu0 0.0
        %1233 = vmatpush2.msra.mxu0 0.0
        %1234 = vmatprep.mubr.f32.mxu0 0.0
        %1235 = vmatmul.mubr.f32.gmra.mxu0 %v1168
        %v1236 = vpop.f32.mrf.mxu0
        %v1237 = vadd.f32 %v1165, %v1236
        %v1238 = vpop.f32.mrf.mxu0
        %1239 = vdwg.mxu0
        %vm1240 = vcmask 57344
        %1241 = vst.msk [vmem:[%s245] sm:$0x1] %vm1240, %v1237
        %vm1242 = vcmask 253952
        %1243 = vst.msk [vmem:[%s251] sm:$0x1] %vm1242, %v1157
        %s1244 = sand.u32 %s142, 1
        %s1245 = scalar_lea.sflag [#allocation3], %s1244
        %s1246 = sand.u32 %s142, 1
        %s1247 = scalar_lea.vmem [#allocation2], %s1246
        %s1248 = sand.u32 %s168, 1
        %s1249 = scalar_lea.sflag [#allocation5], %s1248
        %s1250 = sand.u32 %s168, 1
        %s1251 = scalar_lea.vmem [#allocation4], %s1250
        // Predicated region
        $region41: #{classifier_forward.9} parent=39 // pred_check
          %p1252 = pneg %p152
        $region42: #{classifier_forward.9} parent=39 // pred_check_branch
          %1254 = sbr.rel (%p1252) target = $region44
        $region43: #{classifier_forward.9} parent=39 // pred_region
          %s1256 = ssub.s32 16, 16
          %1257 = vsyncadd %s1245, %s1256
          %s1258 = smul.addr %s24, 16
          %s1259 = scalar_lea.hbm %s5, %s1258
          %s1261 = sshll.u32 %s1247, 4
          %s1262 = int_to_ptr.vmem [resolvable:$true] %s1261
          %1264 = dma.vmem_to_hbm [thread:$0]  %s1262, 16, %s1259, %s1245
        $region44: #{classifier_forward.9} parent=39 // pred_fallthru
          _
        // Predicated region
        $region45: #{classifier_forward.9} parent=39 // pred_check
          %p1265 = pneg %p178
        $region46: #{classifier_forward.9} parent=39 // pred_check_branch
          %1267 = sbr.rel (%p1265) target = $region48
        $region47: #{classifier_forward.9} parent=39 // pred_region
          %s1269 = ssub.s32 16, 16
          %1270 = vsyncadd %s1249, %s1269
          %s1271 = smul.addr %s24, 16
          %s1272 = scalar_lea.hbm %s6, %s1271
          %s1274 = sshll.u32 %s1251, 4
          %s1275 = int_to_ptr.vmem [resolvable:$true] %s1274
          %1277 = dma.vmem_to_hbm [thread:$0]  %s1275, 16, %s1272, %s1249
        $region48: #{classifier_forward.9} parent=39 // pred_fallthru
          _
      $region40: #{classifier_forward.9} parent=5 // pred_fallthru
        _
      %p1278 = scmp.le.s32.totalorder 2, %s19
      // Predicated region
      $region49: #{classifier_forward.9} parent=5 // pred_check
        %p1279 = pneg %p1278
      $region50: #{classifier_forward.9} parent=5 // pred_check_branch
        %1281 = sbr.rel (%p1279) target = $region52
      $region51: #{classifier_forward.9} parent=5 // pred_region
        %s1282 = ssub.s32 %s19, 2
        // Predicated region
        $region53: #{classifier_forward.9} parent=51 // pred_check
          %p1283 = pneg %p158
        $region54: #{classifier_forward.9} parent=51 // pred_check_branch
          %1285 = sbr.rel (%p1283) target = $region56
        $region55: #{classifier_forward.9} parent=51 // pred_region
          %s1286 = sand.u32 %s143, 1
          %s1287 = scalar_lea.sflag [#allocation3], %s1286
          %s1288 = sand.u32 %s143, 1
          %s1289 = scalar_lea.vmem [#allocation2], %s1288
          %1290 = dma.done %s1287, 16
        $region56: #{classifier_forward.9} parent=51 // pred_fallthru
          _
        // Predicated region
        $region57: #{classifier_forward.9} parent=51 // pred_check
          %p1291 = pneg %p184
        $region58: #{classifier_forward.9} parent=51 // pred_check_branch
          %1293 = sbr.rel (%p1291) target = $region60
        $region59: #{classifier_forward.9} parent=51 // pred_region
          %s1294 = sand.u32 %s169, 1
          %s1295 = scalar_lea.sflag [#allocation5], %s1294
          %s1296 = sand.u32 %s169, 1
          %s1297 = scalar_lea.vmem [#allocation4], %s1296
          %1298 = dma.done %s1295, 16
        $region60: #{classifier_forward.9} parent=51 // pred_fallthru
          _
      $region52: #{classifier_forward.9} parent=5 // pred_fallthru
        _
    $region6: #{classifier_forward.9} parent=1 // loop_footer
      %s23 = sadd.s32 1, %s19
    $region7: #{classifier_forward.9} parent=1 // loop_footer_branch
      %18 = sbr.rel target = $region3
    $region8: #{classifier_forward.9} parent=1 // loop_exit
      _
    %1299 = vsyncpa [#allocation3], 1
    %s1300 = scalar_lea.sflag [#allocation3], 1
    %1301 = vsyncpa %s1300, 1
    %1302 = vsyncpa [#allocation5], 1
    %s1303 = scalar_lea.sflag [#allocation5], 1
    %1304 = vsyncpa %s1303, 1

</llo_original>
